<compile_context>
chip_gen: v7x
topology: tpu7x:2x2x1
jax: 0.10.0
libtpu: 0.0.40
codegen_flags: <defaults>
</compile_context>

<pallas_src>
import functools

import jax
import jax.numpy as jnp
from jax import lax
from jax.experimental import pallas as pl
from jax.experimental.pallas import tpu as pltpu


# ---------------------------------------------------------------------------
# In-kernel building blocks (operate on values loaded from VMEM refs).
# ---------------------------------------------------------------------------

def _layernorm(x, gamma, beta, eps=1e-5):
    """PyTorch nn.LayerNorm (biased variance, eps=1e-5).  x: (..., C), f32."""
    mu = jnp.mean(x, axis=-1, keepdims=True)
    xc = x - mu
    var = jnp.mean(xc * xc, axis=-1, keepdims=True)
    return xc * lax.rsqrt(var + eps) * gamma + beta


def _softmax_rows(s):
    """Row softmax in f32; denominator reciprocal on the (otherwise idle) EUP."""
    m = jnp.max(s, axis=-1, keepdims=True)
    e = jnp.exp(s - m)
    denom = jnp.sum(e, axis=-1, keepdims=True)
    return e * pl.reciprocal(denom, approx=True)


def _attention_core(q, k, v, w_proj, b_proj, *, n_heads, allow):
    """Shared attention math.

    q: (Bb, T, C) f32 (scale already folded in), k/v: (Bb, Tk, C) f32,
    w_proj: (C, C) bf16, b_proj: (1, C) f32.  Returns (Bb, T, C) f32.

    Per-head score/PV matmuls run batched over Bb; the head-output projection
    is accumulated per head into one f32 (Bb*T, C) slab (no concat).
    """
    Bb, T, C = q.shape
    Tk = k.shape[1]
    H = C // n_heads

    q16 = q.astype(jnp.bfloat16)
    k16 = k.astype(jnp.bfloat16)
    v16 = v.astype(jnp.bfloat16)

    acc = jnp.zeros((Bb * T, C), jnp.float32)
    for h in range(n_heads):
        sl = slice(h * H, (h + 1) * H)
        s = jnp.einsum('bth,bsh->bts', q16[..., sl], k16[..., sl],
                       preferred_element_type=jnp.float32)        # (Bb, T, Tk)
        if allow is not None:
            # Finite fill avoids inf-inf NaNs if ever extended.
            s = jnp.where(allow, s, -1e30)
        p = _softmax_rows(s)
        o_h = jnp.einsum('bts,bsh->bth', p.astype(jnp.bfloat16), v16[..., sl],
                         preferred_element_type=jnp.float32)      # (Bb, T, H)
        # TODO(synk): avoid the per-head lane slices via a head-major relayout
        # once rank-4 / multi-batch dot_general lowering is verified on Mosaic.
        acc = acc + jnp.dot(o_h.reshape(Bb * T, H).astype(jnp.bfloat16),
                            w_proj[sl, :],
                            preferred_element_type=jnp.float32)   # (Bb*T, C)
    # TODO(synk): attention / MHA-output dropout omitted (identity in eval).
    return (acc + b_proj).reshape(Bb, T, C)


def _self_attention(h1, w_qkv, w_proj, b_proj, *, n_heads, scale, allow):
    """Masked self-MHA; x_q == x_kv so q/k/v come from one fused matmul."""
    Bb, T, C = h1.shape
    qkv = jnp.dot(h1.reshape(Bb * T, C).astype(jnp.bfloat16), w_qkv,
                  preferred_element_type=jnp.float32)             # (Bb*T, 3C)
    q = (qkv[:, :C] * scale).reshape(Bb, T, C)
    kv = qkv[:, C:]                                               # (Bb*T, 2C)
    k = kv[:, :C].reshape(Bb, T, C)
    v = kv[:, C:].reshape(Bb, T, C)
    out = _attention_core(q, k, v, w_proj, b_proj, n_heads=n_heads, allow=allow)
    return out, kv.reshape(Bb, T, 2 * C)


def _cross_attention(h2, x_kv_n, w_qkv, w_proj, b_proj, *, n_heads, scale):
    """Unmasked cross-MHA; q from h2, k/v from the lnX-normalized memory."""
    Bb, T, C = h2.shape
    Tk = x_kv_n.shape[1]
    q = (jnp.dot(h2.reshape(Bb * T, C).astype(jnp.bfloat16), w_qkv[:, :C],
                 preferred_element_type=jnp.float32) * scale).reshape(Bb, T, C)
    kv = jnp.dot(x_kv_n.reshape(Bb * Tk, C).astype(jnp.bfloat16), w_qkv[:, C:],
                 preferred_element_type=jnp.float32)              # (Bb*Tk, 2C)
    k = kv[:, :C].reshape(Bb, Tk, C)
    v = kv[:, C:].reshape(Bb, Tk, C)
    out = _attention_core(q, k, v, w_proj, b_proj, n_heads=n_heads, allow=None)
    return out, kv.reshape(Bb, Tk, 2 * C)


# ---------------------------------------------------------------------------
# The fused DecoderStack kernel.  One grid step == (one batch block, one layer).
# ---------------------------------------------------------------------------

def _decoder_stack_kernel(
        x_ref, xkv_ref,
        lnx_g_ref, lnx_b_ref,
        ln_g_ref, ln_b_ref,
        wqkv_sa_ref, wproj_sa_ref, bproj_sa_ref,
        wqkv_xa_ref, wproj_xa_ref, bproj_xa_ref,
        wff1_ref, bff1_ref, wff2_ref, bff2_ref,
        y_ref, kvsa_ref, kvxa_ref,
        x_scr, xkvn_scr,
        *, n_heads, scale, leaky_slope):
    layer = pl.program_id(1)
    n_layers = pl.num_programs(1)

    @pl.when(layer == 0)
    def _init():
        # Load the batch block and apply DecoderStack.lnX to the memory once.
        x_scr[...] = x_ref[...].astype(jnp.float32)
        xkvn_scr[...] = _layernorm(xkv_ref[...].astype(jnp.float32),
                                   lnx_g_ref[...], lnx_b_ref[...])

    x = x_scr[...]                       # (Bb, T, C) f32, residual stream
    x_kv_n = xkvn_scr[...]               # (Bb, Tk, C) f32
    Bb, T, C = x.shape

    # Causal mask (static shapes; self-attention path has T == Tk).
    row = lax.broadcasted_iota(jnp.int32, (T, T), 0)
    col = lax.broadcasted_iota(jnp.int32, (T, T), 1)
    allow = col <= row

    ln_gamma = ln_g_ref[0]               # (3, C): ln1 / ln2 / ln3 gammas
    ln_beta = ln_b_ref[0]

    # --- masked self-attention block --------------------------------------
    h1 = _layernorm(x, ln_gamma[0:1, :], ln_beta[0:1, :])
    sa_out, kv_sa = _self_attention(
        h1, wqkv_sa_ref[0], wproj_sa_ref[0], bproj_sa_ref[0],
        n_heads=n_heads, scale=scale, allow=allow)
    x = x + sa_out

    # --- unmasked cross-attention block ------------------------------------
    h2 = _layernorm(x, ln_gamma[1:2, :], ln_beta[1:2, :])
    xa_out, kv_xa = _cross_attention(
        h2, x_kv_n, wqkv_xa_ref[0], wproj_xa_ref[0], bproj_xa_ref[0],
        n_heads=n_heads, scale=scale)
    x = x + xa_out

    # --- feed-forward block --------------------------------------------------
    h3 = _layernorm(x, ln_gamma[2:3, :], ln_beta[2:3, :])
    ff = jnp.dot(h3.reshape(Bb * T, C).astype(jnp.bfloat16), wff1_ref[0],
                 preferred_element_type=jnp.float32) + bff1_ref[0]
    ff = jnp.where(ff > 0, ff, leaky_slope * ff)          # LeakyReLU(0.01)
    ff = jnp.dot(ff.astype(jnp.bfloat16), wff2_ref[0],
                 preferred_element_type=jnp.float32) + bff2_ref[0]
    # TODO(synk): FFN dropout omitted (identity in eval mode).
    x = x + ff.reshape(Bb, T, C)

    # Carry residual stream to the next layer; packed lane-dense KV writeback.
    x_scr[...] = x
    kvsa_ref[0] = kv_sa.astype(kvsa_ref.dtype)            # (Bb, T, 2C) = k || v
    kvxa_ref[0] = kv_xa.astype(kvxa_ref.dtype)            # (Bb, Tk, 2C) = k || v

    @pl.when(layer == n_layers - 1)
    def _finalize():
        y_ref[...] = x.astype(y_ref.dtype)


# ---------------------------------------------------------------------------
# Host-side wrapper (mirrors DecoderStack.forward(x, x_kv, hidden=None)).
# ---------------------------------------------------------------------------

def _pick_batch_block(B, T, target_rows=256):
    """Batch elements per grid step: fill ~target_rows MXU rows, but keep the
    "parallel" grid extent >= 2 when possible (v7x has 2 TensorCores)."""
    bb = max(1, min(B, target_rows // max(T, 1)))
    while B % bb:
        bb -= 1
    while bb > 1 and B // bb < 2:
        nb = max(1, bb // 2)
        while nb > 1 and B % nb:
            nb -= 1
        if nb == bb:
            break
        bb = nb
    return bb


def decoder_stack_forward(x, x_kv, params, *, n_heads, batch_block=None):
    """Returns (y, hidden) with hidden[l] = (sa_caches, xa_caches), each a list
    over heads of (k, v) — same structure as the PyTorch module."""
    B, T, C = x.shape
    _, Tk, _ = x_kv.shape
    n_layers = params["wqkv_sa"].shape[0]
    F = params["wff1"].shape[-1]
    scale = float(C) ** -0.5          # PyTorch scales by d_model, not head_size
    H = C // n_heads

    if batch_block is None:
        batch_block = _pick_batch_block(B, T)
    assert B % batch_block == 0
    b_grid = B // batch_block

    # Weights streamed in bf16 (MXU-native, halves DMA/VMEM); LN params and
    # biases stay f32 (added to f32 accumulators / f32 LayerNorm math).
    wdt = jnp.bfloat16
    wqkv_sa = params["wqkv_sa"].astype(wdt)
    wproj_sa = params["wproj_sa"].astype(wdt)
    wqkv_xa = params["wqkv_xa"].astype(wdt)
    wproj_xa = params["wproj_xa"].astype(wdt)
    wff1 = params["wff1"].astype(wdt)
    wff2 = params["wff2"].astype(wdt)

    kernel = functools.partial(_decoder_stack_kernel, n_heads=n_heads,
                               scale=scale, leaky_slope=0.01)

    shared = lambda ndim: (lambda b, l, _n=ndim: (0,) * _n)   # replicated arrays
    per_layer = lambda ndim: (lambda b, l, _n=ndim: (l,) + (0,) * (_n - 1))

    grid_spec = pltpu.PrefetchScalarGridSpec(
        num_scalar_prefetch=0,
        grid=(b_grid, n_layers),
        in_specs=[
            pl.BlockSpec((batch_block, T, C), lambda b, l: (b, 0, 0)),    # x
            pl.BlockSpec((batch_block, Tk, C), lambda b, l: (b, 0, 0)),   # x_kv
            pl.BlockSpec((1, C), shared(2)),                              # lnX g
            pl.BlockSpec((1, C), shared(2)),                              # lnX b
            pl.BlockSpec((1, 3, C), per_layer(3)),                        # ln g
            pl.BlockSpec((1, 3, C), per_layer(3)),                        # ln b
            pl.BlockSpec((1, C, 3 * C), per_layer(3)),                    # wqkv_sa
            pl.BlockSpec((1, C, C), per_layer(3)),                        # wproj_sa
            pl.BlockSpec((1, 1, C), per_layer(3)),                        # bproj_sa
            pl.BlockSpec((1, C, 3 * C), per_layer(3)),                    # wqkv_xa
            pl.BlockSpec((1, C, C), per_layer(3)),                        # wproj_xa
            pl.BlockSpec((1, 1, C), per_layer(3)),                        # bproj_xa
            pl.BlockSpec((1, C, F), per_layer(3)),                        # wff1
            pl.BlockSpec((1, 1, F), per_layer(3)),                        # bff1
            pl.BlockSpec((1, F, C), per_layer(3)),                        # wff2
            pl.BlockSpec((1, 1, C), per_layer(3)),                        # bff2
        ],
        out_specs=[
            pl.BlockSpec((batch_block, T, C), lambda b, l: (b, 0, 0)),        # y
            pl.BlockSpec((1, batch_block, T, 2 * C), lambda b, l: (l, b, 0, 0)),
            pl.BlockSpec((1, batch_block, Tk, 2 * C), lambda b, l: (l, b, 0, 0)),
        ],
        scratch_shapes=[
            pltpu.VMEM((batch_block, T, C), jnp.float32),    # residual carry
            pltpu.VMEM((batch_block, Tk, C), jnp.float32),   # lnX(x_kv) carry
        ],
    )

    # TODO(synk): emit y / KV caches in bf16 when downstream tolerates it
    # (halves HBM writeback); kept at the input dtype here for parity checks.
    out_shapes = (
        jax.ShapeDtypeStruct((B, T, C), x.dtype),
        jax.ShapeDtypeStruct((n_layers, B, T, 2 * C), x.dtype),
        jax.ShapeDtypeStruct((n_layers, B, Tk, 2 * C), x.dtype),
    )

    y, kvsa, kvxa = pl.pallas_call(
        kernel,
        out_shape=out_shapes,
        grid_spec=grid_spec,
        compiler_params=pltpu.CompilerParams(
            dimension_semantics=("parallel", "arbitrary")),
    )(x, x_kv,
      params["lnx_g"], params["lnx_b"],
      params["ln_g"], params["ln_b"],
      wqkv_sa, wproj_sa, params["bproj_sa"],
      wqkv_xa, wproj_xa, params["bproj_xa"],
      wff1, params["bff1"], wff2, params["bff2"])

    # Re-create the PyTorch hidden structure (per-head (k, v) lists) — glue.
    hidden = []
    for l in range(n_layers):
        k_sa, v_sa = kvsa[l, :, :, :C], kvsa[l, :, :, C:]
        k_xa, v_xa = kvxa[l, :, :, :C], kvxa[l, :, :, C:]
        sa = [(k_sa[..., h * H:(h + 1) * H], v_sa[..., h * H:(h + 1) * H])
              for h in range(n_heads)]
        xa = [(k_xa[..., h * H:(h + 1) * H], v_xa[..., h * H:(h + 1) * H])
              for h in range(n_heads)]
        hidden.append((sa, xa))
    # TODO(synk): consuming an existing KV cache (hidden != None) and the
    # x_kv=None fallback are not implemented; only the hidden=None prefill
    # path is fused.
    return y, hidden


# ---------------------------------------------------------------------------
# Pure-JAX f32 reference mirroring the PyTorch forward (eval mode, hidden=None).
# ---------------------------------------------------------------------------

def _reference(x, x_kv, params, *, n_heads, n_layers):
    C = x.shape[-1]
    scale = float(C) ** -0.5
    eps = 1e-5

    def layernorm(v, g, b):
        mu = v.mean(-1, keepdims=True)
        var = ((v - mu) ** 2).mean(-1, keepdims=True)
        return (v - mu) / jnp.sqrt(var + eps) * g + b

    def mha(x_q, x_kv_, wqkv, wproj, bproj, masked):
        T = x_q.shape[1]
        q = x_q @ wqkv[:, :C]
        k = x_kv_ @ wqkv[:, C:2 * C]
        v = x_kv_ @ wqkv[:, 2 * C:]
        H = C // n_heads
        outs = []
        for h in range(n_heads):
            sl = slice(h * H, (h + 1) * H)
            wei = jnp.einsum("bth,bsh->bts", q[..., sl], k[..., sl]) * scale
            if masked:
                tri = jnp.tril(jnp.ones((T, x_kv_.shape[1])))
                wei = jnp.where(tri == 0, -jnp.inf, wei)
            wei = jax.nn.softmax(wei, axis=-1)
            outs.append(wei @ v[..., sl])
        out = jnp.concatenate(outs, axis=-1) @ wproj + bproj
        return out, k, v

    x_kv_n = layernorm(x_kv, params["lnx_g"], params["lnx_b"])
    caches = []
    for l in range(n_layers):
        g, b = params["ln_g"][l], params["ln_b"][l]
        h1 = layernorm(x, g[0], b[0])
        sa, ksa, vsa = mha(h1, h1, params["wqkv_sa"][l], params["wproj_sa"][l],
                           params["bproj_sa"][l], masked=True)
        x = x + sa
        h2 = layernorm(x, g[1], b[1])
        xa, kxa, vxa = mha(h2, x_kv_n, params["wqkv_xa"][l], params["wproj_xa"][l],
                           params["bproj_xa"][l], masked=False)
        x = x + xa
        h3 = layernorm(x, g[2], b[2])
        ff = h3 @ params["wff1"][l] + params["bff1"][l]
        ff = jnp.where(ff > 0, ff, 0.01 * ff)
        ff = ff @ params["wff2"][l] + params["bff2"][l]
        x = x + ff
        caches.append((ksa, vsa, kxa, vxa))
    return x, caches


def _relerr(a, b):
    """Max abs error normalized by the reference's max magnitude."""
    return float(jnp.max(jnp.abs(a - b)) / (jnp.max(jnp.abs(b)) + 1e-6))


if __name__ == "__main__":
    # Small shapes consistent with the module: B=2, block_size/T=8, memory
    # length Tk=16, d_model=32, n_heads=2 (head_size=16), d_ffd=64, n_layers=2.
    B, T, Tk = 2, 8, 16
    d_model, n_heads, n_layers, d_ffd = 32, 2, 2, 64
    C, F = d_model, d_ffd

    key = jax.random.PRNGKey(0)
    ks = jax.random.split(key, 16)
    nrm = lambda k, shape, s=1.0: s * jax.random.normal(k, shape, dtype=jnp.float32)

    x = nrm(ks[0], (B, T, C))
    x_kv = nrm(ks[1], (B, Tk, C))

    params = {
        "lnx_g": 1.0 + 0.1 * nrm(ks[2], (1, C)),
        "lnx_b": 0.1 * nrm(ks[3], (1, C)),
        "ln_g": 1.0 + 0.1 * nrm(ks[4], (n_layers, 3, C)),
        "ln_b": 0.1 * nrm(ks[5], (n_layers, 3, C)),
        "wqkv_sa": nrm(ks[6], (n_layers, C, 3 * C), C ** -0.5),
        "wproj_sa": nrm(ks[7], (n_layers, C, C), C ** -0.5),
        "bproj_sa": 0.1 * nrm(ks[8], (n_layers, 1, C)),
        "wqkv_xa": nrm(ks[9], (n_layers, C, 3 * C), C ** -0.5),
        "wproj_xa": nrm(ks[10], (n_layers, C, C), C ** -0.5),
        "bproj_xa": 0.1 * nrm(ks[11], (n_layers, 1, C)),
        "wff1": nrm(ks[12], (n_layers, C, F), C ** -0.5),
        "bff1": 0.1 * nrm(ks[13], (n_layers, 1, F)),
        "wff2": nrm(ks[14], (n_layers, F, C), F ** -0.5),
        "bff2": 0.1 * nrm(ks[15], (n_layers, 1, C)),
    }

    y, hidden = decoder_stack_forward(x, x_kv, params, n_heads=n_heads)
    jax.block_until_ready(y)
    jax.tree_util.tree_map(jax.block_until_ready, hidden)

    with jax.default_matmul_precision("float32"):
        ref_y, ref_caches = _reference(x, x_kv, params,
                                       n_heads=n_heads, n_layers=n_layers)
        ref_y = jax.block_until_ready(ref_y)

    # Tolerance: kernel runs bf16 matmul operands (f32 accumulation) per the
    # perf review, so compare with a max-relative-error bound vs. the f32 ref.
    TOL = 5e-2
    assert _relerr(y, ref_y) < TOL, _relerr(y, ref_y)
    H = C // n_heads
    for l in range(n_layers):
        ksa = jnp.concatenate([kh for kh, _ in hidden[l][0]], axis=-1)
        vsa = jnp.concatenate([vh for _, vh in hidden[l][0]], axis=-1)
        kxa = jnp.concatenate([kh for kh, _ in hidden[l][1]], axis=-1)
        vxa = jnp.concatenate([vh for _, vh in hidden[l][1]], axis=-1)
        r_ksa, r_vsa, r_kxa, r_vxa = ref_caches[l]
        assert _relerr(ksa, r_ksa) < TOL, _relerr(ksa, r_ksa)
        assert _relerr(vsa, r_vsa) < TOL, _relerr(vsa, r_vsa)
        assert _relerr(kxa, r_kxa) < TOL, _relerr(kxa, r_kxa)
        assert _relerr(vxa, r_vxa) < TOL, _relerr(vxa, r_vxa)

    print("KERNEL_OK")
</pallas_src>

<mosaic_0001>
module attributes {stable_mosaic.version = 11 : i64} {
  func.func @_decoder_stack_kernel(%arg0: i32, %arg1: i32, %arg2: memref<1x8x32xf32, #tpu.memory_space<vmem>>, %arg3: memref<1x16x32xf32, #tpu.memory_space<vmem>>, %arg4: memref<1x32xf32, #tpu.memory_space<vmem>>, %arg5: memref<1x32xf32, #tpu.memory_space<vmem>>, %arg6: memref<1x3x32xf32, #tpu.memory_space<vmem>>, %arg7: memref<1x3x32xf32, #tpu.memory_space<vmem>>, %arg8: memref<1x32x96xbf16, #tpu.memory_space<vmem>>, %arg9: memref<1x32x32xbf16, #tpu.memory_space<vmem>>, %arg10: memref<1x1x32xf32, #tpu.memory_space<vmem>>, %arg11: memref<1x32x96xbf16, #tpu.memory_space<vmem>>, %arg12: memref<1x32x32xbf16, #tpu.memory_space<vmem>>, %arg13: memref<1x1x32xf32, #tpu.memory_space<vmem>>, %arg14: memref<1x32x64xbf16, #tpu.memory_space<vmem>>, %arg15: memref<1x1x64xf32, #tpu.memory_space<vmem>>, %arg16: memref<1x64x32xbf16, #tpu.memory_space<vmem>>, %arg17: memref<1x1x32xf32, #tpu.memory_space<vmem>>, %arg18: memref<1x8x32xf32, #tpu.memory_space<vmem>>, %arg19: memref<1x1x8x64xf32, #tpu.memory_space<vmem>>, %arg20: memref<1x1x16x64xf32, #tpu.memory_space<vmem>>, %arg21: memref<1x8x32xf32, #tpu.memory_space<vmem>>, %arg22: memref<1x16x32xf32, #tpu.memory_space<vmem>>) attributes {dimension_semantics = [#tpu.dimension_semantics<parallel>, #tpu.dimension_semantics<arbitrary>], iteration_bounds = array<i64: 2, 2>, scalar_prefetch = 0 : i64, scratch_operands = 2 : i64, tpu.core_type = #tpu.core_type<tc>, window_params = [{transform_indices = @transform_0, window_bounds = array<i64: 1, 8, 32>}, {transform_indices = @transform_1, window_bounds = array<i64: 1, 16, 32>}, {pipeline_mode = #tpu.pipeline_mode<synchronous>, transform_indices = @transform_2, window_bounds = array<i64: 1, 32>}, {pipeline_mode = #tpu.pipeline_mode<synchronous>, transform_indices = @transform_3, window_bounds = array<i64: 1, 32>}, {transform_indices = @transform_4, window_bounds = array<i64: 1, 3, 32>}, {transform_indices = @transform_5, window_bounds = array<i64: 1, 3, 32>}, {transform_indices = @transform_6, window_bounds = array<i64: 1, 32, 96>}, {transform_indices = @transform_7, window_bounds = array<i64: 1, 32, 32>}, {transform_indices = @transform_8, window_bounds = array<i64: 1, 1, 32>}, {transform_indices = @transform_9, window_bounds = array<i64: 1, 32, 96>}, {transform_indices = @transform_10, window_bounds = array<i64: 1, 32, 32>}, {transform_indices = @transform_11, window_bounds = array<i64: 1, 1, 32>}, {transform_indices = @transform_12, window_bounds = array<i64: 1, 32, 64>}, {transform_indices = @transform_13, window_bounds = array<i64: 1, 1, 64>}, {transform_indices = @transform_14, window_bounds = array<i64: 1, 64, 32>}, {transform_indices = @transform_15, window_bounds = array<i64: 1, 1, 32>}, {transform_indices = @transform_16, window_bounds = array<i64: 1, 8, 32>}, {transform_indices = @transform_17, window_bounds = array<i64: 1, 1, 8, 64>}, {transform_indices = @transform_18, window_bounds = array<i64: 1, 1, 16, 64>}]} {
    %c0_i32 = arith.constant 0 : i32
    %0 = arith.cmpi eq, %arg1, %c0_i32 : i32
    %1 = arith.extui %0 : i1 to i32
    %c0_i32_0 = arith.constant 0 : i32
    %2 = arith.cmpi ne, %1, %c0_i32_0 : i32
    scf.if %2 {
      %c0_101 = arith.constant 0 : index
      %c0_102 = arith.constant 0 : index
      %c0_103 = arith.constant 0 : index
      %265 = vector.load %arg2[%c0_101, %c0_102, %c0_103] : memref<1x8x32xf32, #tpu.memory_space<vmem>>, vector<1x8x32xf32>
      %c0_104 = arith.constant 0 : index
      %c0_105 = arith.constant 0 : index
      %c0_106 = arith.constant 0 : index
      %266 = vector.load %arg21[%c0_104, %c0_105, %c0_106] : memref<1x8x32xf32, #tpu.memory_space<vmem>>, vector<1x8x32xf32>
      tpu.vector_store %arg21[%c0_104, %c0_105, %c0_106], %265 {strides = array<i32>} : memref<1x8x32xf32, #tpu.memory_space<vmem>>, vector<1x8x32xf32>,
      %c0_107 = arith.constant 0 : index
      %c0_108 = arith.constant 0 : index
      %c0_109 = arith.constant 0 : index
      %267 = vector.load %arg3[%c0_107, %c0_108, %c0_109] : memref<1x16x32xf32, #tpu.memory_space<vmem>>, vector<1x16x32xf32>
      %c0_110 = arith.constant 0 : index
      %c0_111 = arith.constant 0 : index
      %268 = vector.load %arg4[%c0_110, %c0_111] : memref<1x32xf32, #tpu.memory_space<vmem>>, vector<1x32xf32>
      %c0_112 = arith.constant 0 : index
      %c0_113 = arith.constant 0 : index
      %269 = vector.load %arg5[%c0_112, %c0_113] : memref<1x32xf32, #tpu.memory_space<vmem>>, vector<1x32xf32>
      %cst_114 = arith.constant dense<0.000000e+00> : vector<1x16xf32>
      %270 = vector.multi_reduction <add>, %267, %cst_114 [2] : vector<1x16x32xf32> to vector<1x16xf32>
      %271 = vector.shape_cast %270 : vector<1x16xf32> to vector<1x16x1xf32>
      %cst_115 = arith.constant 3.200000e+01 : f32
      %272 = vector.broadcast %cst_115 : f32 to vector<1x16x1xf32>
      %273 = arith.divf %271, %272 : vector<1x16x1xf32>
      %274 = vector.broadcast %273 : vector<1x16x1xf32> to vector<1x16x32xf32>
      %275 = arith.subf %267, %274 : vector<1x16x32xf32>
      %276 = arith.mulf %275, %275 : vector<1x16x32xf32>
      %cst_116 = arith.constant dense<0.000000e+00> : vector<1x16xf32>
      %277 = vector.multi_reduction <add>, %276, %cst_116 [2] : vector<1x16x32xf32> to vector<1x16xf32>
      %278 = vector.shape_cast %277 : vector<1x16xf32> to vector<1x16x1xf32>
      %cst_117 = arith.constant 3.200000e+01 : f32
      %279 = vector.broadcast %cst_117 : f32 to vector<1x16x1xf32>
      %280 = arith.divf %278, %279 : vector<1x16x1xf32>
      %cst_118 = arith.constant 9.99999974E-6 : f32
      %281 = vector.broadcast %cst_118 : f32 to vector<1x16x1xf32>
      %282 = arith.addf %280, %281 : vector<1x16x1xf32>
      %283 = math.rsqrt %282 : vector<1x16x1xf32>
      %284 = vector.broadcast %283 : vector<1x16x1xf32> to vector<1x16x32xf32>
      %285 = arith.mulf %275, %284 : vector<1x16x32xf32>
      %286 = vector.shape_cast %268 : vector<1x32xf32> to vector<1x1x32xf32>
      %287 = vector.broadcast %286 : vector<1x1x32xf32> to vector<1x16x32xf32>
      %288 = arith.mulf %285, %287 : vector<1x16x32xf32>
      %289 = vector.shape_cast %269 : vector<1x32xf32> to vector<1x1x32xf32>
      %290 = vector.broadcast %289 : vector<1x1x32xf32> to vector<1x16x32xf32>
      %291 = arith.addf %288, %290 : vector<1x16x32xf32>
      %c0_119 = arith.constant 0 : index
      %c0_120 = arith.constant 0 : index
      %c0_121 = arith.constant 0 : index
      %292 = vector.load %arg22[%c0_119, %c0_120, %c0_121] : memref<1x16x32xf32, #tpu.memory_space<vmem>>, vector<1x16x32xf32>
      tpu.vector_store %arg22[%c0_119, %c0_120, %c0_121], %291 {strides = array<i32>} : memref<1x16x32xf32, #tpu.memory_space<vmem>>, vector<1x16x32xf32>,
    } else {
    }
    %c0 = arith.constant 0 : index
    %c0_1 = arith.constant 0 : index
    %c0_2 = arith.constant 0 : index
    %3 = vector.load %arg21[%c0, %c0_1, %c0_2] : memref<1x8x32xf32, #tpu.memory_space<vmem>>, vector<1x8x32xf32>
    %c0_3 = arith.constant 0 : index
    %c0_4 = arith.constant 0 : index
    %c0_5 = arith.constant 0 : index
    %4 = vector.load %arg22[%c0_3, %c0_4, %c0_5] : memref<1x16x32xf32, #tpu.memory_space<vmem>>, vector<1x16x32xf32>
    %5 = tpu.iota {dimensions = array<i32: 0>} : vector<8x8xi32>
    %6 = tpu.iota {dimensions = array<i32: 1>} : vector<8x8xi32>
    %7 = arith.cmpi sle, %6, %5 : vector<8x8xi32>
    %c0_6 = arith.constant 0 : index
    %c0_7 = arith.constant 0 : index
    %c0_8 = arith.constant 0 : index
    %8 = vector.load %arg6[%c0_6, %c0_7, %c0_8] : memref<1x3x32xf32, #tpu.memory_space<vmem>>, vector<1x3x32xf32>
    %9 = vector.shape_cast %8 : vector<1x3x32xf32> to vector<3x32xf32>
    %c0_9 = arith.constant 0 : index
    %c0_10 = arith.constant 0 : index
    %c0_11 = arith.constant 0 : index
    %10 = vector.load %arg7[%c0_9, %c0_10, %c0_11] : memref<1x3x32xf32, #tpu.memory_space<vmem>>, vector<1x3x32xf32>
    %11 = vector.shape_cast %10 : vector<1x3x32xf32> to vector<3x32xf32>
    %12 = vector.extract_strided_slice %9 {offsets = [0, 0], sizes = [1, 32], strides = [1, 1]} : vector<3x32xf32> to vector<1x32xf32>
    %13 = vector.extract_strided_slice %11 {offsets = [0, 0], sizes = [1, 32], strides = [1, 1]} : vector<3x32xf32> to vector<1x32xf32>
    %cst = arith.constant dense<0.000000e+00> : vector<1x8xf32>
    %14 = vector.multi_reduction <add>, %3, %cst [2] : vector<1x8x32xf32> to vector<1x8xf32>
    %15 = vector.shape_cast %14 : vector<1x8xf32> to vector<1x8x1xf32>
    %cst_12 = arith.constant 3.200000e+01 : f32
    %16 = vector.broadcast %cst_12 : f32 to vector<1x8x1xf32>
    %17 = arith.divf %15, %16 : vector<1x8x1xf32>
    %18 = vector.broadcast %17 : vector<1x8x1xf32> to vector<1x8x32xf32>
    %19 = arith.subf %3, %18 : vector<1x8x32xf32>
    %20 = arith.mulf %19, %19 : vector<1x8x32xf32>
    %cst_13 = arith.constant dense<0.000000e+00> : vector<1x8xf32>
    %21 = vector.multi_reduction <add>, %20, %cst_13 [2] : vector<1x8x32xf32> to vector<1x8xf32>
    %22 = vector.shape_cast %21 : vector<1x8xf32> to vector<1x8x1xf32>
    %cst_14 = arith.constant 3.200000e+01 : f32
    %23 = vector.broadcast %cst_14 : f32 to vector<1x8x1xf32>
    %24 = arith.divf %22, %23 : vector<1x8x1xf32>
    %cst_15 = arith.constant 9.99999974E-6 : f32
    %25 = vector.broadcast %cst_15 : f32 to vector<1x8x1xf32>
    %26 = arith.addf %24, %25 : vector<1x8x1xf32>
    %27 = math.rsqrt %26 : vector<1x8x1xf32>
    %28 = vector.broadcast %27 : vector<1x8x1xf32> to vector<1x8x32xf32>
    %29 = arith.mulf %19, %28 : vector<1x8x32xf32>
    %30 = vector.shape_cast %12 : vector<1x32xf32> to vector<1x1x32xf32>
    %31 = vector.broadcast %30 : vector<1x1x32xf32> to vector<1x8x32xf32>
    %32 = arith.mulf %29, %31 : vector<1x8x32xf32>
    %33 = vector.shape_cast %13 : vector<1x32xf32> to vector<1x1x32xf32>
    %34 = vector.broadcast %33 : vector<1x1x32xf32> to vector<1x8x32xf32>
    %35 = arith.addf %32, %34 : vector<1x8x32xf32>
    %c0_16 = arith.constant 0 : index
    %c0_17 = arith.constant 0 : index
    %c0_18 = arith.constant 0 : index
    %36 = vector.load %arg8[%c0_16, %c0_17, %c0_18] : memref<1x32x96xbf16, #tpu.memory_space<vmem>>, vector<1x32x96xbf16>
    %37 = vector.shape_cast %36 : vector<1x32x96xbf16> to vector<32x96xbf16>
    %c0_19 = arith.constant 0 : index
    %c0_20 = arith.constant 0 : index
    %c0_21 = arith.constant 0 : index
    %38 = vector.load %arg9[%c0_19, %c0_20, %c0_21] : memref<1x32x32xbf16, #tpu.memory_space<vmem>>, vector<1x32x32xbf16>
    %39 = vector.shape_cast %38 : vector<1x32x32xbf16> to vector<32x32xbf16>
    %c0_22 = arith.constant 0 : index
    %c0_23 = arith.constant 0 : index
    %c0_24 = arith.constant 0 : index
    %40 = vector.load %arg10[%c0_22, %c0_23, %c0_24] : memref<1x1x32xf32, #tpu.memory_space<vmem>>, vector<1x1x32xf32>
    %41 = vector.shape_cast %40 : vector<1x1x32xf32> to vector<1x32xf32>
    %42 = vector.shape_cast %35 : vector<1x8x32xf32> to vector<8x32xf32>
    %43 = arith.truncf %42 : vector<8x32xf32> to vector<8x32xbf16>
    %cst_25 = arith.constant dense<0.000000e+00> : vector<8x96xf32>
    %44 = tpu.matmul %43, %37, %cst_25 {dimension_numbers = #tpu.dot_dimension_numbers<[1], [0], [0], [1], [0, 0, 1, 1], [], []>} : vector<8x32xbf16>, vector<32x96xbf16>, vector<8x96xf32> -> vector<8x96xf32>
    %45 = vector.extract_strided_slice %44 {offsets = [0, 0], sizes = [8, 32], strides = [1, 1]} : vector<8x96xf32> to vector<8x32xf32>
    %cst_26 = arith.constant 0.176776692 : f32
    %46 = vector.broadcast %cst_26 : f32 to vector<8x32xf32>
    %47 = arith.mulf %45, %46 : vector<8x32xf32>
    %48 = vector.shape_cast %47 : vector<8x32xf32> to vector<1x8x32xf32>
    %49 = vector.extract_strided_slice %44 {offsets = [0, 32], sizes = [8, 64], strides = [1, 1]} : vector<8x96xf32> to vector<8x64xf32>
    %50 = vector.extract_strided_slice %49 {offsets = [0, 0], sizes = [8, 32], strides = [1, 1]} : vector<8x64xf32> to vector<8x32xf32>
    %51 = vector.shape_cast %50 : vector<8x32xf32> to vector<1x8x32xf32>
    %52 = vector.extract_strided_slice %49 {offsets = [0, 32], sizes = [8, 32], strides = [1, 1]} : vector<8x64xf32> to vector<8x32xf32>
    %53 = vector.shape_cast %52 : vector<8x32xf32> to vector<1x8x32xf32>
    %54 = arith.truncf %48 : vector<1x8x32xf32> to vector<1x8x32xbf16>
    %55 = arith.truncf %51 : vector<1x8x32xf32> to vector<1x8x32xbf16>
    %56 = arith.truncf %53 : vector<1x8x32xf32> to vector<1x8x32xbf16>
    %cst_27 = arith.constant 0.000000e+00 : f32
    %57 = vector.broadcast %cst_27 : f32 to vector<8x32xf32>
    %58 = vector.extract_strided_slice %54 {offsets = [0, 0, 0], sizes = [1, 8, 16], strides = [1, 1, 1]} : vector<1x8x32xbf16> to vector<1x8x16xbf16>
    %59 = vector.extract_strided_slice %55 {offsets = [0, 0, 0], sizes = [1, 8, 16], strides = [1, 1, 1]} : vector<1x8x32xbf16> to vector<1x8x16xbf16>
    "tpu.trace_start"() <{level = 10 : i32, message = "bth,bsh->bts"}> : () -> ()
    %cst_28 = arith.constant dense<0.000000e+00> : vector<1x8x8xf32>
    %60 = tpu.matmul %58, %59, %cst_28 {dimension_numbers = #tpu.dot_dimension_numbers<[2], [2], [1], [1], [0, 0, 0, 1, 1, 1], [0], [0]>} : vector<1x8x16xbf16>, vector<1x8x16xbf16>, vector<1x8x8xf32> -> vector<1x8x8xf32>
    %cst_29 = arith.constant -1.000000e+30 : f32
    "tpu.trace_stop"() : () -> ()
    %61 = vector.shape_cast %7 : vector<8x8xi1> to vector<1x8x8xi1>
    %62 = vector.broadcast %cst_29 : f32 to vector<1x8x8xf32>
    %63 = arith.select %61, %60, %62 : vector<1x8x8xi1>, vector<1x8x8xf32>
    %cst_30 = arith.constant dense<0xFF800000> : vector<1x8xf32>
    %64 = vector.multi_reduction <maximumf>, %63, %cst_30 [2] : vector<1x8x8xf32> to vector<1x8xf32>
    %65 = vector.shape_cast %64 : vector<1x8xf32> to vector<1x8x1xf32>
    %66 = vector.broadcast %65 : vector<1x8x1xf32> to vector<1x8x8xf32>
    %67 = arith.subf %63, %66 : vector<1x8x8xf32>
    %68 = math.exp %67 : vector<1x8x8xf32>
    %cst_31 = arith.constant dense<0.000000e+00> : vector<1x8xf32>
    %69 = vector.multi_reduction <add>, %68, %cst_31 [2] : vector<1x8x8xf32> to vector<1x8xf32>
    %70 = vector.shape_cast %69 : vector<1x8xf32> to vector<1x8x1xf32>
    %71 = tpu.reciprocal %70 {approx = true} : vector<1x8x1xf32> -> vector<1x8x1xf32>
    %72 = vector.broadcast %71 : vector<1x8x1xf32> to vector<1x8x8xf32>
    %73 = arith.mulf %68, %72 : vector<1x8x8xf32>
    %74 = arith.truncf %73 : vector<1x8x8xf32> to vector<1x8x8xbf16>
    %75 = vector.extract_strided_slice %56 {offsets = [0, 0, 0], sizes = [1, 8, 16], strides = [1, 1, 1]} : vector<1x8x32xbf16> to vector<1x8x16xbf16>
    "tpu.trace_start"() <{level = 10 : i32, message = "bts,bsh->bth"}> : () -> ()
    %cst_32 = arith.constant dense<0.000000e+00> : vector<1x8x16xf32>
    %76 = tpu.matmul %74, %75, %cst_32 {dimension_numbers = #tpu.dot_dimension_numbers<[2], [1], [1], [2], [0, 0, 0, 1, 1, 2], [0], [0]>} : vector<1x8x8xbf16>, vector<1x8x16xbf16>, vector<1x8x16xf32> -> vector<1x8x16xf32>
    "tpu.trace_stop"() : () -> ()
    %77 = vector.shape_cast %76 : vector<1x8x16xf32> to vector<8x16xf32>
    %78 = arith.truncf %77 : vector<8x16xf32> to vector<8x16xbf16>
    %79 = vector.extract_strided_slice %39 {offsets = [0, 0], sizes = [16, 32], strides = [1, 1]} : vector<32x32xbf16> to vector<16x32xbf16>
    %cst_33 = arith.constant dense<0.000000e+00> : vector<8x32xf32>
    %80 = tpu.matmul %78, %79, %cst_33 {dimension_numbers = #tpu.dot_dimension_numbers<[1], [0], [0], [1], [0, 0, 1, 1], [], []>} : vector<8x16xbf16>, vector<16x32xbf16>, vector<8x32xf32> -> vector<8x32xf32>
    %81 = arith.addf %57, %80 : vector<8x32xf32>
    %82 = vector.extract_strided_slice %54 {offsets = [0, 0, 16], sizes = [1, 8, 16], strides = [1, 1, 1]} : vector<1x8x32xbf16> to vector<1x8x16xbf16>
    %83 = vector.extract_strided_slice %55 {offsets = [0, 0, 16], sizes = [1, 8, 16], strides = [1, 1, 1]} : vector<1x8x32xbf16> to vector<1x8x16xbf16>
    "tpu.trace_start"() <{level = 10 : i32, message = "bth,bsh->bts"}> : () -> ()
    %cst_34 = arith.constant dense<0.000000e+00> : vector<1x8x8xf32>
    %84 = tpu.matmul %82, %83, %cst_34 {dimension_numbers = #tpu.dot_dimension_numbers<[2], [2], [1], [1], [0, 0, 0, 1, 1, 1], [0], [0]>} : vector<1x8x16xbf16>, vector<1x8x16xbf16>, vector<1x8x8xf32> -> vector<1x8x8xf32>
    %cst_35 = arith.constant -1.000000e+30 : f32
    "tpu.trace_stop"() : () -> ()
    %85 = vector.shape_cast %7 : vector<8x8xi1> to vector<1x8x8xi1>
    %86 = vector.broadcast %cst_35 : f32 to vector<1x8x8xf32>
    %87 = arith.select %85, %84, %86 : vector<1x8x8xi1>, vector<1x8x8xf32>
    %cst_36 = arith.constant dense<0xFF800000> : vector<1x8xf32>
    %88 = vector.multi_reduction <maximumf>, %87, %cst_36 [2] : vector<1x8x8xf32> to vector<1x8xf32>
    %89 = vector.shape_cast %88 : vector<1x8xf32> to vector<1x8x1xf32>
    %90 = vector.broadcast %89 : vector<1x8x1xf32> to vector<1x8x8xf32>
    %91 = arith.subf %87, %90 : vector<1x8x8xf32>
    %92 = math.exp %91 : vector<1x8x8xf32>
    %cst_37 = arith.constant dense<0.000000e+00> : vector<1x8xf32>
    %93 = vector.multi_reduction <add>, %92, %cst_37 [2] : vector<1x8x8xf32> to vector<1x8xf32>
    %94 = vector.shape_cast %93 : vector<1x8xf32> to vector<1x8x1xf32>
    %95 = tpu.reciprocal %94 {approx = true} : vector<1x8x1xf32> -> vector<1x8x1xf32>
    %96 = vector.broadcast %95 : vector<1x8x1xf32> to vector<1x8x8xf32>
    %97 = arith.mulf %92, %96 : vector<1x8x8xf32>
    %98 = arith.truncf %97 : vector<1x8x8xf32> to vector<1x8x8xbf16>
    %99 = vector.extract_strided_slice %56 {offsets = [0, 0, 16], sizes = [1, 8, 16], strides = [1, 1, 1]} : vector<1x8x32xbf16> to vector<1x8x16xbf16>
    "tpu.trace_start"() <{level = 10 : i32, message = "bts,bsh->bth"}> : () -> ()
    %cst_38 = arith.constant dense<0.000000e+00> : vector<1x8x16xf32>
    %100 = tpu.matmul %98, %99, %cst_38 {dimension_numbers = #tpu.dot_dimension_numbers<[2], [1], [1], [2], [0, 0, 0, 1, 1, 2], [0], [0]>} : vector<1x8x8xbf16>, vector<1x8x16xbf16>, vector<1x8x16xf32> -> vector<1x8x16xf32>
    "tpu.trace_stop"() : () -> ()
    %101 = vector.shape_cast %100 : vector<1x8x16xf32> to vector<8x16xf32>
    %102 = arith.truncf %101 : vector<8x16xf32> to vector<8x16xbf16>
    %103 = vector.extract_strided_slice %39 {offsets = [16, 0], sizes = [16, 32], strides = [1, 1]} : vector<32x32xbf16> to vector<16x32xbf16>
    %cst_39 = arith.constant dense<0.000000e+00> : vector<8x32xf32>
    %104 = tpu.matmul %102, %103, %cst_39 {dimension_numbers = #tpu.dot_dimension_numbers<[1], [0], [0], [1], [0, 0, 1, 1], [], []>} : vector<8x16xbf16>, vector<16x32xbf16>, vector<8x32xf32> -> vector<8x32xf32>
    %105 = arith.addf %81, %104 : vector<8x32xf32>
    %106 = vector.broadcast %41 : vector<1x32xf32> to vector<8x32xf32>
    %107 = arith.addf %105, %106 : vector<8x32xf32>
    %108 = vector.shape_cast %107 : vector<8x32xf32> to vector<1x8x32xf32>
    %109 = vector.shape_cast %49 : vector<8x64xf32> to vector<1x8x64xf32>
    %110 = arith.addf %3, %108 : vector<1x8x32xf32>
    %111 = vector.extract_strided_slice %9 {offsets = [1, 0], sizes = [1, 32], strides = [1, 1]} : vector<3x32xf32> to vector<1x32xf32>
    %112 = vector.extract_strided_slice %11 {offsets = [1, 0], sizes = [1, 32], strides = [1, 1]} : vector<3x32xf32> to vector<1x32xf32>
    %cst_40 = arith.constant dense<0.000000e+00> : vector<1x8xf32>
    %113 = vector.multi_reduction <add>, %110, %cst_40 [2] : vector<1x8x32xf32> to vector<1x8xf32>
    %114 = vector.shape_cast %113 : vector<1x8xf32> to vector<1x8x1xf32>
    %cst_41 = arith.constant 3.200000e+01 : f32
    %115 = vector.broadcast %cst_41 : f32 to vector<1x8x1xf32>
    %116 = arith.divf %114, %115 : vector<1x8x1xf32>
    %117 = vector.broadcast %116 : vector<1x8x1xf32> to vector<1x8x32xf32>
    %118 = arith.subf %110, %117 : vector<1x8x32xf32>
    %119 = arith.mulf %118, %118 : vector<1x8x32xf32>
    %cst_42 = arith.constant dense<0.000000e+00> : vector<1x8xf32>
    %120 = vector.multi_reduction <add>, %119, %cst_42 [2] : vector<1x8x32xf32> to vector<1x8xf32>
    %121 = vector.shape_cast %120 : vector<1x8xf32> to vector<1x8x1xf32>
    %cst_43 = arith.constant 3.200000e+01 : f32
    %122 = vector.broadcast %cst_43 : f32 to vector<1x8x1xf32>
    %123 = arith.divf %121, %122 : vector<1x8x1xf32>
    %cst_44 = arith.constant 9.99999974E-6 : f32
    %124 = vector.broadcast %cst_44 : f32 to vector<1x8x1xf32>
    %125 = arith.addf %123, %124 : vector<1x8x1xf32>
    %126 = math.rsqrt %125 : vector<1x8x1xf32>
    %127 = vector.broadcast %126 : vector<1x8x1xf32> to vector<1x8x32xf32>
    %128 = arith.mulf %118, %127 : vector<1x8x32xf32>
    %129 = vector.shape_cast %111 : vector<1x32xf32> to vector<1x1x32xf32>
    %130 = vector.broadcast %129 : vector<1x1x32xf32> to vector<1x8x32xf32>
    %131 = arith.mulf %128, %130 : vector<1x8x32xf32>
    %132 = vector.shape_cast %112 : vector<1x32xf32> to vector<1x1x32xf32>
    %133 = vector.broadcast %132 : vector<1x1x32xf32> to vector<1x8x32xf32>
    %134 = arith.addf %131, %133 : vector<1x8x32xf32>
    %c0_45 = arith.constant 0 : index
    %c0_46 = arith.constant 0 : index
    %c0_47 = arith.constant 0 : index
    %135 = vector.load %arg11[%c0_45, %c0_46, %c0_47] : memref<1x32x96xbf16, #tpu.memory_space<vmem>>, vector<1x32x96xbf16>
    %136 = vector.shape_cast %135 : vector<1x32x96xbf16> to vector<32x96xbf16>
    %c0_48 = arith.constant 0 : index
    %c0_49 = arith.constant 0 : index
    %c0_50 = arith.constant 0 : index
    %137 = vector.load %arg12[%c0_48, %c0_49, %c0_50] : memref<1x32x32xbf16, #tpu.memory_space<vmem>>, vector<1x32x32xbf16>
    %138 = vector.shape_cast %137 : vector<1x32x32xbf16> to vector<32x32xbf16>
    %c0_51 = arith.constant 0 : index
    %c0_52 = arith.constant 0 : index
    %c0_53 = arith.constant 0 : index
    %139 = vector.load %arg13[%c0_51, %c0_52, %c0_53] : memref<1x1x32xf32, #tpu.memory_space<vmem>>, vector<1x1x32xf32>
    %140 = vector.shape_cast %139 : vector<1x1x32xf32> to vector<1x32xf32>
    %141 = vector.shape_cast %134 : vector<1x8x32xf32> to vector<8x32xf32>
    %142 = arith.truncf %141 : vector<8x32xf32> to vector<8x32xbf16>
    %143 = vector.extract_strided_slice %136 {offsets = [0, 0], sizes = [32, 32], strides = [1, 1]} : vector<32x96xbf16> to vector<32x32xbf16>
    %cst_54 = arith.constant dense<0.000000e+00> : vector<8x32xf32>
    %144 = tpu.matmul %142, %143, %cst_54 {dimension_numbers = #tpu.dot_dimension_numbers<[1], [0], [0], [1], [0, 0, 1, 1], [], []>} : vector<8x32xbf16>, vector<32x32xbf16>, vector<8x32xf32> -> vector<8x32xf32>
    %cst_55 = arith.constant 0.176776692 : f32
    %145 = vector.broadcast %cst_55 : f32 to vector<8x32xf32>
    %146 = arith.mulf %144, %145 : vector<8x32xf32>
    %147 = vector.shape_cast %146 : vector<8x32xf32> to vector<1x8x32xf32>
    %148 = vector.shape_cast %4 : vector<1x16x32xf32> to vector<16x32xf32>
    %149 = arith.truncf %148 : vector<16x32xf32> to vector<16x32xbf16>
    %150 = vector.extract_strided_slice %136 {offsets = [0, 32], sizes = [32, 64], strides = [1, 1]} : vector<32x96xbf16> to vector<32x64xbf16>
    %cst_56 = arith.constant dense<0.000000e+00> : vector<16x64xf32>
    %151 = tpu.matmul %149, %150, %cst_56 {dimension_numbers = #tpu.dot_dimension_numbers<[1], [0], [0], [1], [0, 0, 1, 1], [], []>} : vector<16x32xbf16>, vector<32x64xbf16>, vector<16x64xf32> -> vector<16x64xf32>
    %152 = vector.extract_strided_slice %151 {offsets = [0, 0], sizes = [16, 32], strides = [1, 1]} : vector<16x64xf32> to vector<16x32xf32>
    %153 = vector.shape_cast %152 : vector<16x32xf32> to vector<1x16x32xf32>
    %154 = vector.extract_strided_slice %151 {offsets = [0, 32], sizes = [16, 32], strides = [1, 1]} : vector<16x64xf32> to vector<16x32xf32>
    %155 = vector.shape_cast %154 : vector<16x32xf32> to vector<1x16x32xf32>
    %156 = arith.truncf %147 : vector<1x8x32xf32> to vector<1x8x32xbf16>
    %157 = arith.truncf %153 : vector<1x16x32xf32> to vector<1x16x32xbf16>
    %158 = arith.truncf %155 : vector<1x16x32xf32> to vector<1x16x32xbf16>
    %cst_57 = arith.constant 0.000000e+00 : f32
    %159 = vector.broadcast %cst_57 : f32 to vector<8x32xf32>
    %160 = vector.extract_strided_slice %156 {offsets = [0, 0, 0], sizes = [1, 8, 16], strides = [1, 1, 1]} : vector<1x8x32xbf16> to vector<1x8x16xbf16>
    %161 = vector.extract_strided_slice %157 {offsets = [0, 0, 0], sizes = [1, 16, 16], strides = [1, 1, 1]} : vector<1x16x32xbf16> to vector<1x16x16xbf16>
    "tpu.trace_start"() <{level = 10 : i32, message = "bth,bsh->bts"}> : () -> ()
    %cst_58 = arith.constant dense<0.000000e+00> : vector<1x8x16xf32>
    %162 = tpu.matmul %160, %161, %cst_58 {dimension_numbers = #tpu.dot_dimension_numbers<[2], [2], [1], [1], [0, 0, 0, 1, 1, 1], [0], [0]>} : vector<1x8x16xbf16>, vector<1x16x16xbf16>, vector<1x8x16xf32> -> vector<1x8x16xf32>
    "tpu.trace_stop"() : () -> ()
    %cst_59 = arith.constant dense<0xFF800000> : vector<1x8xf32>
    %163 = vector.multi_reduction <maximumf>, %162, %cst_59 [2] : vector<1x8x16xf32> to vector<1x8xf32>
    %164 = vector.shape_cast %163 : vector<1x8xf32> to vector<1x8x1xf32>
    %165 = vector.broadcast %164 : vector<1x8x1xf32> to vector<1x8x16xf32>
    %166 = arith.subf %162, %165 : vector<1x8x16xf32>
    %167 = math.exp %166 : vector<1x8x16xf32>
    %cst_60 = arith.constant dense<0.000000e+00> : vector<1x8xf32>
    %168 = vector.multi_reduction <add>, %167, %cst_60 [2] : vector<1x8x16xf32> to vector<1x8xf32>
    %169 = vector.shape_cast %168 : vector<1x8xf32> to vector<1x8x1xf32>
    %170 = tpu.reciprocal %169 {approx = true} : vector<1x8x1xf32> -> vector<1x8x1xf32>
    %171 = vector.broadcast %170 : vector<1x8x1xf32> to vector<1x8x16xf32>
    %172 = arith.mulf %167, %171 : vector<1x8x16xf32>
    %173 = arith.truncf %172 : vector<1x8x16xf32> to vector<1x8x16xbf16>
    %174 = vector.extract_strided_slice %158 {offsets = [0, 0, 0], sizes = [1, 16, 16], strides = [1, 1, 1]} : vector<1x16x32xbf16> to vector<1x16x16xbf16>
    "tpu.trace_start"() <{level = 10 : i32, message = "bts,bsh->bth"}> : () -> ()
    %cst_61 = arith.constant dense<0.000000e+00> : vector<1x8x16xf32>
    %175 = tpu.matmul %173, %174, %cst_61 {dimension_numbers = #tpu.dot_dimension_numbers<[2], [1], [1], [2], [0, 0, 0, 1, 1, 2], [0], [0]>} : vector<1x8x16xbf16>, vector<1x16x16xbf16>, vector<1x8x16xf32> -> vector<1x8x16xf32>
    "tpu.trace_stop"() : () -> ()
    %176 = vector.shape_cast %175 : vector<1x8x16xf32> to vector<8x16xf32>
    %177 = arith.truncf %176 : vector<8x16xf32> to vector<8x16xbf16>
    %178 = vector.extract_strided_slice %138 {offsets = [0, 0], sizes = [16, 32], strides = [1, 1]} : vector<32x32xbf16> to vector<16x32xbf16>
    %cst_62 = arith.constant dense<0.000000e+00> : vector<8x32xf32>
    %179 = tpu.matmul %177, %178, %cst_62 {dimension_numbers = #tpu.dot_dimension_numbers<[1], [0], [0], [1], [0, 0, 1, 1], [], []>} : vector<8x16xbf16>, vector<16x32xbf16>, vector<8x32xf32> -> vector<8x32xf32>
    %180 = arith.addf %159, %179 : vector<8x32xf32>
    %181 = vector.extract_strided_slice %156 {offsets = [0, 0, 16], sizes = [1, 8, 16], strides = [1, 1, 1]} : vector<1x8x32xbf16> to vector<1x8x16xbf16>
    %182 = vector.extract_strided_slice %157 {offsets = [0, 0, 16], sizes = [1, 16, 16], strides = [1, 1, 1]} : vector<1x16x32xbf16> to vector<1x16x16xbf16>
    "tpu.trace_start"() <{level = 10 : i32, message = "bth,bsh->bts"}> : () -> ()
    %cst_63 = arith.constant dense<0.000000e+00> : vector<1x8x16xf32>
    %183 = tpu.matmul %181, %182, %cst_63 {dimension_numbers = #tpu.dot_dimension_numbers<[2], [2], [1], [1], [0, 0, 0, 1, 1, 1], [0], [0]>} : vector<1x8x16xbf16>, vector<1x16x16xbf16>, vector<1x8x16xf32> -> vector<1x8x16xf32>
    "tpu.trace_stop"() : () -> ()
    %cst_64 = arith.constant dense<0xFF800000> : vector<1x8xf32>
    %184 = vector.multi_reduction <maximumf>, %183, %cst_64 [2] : vector<1x8x16xf32> to vector<1x8xf32>
    %185 = vector.shape_cast %184 : vector<1x8xf32> to vector<1x8x1xf32>
    %186 = vector.broadcast %185 : vector<1x8x1xf32> to vector<1x8x16xf32>
    %187 = arith.subf %183, %186 : vector<1x8x16xf32>
    %188 = math.exp %187 : vector<1x8x16xf32>
    %cst_65 = arith.constant dense<0.000000e+00> : vector<1x8xf32>
    %189 = vector.multi_reduction <add>, %188, %cst_65 [2] : vector<1x8x16xf32> to vector<1x8xf32>
    %190 = vector.shape_cast %189 : vector<1x8xf32> to vector<1x8x1xf32>
    %191 = tpu.reciprocal %190 {approx = true} : vector<1x8x1xf32> -> vector<1x8x1xf32>
    %192 = vector.broadcast %191 : vector<1x8x1xf32> to vector<1x8x16xf32>
    %193 = arith.mulf %188, %192 : vector<1x8x16xf32>
    %194 = arith.truncf %193 : vector<1x8x16xf32> to vector<1x8x16xbf16>
    %195 = vector.extract_strided_slice %158 {offsets = [0, 0, 16], sizes = [1, 16, 16], strides = [1, 1, 1]} : vector<1x16x32xbf16> to vector<1x16x16xbf16>
    "tpu.trace_start"() <{level = 10 : i32, message = "bts,bsh->bth"}> : () -> ()
    %cst_66 = arith.constant dense<0.000000e+00> : vector<1x8x16xf32>
    %196 = tpu.matmul %194, %195, %cst_66 {dimension_numbers = #tpu.dot_dimension_numbers<[2], [1], [1], [2], [0, 0, 0, 1, 1, 2], [0], [0]>} : vector<1x8x16xbf16>, vector<1x16x16xbf16>, vector<1x8x16xf32> -> vector<1x8x16xf32>
    "tpu.trace_stop"() : () -> ()
    %197 = vector.shape_cast %196 : vector<1x8x16xf32> to vector<8x16xf32>
    %198 = arith.truncf %197 : vector<8x16xf32> to vector<8x16xbf16>
    %199 = vector.extract_strided_slice %138 {offsets = [16, 0], sizes = [16, 32], strides = [1, 1]} : vector<32x32xbf16> to vector<16x32xbf16>
    %cst_67 = arith.constant dense<0.000000e+00> : vector<8x32xf32>
    %200 = tpu.matmul %198, %199, %cst_67 {dimension_numbers = #tpu.dot_dimension_numbers<[1], [0], [0], [1], [0, 0, 1, 1], [], []>} : vector<8x16xbf16>, vector<16x32xbf16>, vector<8x32xf32> -> vector<8x32xf32>
    %201 = arith.addf %180, %200 : vector<8x32xf32>
    %202 = vector.broadcast %140 : vector<1x32xf32> to vector<8x32xf32>
    %203 = arith.addf %201, %202 : vector<8x32xf32>
    %204 = vector.shape_cast %203 : vector<8x32xf32> to vector<1x8x32xf32>
    %205 = vector.shape_cast %151 : vector<16x64xf32> to vector<1x16x64xf32>
    %206 = arith.addf %110, %204 : vector<1x8x32xf32>
    %207 = vector.extract_strided_slice %9 {offsets = [2, 0], sizes = [1, 32], strides = [1, 1]} : vector<3x32xf32> to vector<1x32xf32>
    %208 = vector.extract_strided_slice %11 {offsets = [2, 0], sizes = [1, 32], strides = [1, 1]} : vector<3x32xf32> to vector<1x32xf32>
    %cst_68 = arith.constant dense<0.000000e+00> : vector<1x8xf32>
    %209 = vector.multi_reduction <add>, %206, %cst_68 [2] : vector<1x8x32xf32> to vector<1x8xf32>
    %210 = vector.shape_cast %209 : vector<1x8xf32> to vector<1x8x1xf32>
    %cst_69 = arith.constant 3.200000e+01 : f32
    %211 = vector.broadcast %cst_69 : f32 to vector<1x8x1xf32>
    %212 = arith.divf %210, %211 : vector<1x8x1xf32>
    %213 = vector.broadcast %212 : vector<1x8x1xf32> to vector<1x8x32xf32>
    %214 = arith.subf %206, %213 : vector<1x8x32xf32>
    %215 = arith.mulf %214, %214 : vector<1x8x32xf32>
    %cst_70 = arith.constant dense<0.000000e+00> : vector<1x8xf32>
    %216 = vector.multi_reduction <add>, %215, %cst_70 [2] : vector<1x8x32xf32> to vector<1x8xf32>
    %217 = vector.shape_cast %216 : vector<1x8xf32> to vector<1x8x1xf32>
    %cst_71 = arith.constant 3.200000e+01 : f32
    %218 = vector.broadcast %cst_71 : f32 to vector<1x8x1xf32>
    %219 = arith.divf %217, %218 : vector<1x8x1xf32>
    %cst_72 = arith.constant 9.99999974E-6 : f32
    %220 = vector.broadcast %cst_72 : f32 to vector<1x8x1xf32>
    %221 = arith.addf %219, %220 : vector<1x8x1xf32>
    %222 = math.rsqrt %221 : vector<1x8x1xf32>
    %223 = vector.broadcast %222 : vector<1x8x1xf32> to vector<1x8x32xf32>
    %224 = arith.mulf %214, %223 : vector<1x8x32xf32>
    %225 = vector.shape_cast %207 : vector<1x32xf32> to vector<1x1x32xf32>
    %226 = vector.broadcast %225 : vector<1x1x32xf32> to vector<1x8x32xf32>
    %227 = arith.mulf %224, %226 : vector<1x8x32xf32>
    %228 = vector.shape_cast %208 : vector<1x32xf32> to vector<1x1x32xf32>
    %229 = vector.broadcast %228 : vector<1x1x32xf32> to vector<1x8x32xf32>
    %230 = arith.addf %227, %229 : vector<1x8x32xf32>
    %231 = vector.shape_cast %230 : vector<1x8x32xf32> to vector<8x32xf32>
    %232 = arith.truncf %231 : vector<8x32xf32> to vector<8x32xbf16>
    %c0_73 = arith.constant 0 : index
    %c0_74 = arith.constant 0 : index
    %c0_75 = arith.constant 0 : index
    %233 = vector.load %arg14[%c0_73, %c0_74, %c0_75] : memref<1x32x64xbf16, #tpu.memory_space<vmem>>, vector<1x32x64xbf16>
    %234 = vector.shape_cast %233 : vector<1x32x64xbf16> to vector<32x64xbf16>
    %cst_76 = arith.constant dense<0.000000e+00> : vector<8x64xf32>
    %235 = tpu.matmul %232, %234, %cst_76 {dimension_numbers = #tpu.dot_dimension_numbers<[1], [0], [0], [1], [0, 0, 1, 1], [], []>} : vector<8x32xbf16>, vector<32x64xbf16>, vector<8x64xf32> -> vector<8x64xf32>
    %c0_77 = arith.constant 0 : index
    %c0_78 = arith.constant 0 : index
    %c0_79 = arith.constant 0 : index
    %236 = vector.load %arg15[%c0_77, %c0_78, %c0_79] : memref<1x1x64xf32, #tpu.memory_space<vmem>>, vector<1x1x64xf32>
    %237 = vector.shape_cast %236 : vector<1x1x64xf32> to vector<1x64xf32>
    %238 = vector.broadcast %237 : vector<1x64xf32> to vector<8x64xf32>
    %239 = arith.addf %235, %238 : vector<8x64xf32>
    %cst_80 = arith.constant 0.000000e+00 : f32
    %240 = vector.broadcast %cst_80 : f32 to vector<8x64xf32>
    %241 = arith.cmpf ogt, %239, %240 : vector<8x64xf32>
    %cst_81 = arith.constant 0.00999999977 : f32
    %242 = vector.broadcast %cst_81 : f32 to vector<8x64xf32>
    %243 = arith.mulf %242, %239 : vector<8x64xf32>
    %244 = arith.select %241, %239, %243 : vector<8x64xi1>, vector<8x64xf32>
    %245 = arith.truncf %244 : vector<8x64xf32> to vector<8x64xbf16>
    %c0_82 = arith.constant 0 : index
    %c0_83 = arith.constant 0 : index
    %c0_84 = arith.constant 0 : index
    %246 = vector.load %arg16[%c0_82, %c0_83, %c0_84] : memref<1x64x32xbf16, #tpu.memory_space<vmem>>, vector<1x64x32xbf16>
    %247 = vector.shape_cast %246 : vector<1x64x32xbf16> to vector<64x32xbf16>
    %cst_85 = arith.constant dense<0.000000e+00> : vector<8x32xf32>
    %248 = tpu.matmul %245, %247, %cst_85 {dimension_numbers = #tpu.dot_dimension_numbers<[1], [0], [0], [1], [0, 0, 1, 1], [], []>} : vector<8x64xbf16>, vector<64x32xbf16>, vector<8x32xf32> -> vector<8x32xf32>
    %c0_86 = arith.constant 0 : index
    %c0_87 = arith.constant 0 : index
    %c0_88 = arith.constant 0 : index
    %249 = vector.load %arg17[%c0_86, %c0_87, %c0_88] : memref<1x1x32xf32, #tpu.memory_space<vmem>>, vector<1x1x32xf32>
    %250 = vector.shape_cast %249 : vector<1x1x32xf32> to vector<1x32xf32>
    %251 = vector.broadcast %250 : vector<1x32xf32> to vector<8x32xf32>
    %252 = arith.addf %248, %251 : vector<8x32xf32>
    %253 = vector.shape_cast %252 : vector<8x32xf32> to vector<1x8x32xf32>
    %254 = arith.addf %206, %253 : vector<1x8x32xf32>
    %c0_89 = arith.constant 0 : index
    %c0_90 = arith.constant 0 : index
    %c0_91 = arith.constant 0 : index
    %255 = vector.load %arg21[%c0_89, %c0_90, %c0_91] : memref<1x8x32xf32, #tpu.memory_space<vmem>>, vector<1x8x32xf32>
    tpu.vector_store %arg21[%c0_89, %c0_90, %c0_91], %254 {strides = array<i32>} : memref<1x8x32xf32, #tpu.memory_space<vmem>>, vector<1x8x32xf32>,
    %c0_92 = arith.constant 0 : index
    %c0_93 = arith.constant 0 : index
    %c0_94 = arith.constant 0 : index
    %c0_95 = arith.constant 0 : index
    %256 = vector.load %arg19[%c0_92, %c0_93, %c0_94, %c0_95] : memref<1x1x8x64xf32, #tpu.memory_space<vmem>>, vector<1x1x8x64xf32>
    %257 = vector.shape_cast %256 : vector<1x1x8x64xf32> to vector<1x8x64xf32>
    %258 = vector.shape_cast %109 : vector<1x8x64xf32> to vector<1x1x8x64xf32>
    tpu.vector_store %arg19[%c0_92, %c0_93, %c0_94, %c0_95], %258 {strides = array<i32>} : memref<1x1x8x64xf32, #tpu.memory_space<vmem>>, vector<1x1x8x64xf32>,
    %c0_96 = arith.constant 0 : index
    %c0_97 = arith.constant 0 : index
    %c0_98 = arith.constant 0 : index
    %c0_99 = arith.constant 0 : index
    %259 = vector.load %arg20[%c0_96, %c0_97, %c0_98, %c0_99] : memref<1x1x16x64xf32, #tpu.memory_space<vmem>>, vector<1x1x16x64xf32>
    %260 = vector.shape_cast %259 : vector<1x1x16x64xf32> to vector<1x16x64xf32>
    %261 = vector.shape_cast %205 : vector<1x16x64xf32> to vector<1x1x16x64xf32>
    tpu.vector_store %arg20[%c0_96, %c0_97, %c0_98, %c0_99], %261 {strides = array<i32>} : memref<1x1x16x64xf32, #tpu.memory_space<vmem>>, vector<1x1x16x64xf32>,
    %c1_i32 = arith.constant 1 : i32
    %262 = arith.cmpi eq, %arg1, %c1_i32 : i32
    %263 = arith.extui %262 : i1 to i32
    %c0_i32_100 = arith.constant 0 : i32
    %264 = arith.cmpi ne, %263, %c0_i32_100 : i32
    scf.if %264 {
      %c0_101 = arith.constant 0 : index
      %c0_102 = arith.constant 0 : index
      %c0_103 = arith.constant 0 : index
      %265 = vector.load %arg18[%c0_101, %c0_102, %c0_103] : memref<1x8x32xf32, #tpu.memory_space<vmem>>, vector<1x8x32xf32>
      tpu.vector_store %arg18[%c0_101, %c0_102, %c0_103], %254 {strides = array<i32>} : memref<1x8x32xf32, #tpu.memory_space<vmem>>, vector<1x8x32xf32>,
    } else {
    }
    return
  }
  func.func @transform_0(%arg0: i32, %arg1: i32) -> (i32, i32, i32) {
    %c0_i32 = arith.constant 0 : i32
    %c0_i32_0 = arith.constant 0 : i32
    %c0_i32_1 = arith.constant 0 : i32
    return %arg0, %c0_i32, %c0_i32_0 : i32, i32, i32
  }
  func.func @transform_1(%arg0: i32, %arg1: i32) -> (i32, i32, i32) {
    %c0_i32 = arith.constant 0 : i32
    %c0_i32_0 = arith.constant 0 : i32
    %c0_i32_1 = arith.constant 0 : i32
    return %arg0, %c0_i32, %c0_i32_0 : i32, i32, i32
  }
  func.func @transform_2(%arg0: i32, %arg1: i32) -> (i32, i32) {
    %c0_i32 = arith.constant 0 : i32
    %c0_i32_0 = arith.constant 0 : i32
    %c0_i32_1 = arith.constant 0 : i32
    return %c0_i32, %c0_i32_0 : i32, i32
  }
  func.func @transform_3(%arg0: i32, %arg1: i32) -> (i32, i32) {
    %c0_i32 = arith.constant 0 : i32
    %c0_i32_0 = arith.constant 0 : i32
    %c0_i32_1 = arith.constant 0 : i32
    return %c0_i32, %c0_i32_0 : i32, i32
  }
  func.func @transform_4(%arg0: i32, %arg1: i32) -> (i32, i32, i32) {
    %c0_i32 = arith.constant 0 : i32
    %c0_i32_0 = arith.constant 0 : i32
    %c0_i32_1 = arith.constant 0 : i32
    return %arg1, %c0_i32, %c0_i32_0 : i32, i32, i32
  }
  func.func @transform_5(%arg0: i32, %arg1: i32) -> (i32, i32, i32) {
    %c0_i32 = arith.constant 0 : i32
    %c0_i32_0 = arith.constant 0 : i32
    %c0_i32_1 = arith.constant 0 : i32
    return %arg1, %c0_i32, %c0_i32_0 : i32, i32, i32
  }
  func.func @transform_6(%arg0: i32, %arg1: i32) -> (i32, i32, i32) {
    %c0_i32 = arith.constant 0 : i32
    %c0_i32_0 = arith.constant 0 : i32
    %c0_i32_1 = arith.constant 0 : i32
    return %arg1, %c0_i32, %c0_i32_0 : i32, i32, i32
  }
  func.func @transform_7(%arg0: i32, %arg1: i32) -> (i32, i32, i32) {
    %c0_i32 = arith.constant 0 : i32
    %c0_i32_0 = arith.constant 0 : i32
    %c0_i32_1 = arith.constant 0 : i32
    return %arg1, %c0_i32, %c0_i32_0 : i32, i32, i32
  }
  func.func @transform_8(%arg0: i32, %arg1: i32) -> (i32, i32, i32) {
    %c0_i32 = arith.constant 0 : i32
    %c0_i32_0 = arith.constant 0 : i32
    %c0_i32_1 = arith.constant 0 : i32
    return %arg1, %c0_i32, %c0_i32_0 : i32, i32, i32
  }
  func.func @transform_9(%arg0: i32, %arg1: i32) -> (i32, i32, i32) {
    %c0_i32 = arith.constant 0 : i32
    %c0_i32_0 = arith.constant 0 : i32
    %c0_i32_1 = arith.constant 0 : i32
    return %arg1, %c0_i32, %c0_i32_0 : i32, i32, i32
  }
  func.func @transform_10(%arg0: i32, %arg1: i32) -> (i32, i32, i32) {
    %c0_i32 = arith.constant 0 : i32
    %c0_i32_0 = arith.constant 0 : i32
    %c0_i32_1 = arith.constant 0 : i32
    return %arg1, %c0_i32, %c0_i32_0 : i32, i32, i32
  }
  func.func @transform_11(%arg0: i32, %arg1: i32) -> (i32, i32, i32) {
    %c0_i32 = arith.constant 0 : i32
    %c0_i32_0 = arith.constant 0 : i32
    %c0_i32_1 = arith.constant 0 : i32
    return %arg1, %c0_i32, %c0_i32_0 : i32, i32, i32
  }
  func.func @transform_12(%arg0: i32, %arg1: i32) -> (i32, i32, i32) {
    %c0_i32 = arith.constant 0 : i32
    %c0_i32_0 = arith.constant 0 : i32
    %c0_i32_1 = arith.constant 0 : i32
    return %arg1, %c0_i32, %c0_i32_0 : i32, i32, i32
  }
  func.func @transform_13(%arg0: i32, %arg1: i32) -> (i32, i32, i32) {
    %c0_i32 = arith.constant 0 : i32
    %c0_i32_0 = arith.constant 0 : i32
    %c0_i32_1 = arith.constant 0 : i32
    return %arg1, %c0_i32, %c0_i32_0 : i32, i32, i32
  }
  func.func @transform_14(%arg0: i32, %arg1: i32) -> (i32, i32, i32) {
    %c0_i32 = arith.constant 0 : i32
    %c0_i32_0 = arith.constant 0 : i32
    %c0_i32_1 = arith.constant 0 : i32
    return %arg1, %c0_i32, %c0_i32_0 : i32, i32, i32
  }
  func.func @transform_15(%arg0: i32, %arg1: i32) -> (i32, i32, i32) {
    %c0_i32 = arith.constant 0 : i32
    %c0_i32_0 = arith.constant 0 : i32
    %c0_i32_1 = arith.constant 0 : i32
    return %arg1, %c0_i32, %c0_i32_0 : i32, i32, i32
  }
  func.func @transform_16(%arg0: i32, %arg1: i32) -> (i32, i32, i32) {
    %c0_i32 = arith.constant 0 : i32
    %c0_i32_0 = arith.constant 0 : i32
    %c0_i32_1 = arith.constant 0 : i32
    return %arg0, %c0_i32, %c0_i32_0 : i32, i32, i32
  }
  func.func @transform_17(%arg0: i32, %arg1: i32) -> (i32, i32, i32, i32) {
    %c0_i32 = arith.constant 0 : i32
    %c0_i32_0 = arith.constant 0 : i32
    %c0_i32_1 = arith.constant 0 : i32
    return %arg1, %arg0, %c0_i32, %c0_i32_0 : i32, i32, i32, i32
  }
  func.func @transform_18(%arg0: i32, %arg1: i32) -> (i32, i32, i32, i32) {
    %c0_i32 = arith.constant 0 : i32
    %c0_i32_0 = arith.constant 0 : i32
    %c0_i32_1 = arith.constant 0 : i32
    return %arg1, %arg0, %c0_i32, %c0_i32_0 : i32, i32, i32, i32
  }
}

</mosaic_0001>

<llo_original>
// kernel: tpu_custom_call.1
$region0: #{tpu_custom_call.1}
  #allocation0 [shape = 'u32[]', space=smem, size = 0x4, offset = 0x4, fixed_abs, tag = 'smem constant byte address 0x4 - core index']
  #allocation1 [shape = 'u32[144,128]{1,0:T(1,128)}', space=vmem, size = 0x12000, scoped, tag = 'internal scratch']
  #allocation2 [shape = 'f32[1,8,32]{2,1,0:T(8,128)}', space=vmem, size = 0x1000, scoped, tag = 'scratch operand']
  #allocation3 [shape = 'f32[1,16,32]{2,1,0:T(8,128)}', space=vmem, size = 0x2000, scoped, tag = 'scratch operand']
  %s0 = inlined_call_operand.hbm [shape: f32[2,8,32], index: 0, kind: input, shape index: {}]
  %s1 = inlined_call_operand.vmem [shape: f32[2,16,32], index: 1, kind: input, shape index: {}]
  %s2 = inlined_call_operand.vmem [shape: f32[1,32], index: 2, kind: input, shape index: {}]
  %s3 = inlined_call_operand.hbm [shape: f32[1,32], index: 3, kind: input, shape index: {}]
  %s4 = inlined_call_operand.vmem [shape: f32[2,3,32], index: 4, kind: input, shape index: {}]
  %s5 = inlined_call_operand.vmem [shape: f32[2,3,32], index: 5, kind: input, shape index: {}]
  %s6 = inlined_call_operand.vmem [shape: bf16[2,32,96], index: 6, kind: input, shape index: {}]
  %s7 = inlined_call_operand.vmem [shape: bf16[2,32,32], index: 7, kind: input, shape index: {}]
  %s8 = inlined_call_operand.hbm [shape: f32[2,1,32], index: 8, kind: input, shape index: {}]
  %s9 = inlined_call_operand.vmem [shape: bf16[2,32,96], index: 9, kind: input, shape index: {}]
  %s10 = inlined_call_operand.hbm [shape: bf16[2,32,32], index: 10, kind: input, shape index: {}]
  %s11 = inlined_call_operand.vmem [shape: f32[2,1,32], index: 11, kind: input, shape index: {}]
  %s12 = inlined_call_operand.hbm [shape: bf16[2,32,64], index: 12, kind: input, shape index: {}]
  %s13 = inlined_call_operand.vmem [shape: f32[2,1,64], index: 13, kind: input, shape index: {}]
  %s14 = inlined_call_operand.vmem [shape: bf16[2,64,32], index: 14, kind: input, shape index: {}]
  %s15 = inlined_call_operand.vmem [shape: f32[2,1,32], index: 15, kind: input, shape index: {}]
  %s16 = inlined_call_operand.hbm [shape: f32[2,8,32], index: 16, kind: output, shape index: {0}]
  %s17 = inlined_call_operand.hbm [shape: f32[2,2,8,64], index: 17, kind: output, shape index: {1}]
  %s18 = inlined_call_operand.hbm [shape: f32[2,2,16,64], index: 18, kind: output, shape index: {2}]
  %19 = xla_tuple %s16, %s17, %s18
  %s20 = sld [smem:[#allocation0]]
  $region141: #{tpu_custom_call.1} parent=0
    _
  %s22 = ssub.s32 1, %s20
  %s23 = scalar_select 0, %s22, %s20
  $region1: #{tpu_custom_call.1} parent=0
    #allocation4 [shape = 'u8[8192]{0}', space=vmem, size = 0x2000, scoped, tag = 'input window, operand 0']
    #allocation5 [shape = 's32[2]{0}', space=sflag, size = 0x8, scoped, tag = 'scoped memory for tpu_custom_call.1']
    #allocation6 [shape = 's32[2]{0}', space=sflag, size = 0x8, scoped, tag = 'scoped memory for tpu_custom_call.1']
    #allocation7 [shape = 'u8[512]{0}', space=vmem, size = 0x400, scoped, tag = 'input window, operand 3, single buffered']
    #allocation8 [shape = 's32[1]{0}', space=sflag, size = 0x4, scoped, tag = 'scoped memory for tpu_custom_call.1']
    #allocation9 [shape = 'u8[1024]{0}', space=vmem, size = 0x400, scoped, tag = 'input window, operand 8']
    #allocation10 [shape = 'u8[16384]{0}', space=vmem, size = 0x4000, scoped, tag = 'input window, operand 10']
    #allocation11 [shape = 'u8[16384]{0}', space=vmem, size = 0x4000, scoped, tag = 'input window, operand 12']
    #allocation12 [shape = 'u8[8192]{0}', space=vmem, size = 0x2000, scoped, tag = 'output window, operand 0']
    #allocation13 [shape = 'u8[8192]{0}', space=vmem, size = 0x2000, scoped, tag = 'output window, operand 1']
    #allocation14 [shape = 's32[2]{0}', space=sflag, size = 0x8, scoped, tag = 'scoped memory for tpu_custom_call.1']
    #allocation15 [shape = 'u8[16384]{0}', space=vmem, size = 0x4000, scoped, tag = 'output window, operand 2']
    %24 = vsyncpa [#allocation5], 0
    %s25 = scalar_lea.sflag [#allocation5], 1
    %26 = vsyncpa %s25, 0
    %27 = vsyncpa [#allocation8], 0
    %28 = vsyncpa [#allocation6], 0
    %s29 = scalar_lea.sflag [#allocation6], 1
    %30 = vsyncpa %s29, 0
    %31 = vsyncpa [#allocation14], 0
    %s32 = scalar_lea.sflag [#allocation14], 1
    %33 = vsyncpa %s32, 0
    loop: start=0, step=1, limit=6
    $region2: #{tpu_custom_call.1} parent=1 // loop_pre_header
      _
    $region3: #{tpu_custom_call.1} parent=1 // loop_header
      %s35 = sphi 0, %s39
      %p36 = scmp.ge.s32.totalorder %s35, 6
      %s42 = sphi 0, %s54
      %s43 = sphi 0, %s50
      %s44 = sphi 0, %s42
      %s45 = sphi 0, %s43
      %s46 = sphi 0, %s44
      %s47 = sphi 0, %s45
      %s57 = sphi 0, %s59
      %s60 = sphi 0, %s57
      %s61 = sphi 0, %s60
      %s77 = sphi 0, %s61
      %s83 = sphi 0, %s85
      %s86 = sphi 0, %s83
      %s87 = sphi 0, %s86
      %s103 = sphi 0, %s87
      %s107 = sphi 0, %s107
      %s109 = sphi 0, %s107
      %s110 = sphi 0, %s109
      %s124 = sphi 0, %s110
      %s128 = sphi 0, %s128
      %s130 = sphi 0, %s128
      %s131 = sphi 0, %s130
      %s145 = sphi 0, %s131
      %s151 = sphi 0, %s153
      %s154 = sphi 0, %s151
      %s155 = sphi 0, %s154
      %s171 = sphi 0, %s155
      %s177 = sphi 0, %s179
      %s180 = sphi 0, %s177
      %s181 = sphi 0, %s180
      %s197 = sphi 0, %s181
      %s203 = sphi 0, %s205
      %s206 = sphi 0, %s203
      %s207 = sphi 0, %s206
      %s223 = sphi 0, %s207
      %s229 = sphi 0, %s231
      %s232 = sphi 0, %s229
      %s233 = sphi 0, %s232
      %s249 = sphi 0, %s233
      %s255 = sphi 0, %s257
      %s258 = sphi 0, %s255
      %s259 = sphi 0, %s258
      %s275 = sphi 0, %s259
      %s281 = sphi 0, %s283
      %s284 = sphi 0, %s281
      %s285 = sphi 0, %s284
      %s301 = sphi 0, %s285
      %s307 = sphi 0, %s309
      %s310 = sphi 0, %s307
      %s311 = sphi 0, %s310
      %s327 = sphi 0, %s311
      %s333 = sphi 0, %s335
      %s336 = sphi 0, %s333
      %s337 = sphi 0, %s336
      %s353 = sphi 0, %s337
      %s359 = sphi 0, %s361
      %s362 = sphi 0, %s359
      %s363 = sphi 0, %s362
      %s379 = sphi 0, %s363
      %s385 = sphi 0, %s387
      %s388 = sphi 0, %s385
      %s389 = sphi 0, %s388
      %s405 = sphi 0, %s389
      %s411 = sphi 0, %s413
      %s414 = sphi 0, %s411
      %s415 = sphi 0, %s414
      %s431 = sphi 0, %s415
      %s437 = sphi 0, %s439
      %s440 = sphi 0, %s437
      %s441 = sphi 0, %s440
      %s457 = sphi 0, %s441
      %s463 = sphi 0, %s465
      %s466 = sphi 0, %s463
      %s467 = sphi 0, %s466
      %s483 = sphi 0, %s467
      %s491 = sphi 0, %s493
      %s494 = sphi 0, %s491
      %s495 = sphi 0, %s494
      %s511 = sphi 0, %s495
      %s519 = sphi 0, %s521
      %s522 = sphi 0, %s519
      %s523 = sphi 0, %s522
      %s539 = sphi 0, %s523
    $region4: #{tpu_custom_call.1} parent=1 // loop_header_branch
      %38 = sbr.rel (%p36) target = $region8
    $region5: #{tpu_custom_call.1} parent=1 // loop_body
      %s40 = ssub.s32 %s35, 1
      %s41 = ssub.s32 %s35, 2
      %s48 = sadd.s32 1, %s43
      %p49 = scmp.ge.s32.totalorder %s48, 2
      %s50 = scalar_select %p49, 0, %s48
      %s51 = sadd.s32 1, %s42
      %s52 = scalar_select %p49, %s51, %s42
      %p53 = scmp.ge.s32.totalorder %s52, 2
      %s54 = scalar_select %p53, 0, %s52
      %s55 = ssub.s32 %s42, %s54
      %p56 = scmp.eq.s32.totalorder %s55, 0
      %s58 = sadd.s32 %s57, 1
      %s59 = scalar_select %p56, %s57, %s58
      %p62 = pneg %p56
      %p63 = scmp.eq.s32.totalorder %s35, 3
      %p64 = por %p62, %p63
      %p65 = scmp.ne.s32.totalorder %s57, %s60
      %p66 = scmp.eq.s32.totalorder %s35, 0
      %p67 = por %p65, %p66
      %p68 = scmp.ne.s32.totalorder %s57, %s60
      %p69 = scmp.eq.s32.totalorder %s40, 3
      %p70 = por %p68, %p69
      %p71 = scmp.ne.s32.totalorder %s60, %s61
      %p72 = scmp.eq.s32.totalorder %s40, 0
      %p73 = por %p71, %p72
      %p74 = scmp.ne.s32.totalorder %s60, %s61
      %p75 = scmp.eq.s32.totalorder %s41, 3
      %p76 = por %p74, %p75
      %p78 = scmp.ne.s32.totalorder %s61, %s77
      %p79 = scmp.eq.s32.totalorder %s41, 0
      %p80 = por %p78, %p79
      %s81 = ssub.s32 %s42, %s54
      %p82 = scmp.eq.s32.totalorder %s81, 0
      %s84 = sadd.s32 %s83, 1
      %s85 = scalar_select %p82, %s83, %s84
      %p88 = pneg %p82
      %p89 = scmp.eq.s32.totalorder %s35, 3
      %p90 = por %p88, %p89
      %p91 = scmp.ne.s32.totalorder %s83, %s86
      %p92 = scmp.eq.s32.totalorder %s35, 0
      %p93 = por %p91, %p92
      %p94 = scmp.ne.s32.totalorder %s83, %s86
      %p95 = scmp.eq.s32.totalorder %s40, 3
      %p96 = por %p94, %p95
      %p97 = scmp.ne.s32.totalorder %s86, %s87
      %p98 = scmp.eq.s32.totalorder %s40, 0
      %p99 = por %p97, %p98
      %p100 = scmp.ne.s32.totalorder %s86, %s87
      %p101 = scmp.eq.s32.totalorder %s41, 3
      %p102 = por %p100, %p101
      %p104 = scmp.ne.s32.totalorder %s87, %s103
      %p105 = scmp.eq.s32.totalorder %s41, 0
      %p106 = por %p104, %p105
      %s108 = sadd.s32 %s107, 1
      %p111 = scmp.eq.s32.totalorder %s35, 3
      %p112 = scmp.ne.s32.totalorder %s107, %s109
      %p113 = scmp.eq.s32.totalorder %s35, 0
      %p114 = por %p112, %p113
      %p115 = scmp.ne.s32.totalorder %s107, %s109
      %p116 = scmp.eq.s32.totalorder %s40, 3
      %p117 = por %p115, %p116
      %p118 = scmp.ne.s32.totalorder %s109, %s110
      %p119 = scmp.eq.s32.totalorder %s40, 0
      %p120 = por %p118, %p119
      %p121 = scmp.ne.s32.totalorder %s109, %s110
      %p122 = scmp.eq.s32.totalorder %s41, 3
      %p123 = por %p121, %p122
      %p125 = scmp.ne.s32.totalorder %s110, %s124
      %p126 = scmp.eq.s32.totalorder %s41, 0
      %p127 = por %p125, %p126
      %s129 = sadd.s32 %s128, 1
      %p132 = scmp.eq.s32.totalorder %s35, 3
      %p133 = scmp.ne.s32.totalorder %s128, %s130
      %p134 = scmp.eq.s32.totalorder %s35, 0
      %p135 = por %p133, %p134
      %p136 = scmp.ne.s32.totalorder %s128, %s130
      %p137 = scmp.eq.s32.totalorder %s40, 3
      %p138 = por %p136, %p137
      %p139 = scmp.ne.s32.totalorder %s130, %s131
      %p140 = scmp.eq.s32.totalorder %s40, 0
      %p141 = por %p139, %p140
      %p142 = scmp.ne.s32.totalorder %s130, %s131
      %p143 = scmp.eq.s32.totalorder %s41, 3
      %p144 = por %p142, %p143
      %p146 = scmp.ne.s32.totalorder %s131, %s145
      %p147 = scmp.eq.s32.totalorder %s41, 0
      %p148 = por %p146, %p147
      %s149 = ssub.s32 %s43, %s50
      %p150 = scmp.eq.s32.totalorder %s149, 0
      %s152 = sadd.s32 %s151, 1
      %s153 = scalar_select %p150, %s151, %s152
      %p156 = pneg %p150
      %p157 = scmp.eq.s32.totalorder %s35, 3
      %p158 = por %p156, %p157
      %p159 = scmp.ne.s32.totalorder %s151, %s154
      %p160 = scmp.eq.s32.totalorder %s35, 0
      %p161 = por %p159, %p160
      %p162 = scmp.ne.s32.totalorder %s151, %s154
      %p163 = scmp.eq.s32.totalorder %s40, 3
      %p164 = por %p162, %p163
      %p165 = scmp.ne.s32.totalorder %s154, %s155
      %p166 = scmp.eq.s32.totalorder %s40, 0
      %p167 = por %p165, %p166
      %p168 = scmp.ne.s32.totalorder %s154, %s155
      %p169 = scmp.eq.s32.totalorder %s41, 3
      %p170 = por %p168, %p169
      %p172 = scmp.ne.s32.totalorder %s155, %s171
      %p173 = scmp.eq.s32.totalorder %s41, 0
      %p174 = por %p172, %p173
      %s175 = ssub.s32 %s43, %s50
      %p176 = scmp.eq.s32.totalorder %s175, 0
      %s178 = sadd.s32 %s177, 1
      %s179 = scalar_select %p176, %s177, %s178
      %p182 = pneg %p176
      %p183 = scmp.eq.s32.totalorder %s35, 3
      %p184 = por %p182, %p183
      %p185 = scmp.ne.s32.totalorder %s177, %s180
      %p186 = scmp.eq.s32.totalorder %s35, 0
      %p187 = por %p185, %p186
      %p188 = scmp.ne.s32.totalorder %s177, %s180
      %p189 = scmp.eq.s32.totalorder %s40, 3
      %p190 = por %p188, %p189
      %p191 = scmp.ne.s32.totalorder %s180, %s181
      %p192 = scmp.eq.s32.totalorder %s40, 0
      %p193 = por %p191, %p192
      %p194 = scmp.ne.s32.totalorder %s180, %s181
      %p195 = scmp.eq.s32.totalorder %s41, 3
      %p196 = por %p194, %p195
      %p198 = scmp.ne.s32.totalorder %s181, %s197
      %p199 = scmp.eq.s32.totalorder %s41, 0
      %p200 = por %p198, %p199
      %s201 = ssub.s32 %s43, %s50
      %p202 = scmp.eq.s32.totalorder %s201, 0
      %s204 = sadd.s32 %s203, 1
      %s205 = scalar_select %p202, %s203, %s204
      %p208 = pneg %p202
      %p209 = scmp.eq.s32.totalorder %s35, 3
      %p210 = por %p208, %p209
      %p211 = scmp.ne.s32.totalorder %s203, %s206
      %p212 = scmp.eq.s32.totalorder %s35, 0
      %p213 = por %p211, %p212
      %p214 = scmp.ne.s32.totalorder %s203, %s206
      %p215 = scmp.eq.s32.totalorder %s40, 3
      %p216 = por %p214, %p215
      %p217 = scmp.ne.s32.totalorder %s206, %s207
      %p218 = scmp.eq.s32.totalorder %s40, 0
      %p219 = por %p217, %p218
      %p220 = scmp.ne.s32.totalorder %s206, %s207
      %p221 = scmp.eq.s32.totalorder %s41, 3
      %p222 = por %p220, %p221
      %p224 = scmp.ne.s32.totalorder %s207, %s223
      %p225 = scmp.eq.s32.totalorder %s41, 0
      %p226 = por %p224, %p225
      %s227 = ssub.s32 %s43, %s50
      %p228 = scmp.eq.s32.totalorder %s227, 0
      %s230 = sadd.s32 %s229, 1
      %s231 = scalar_select %p228, %s229, %s230
      %p234 = pneg %p228
      %p235 = scmp.eq.s32.totalorder %s35, 3
      %p236 = por %p234, %p235
      %p237 = scmp.ne.s32.totalorder %s229, %s232
      %p238 = scmp.eq.s32.totalorder %s35, 0
      %p239 = por %p237, %p238
      %p240 = scmp.ne.s32.totalorder %s229, %s232
      %p241 = scmp.eq.s32.totalorder %s40, 3
      %p242 = por %p240, %p241
      %p243 = scmp.ne.s32.totalorder %s232, %s233
      %p244 = scmp.eq.s32.totalorder %s40, 0
      %p245 = por %p243, %p244
      %p246 = scmp.ne.s32.totalorder %s232, %s233
      %p247 = scmp.eq.s32.totalorder %s41, 3
      %p248 = por %p246, %p247
      %p250 = scmp.ne.s32.totalorder %s233, %s249
      %p251 = scmp.eq.s32.totalorder %s41, 0
      %p252 = por %p250, %p251
      %s253 = ssub.s32 %s43, %s50
      %p254 = scmp.eq.s32.totalorder %s253, 0
      %s256 = sadd.s32 %s255, 1
      %s257 = scalar_select %p254, %s255, %s256
      %p260 = pneg %p254
      %p261 = scmp.eq.s32.totalorder %s35, 3
      %p262 = por %p260, %p261
      %p263 = scmp.ne.s32.totalorder %s255, %s258
      %p264 = scmp.eq.s32.totalorder %s35, 0
      %p265 = por %p263, %p264
      %p266 = scmp.ne.s32.totalorder %s255, %s258
      %p267 = scmp.eq.s32.totalorder %s40, 3
      %p268 = por %p266, %p267
      %p269 = scmp.ne.s32.totalorder %s258, %s259
      %p270 = scmp.eq.s32.totalorder %s40, 0
      %p271 = por %p269, %p270
      %p272 = scmp.ne.s32.totalorder %s258, %s259
      %p273 = scmp.eq.s32.totalorder %s41, 3
      %p274 = por %p272, %p273
      %p276 = scmp.ne.s32.totalorder %s259, %s275
      %p277 = scmp.eq.s32.totalorder %s41, 0
      %p278 = por %p276, %p277
      %s279 = ssub.s32 %s43, %s50
      %p280 = scmp.eq.s32.totalorder %s279, 0
      %s282 = sadd.s32 %s281, 1
      %s283 = scalar_select %p280, %s281, %s282
      %p286 = pneg %p280
      %p287 = scmp.eq.s32.totalorder %s35, 3
      %p288 = por %p286, %p287
      %p289 = scmp.ne.s32.totalorder %s281, %s284
      %p290 = scmp.eq.s32.totalorder %s35, 0
      %p291 = por %p289, %p290
      %p292 = scmp.ne.s32.totalorder %s281, %s284
      %p293 = scmp.eq.s32.totalorder %s40, 3
      %p294 = por %p292, %p293
      %p295 = scmp.ne.s32.totalorder %s284, %s285
      %p296 = scmp.eq.s32.totalorder %s40, 0
      %p297 = por %p295, %p296
      %p298 = scmp.ne.s32.totalorder %s284, %s285
      %p299 = scmp.eq.s32.totalorder %s41, 3
      %p300 = por %p298, %p299
      %p302 = scmp.ne.s32.totalorder %s285, %s301
      %p303 = scmp.eq.s32.totalorder %s41, 0
      %p304 = por %p302, %p303
      %s305 = ssub.s32 %s43, %s50
      %p306 = scmp.eq.s32.totalorder %s305, 0
      %s308 = sadd.s32 %s307, 1
      %s309 = scalar_select %p306, %s307, %s308
      %p312 = pneg %p306
      %p313 = scmp.eq.s32.totalorder %s35, 3
      %p314 = por %p312, %p313
      %p315 = scmp.ne.s32.totalorder %s307, %s310
      %p316 = scmp.eq.s32.totalorder %s35, 0
      %p317 = por %p315, %p316
      %p318 = scmp.ne.s32.totalorder %s307, %s310
      %p319 = scmp.eq.s32.totalorder %s40, 3
      %p320 = por %p318, %p319
      %p321 = scmp.ne.s32.totalorder %s310, %s311
      %p322 = scmp.eq.s32.totalorder %s40, 0
      %p323 = por %p321, %p322
      %p324 = scmp.ne.s32.totalorder %s310, %s311
      %p325 = scmp.eq.s32.totalorder %s41, 3
      %p326 = por %p324, %p325
      %p328 = scmp.ne.s32.totalorder %s311, %s327
      %p329 = scmp.eq.s32.totalorder %s41, 0
      %p330 = por %p328, %p329
      %s331 = ssub.s32 %s43, %s50
      %p332 = scmp.eq.s32.totalorder %s331, 0
      %s334 = sadd.s32 %s333, 1
      %s335 = scalar_select %p332, %s333, %s334
      %p338 = pneg %p332
      %p339 = scmp.eq.s32.totalorder %s35, 3
      %p340 = por %p338, %p339
      %p341 = scmp.ne.s32.totalorder %s333, %s336
      %p342 = scmp.eq.s32.totalorder %s35, 0
      %p343 = por %p341, %p342
      %p344 = scmp.ne.s32.totalorder %s333, %s336
      %p345 = scmp.eq.s32.totalorder %s40, 3
      %p346 = por %p344, %p345
      %p347 = scmp.ne.s32.totalorder %s336, %s337
      %p348 = scmp.eq.s32.totalorder %s40, 0
      %p349 = por %p347, %p348
      %p350 = scmp.ne.s32.totalorder %s336, %s337
      %p351 = scmp.eq.s32.totalorder %s41, 3
      %p352 = por %p350, %p351
      %p354 = scmp.ne.s32.totalorder %s337, %s353
      %p355 = scmp.eq.s32.totalorder %s41, 0
      %p356 = por %p354, %p355
      %s357 = ssub.s32 %s43, %s50
      %p358 = scmp.eq.s32.totalorder %s357, 0
      %s360 = sadd.s32 %s359, 1
      %s361 = scalar_select %p358, %s359, %s360
      %p364 = pneg %p358
      %p365 = scmp.eq.s32.totalorder %s35, 3
      %p366 = por %p364, %p365
      %p367 = scmp.ne.s32.totalorder %s359, %s362
      %p368 = scmp.eq.s32.totalorder %s35, 0
      %p369 = por %p367, %p368
      %p370 = scmp.ne.s32.totalorder %s359, %s362
      %p371 = scmp.eq.s32.totalorder %s40, 3
      %p372 = por %p370, %p371
      %p373 = scmp.ne.s32.totalorder %s362, %s363
      %p374 = scmp.eq.s32.totalorder %s40, 0
      %p375 = por %p373, %p374
      %p376 = scmp.ne.s32.totalorder %s362, %s363
      %p377 = scmp.eq.s32.totalorder %s41, 3
      %p378 = por %p376, %p377
      %p380 = scmp.ne.s32.totalorder %s363, %s379
      %p381 = scmp.eq.s32.totalorder %s41, 0
      %p382 = por %p380, %p381
      %s383 = ssub.s32 %s43, %s50
      %p384 = scmp.eq.s32.totalorder %s383, 0
      %s386 = sadd.s32 %s385, 1
      %s387 = scalar_select %p384, %s385, %s386
      %p390 = pneg %p384
      %p391 = scmp.eq.s32.totalorder %s35, 3
      %p392 = por %p390, %p391
      %p393 = scmp.ne.s32.totalorder %s385, %s388
      %p394 = scmp.eq.s32.totalorder %s35, 0
      %p395 = por %p393, %p394
      %p396 = scmp.ne.s32.totalorder %s385, %s388
      %p397 = scmp.eq.s32.totalorder %s40, 3
      %p398 = por %p396, %p397
      %p399 = scmp.ne.s32.totalorder %s388, %s389
      %p400 = scmp.eq.s32.totalorder %s40, 0
      %p401 = por %p399, %p400
      %p402 = scmp.ne.s32.totalorder %s388, %s389
      %p403 = scmp.eq.s32.totalorder %s41, 3
      %p404 = por %p402, %p403
      %p406 = scmp.ne.s32.totalorder %s389, %s405
      %p407 = scmp.eq.s32.totalorder %s41, 0
      %p408 = por %p406, %p407
      %s409 = ssub.s32 %s43, %s50
      %p410 = scmp.eq.s32.totalorder %s409, 0
      %s412 = sadd.s32 %s411, 1
      %s413 = scalar_select %p410, %s411, %s412
      %p416 = pneg %p410
      %p417 = scmp.eq.s32.totalorder %s35, 3
      %p418 = por %p416, %p417
      %p419 = scmp.ne.s32.totalorder %s411, %s414
      %p420 = scmp.eq.s32.totalorder %s35, 0
      %p421 = por %p419, %p420
      %p422 = scmp.ne.s32.totalorder %s411, %s414
      %p423 = scmp.eq.s32.totalorder %s40, 3
      %p424 = por %p422, %p423
      %p425 = scmp.ne.s32.totalorder %s414, %s415
      %p426 = scmp.eq.s32.totalorder %s40, 0
      %p427 = por %p425, %p426
      %p428 = scmp.ne.s32.totalorder %s414, %s415
      %p429 = scmp.eq.s32.totalorder %s41, 3
      %p430 = por %p428, %p429
      %p432 = scmp.ne.s32.totalorder %s415, %s431
      %p433 = scmp.eq.s32.totalorder %s41, 0
      %p434 = por %p432, %p433
      %s435 = ssub.s32 %s43, %s50
      %p436 = scmp.eq.s32.totalorder %s435, 0
      %s438 = sadd.s32 %s437, 1
      %s439 = scalar_select %p436, %s437, %s438
      %p442 = pneg %p436
      %p443 = scmp.eq.s32.totalorder %s35, 3
      %p444 = por %p442, %p443
      %p445 = scmp.ne.s32.totalorder %s437, %s440
      %p446 = scmp.eq.s32.totalorder %s35, 0
      %p447 = por %p445, %p446
      %p448 = scmp.ne.s32.totalorder %s437, %s440
      %p449 = scmp.eq.s32.totalorder %s40, 3
      %p450 = por %p448, %p449
      %p451 = scmp.ne.s32.totalorder %s440, %s441
      %p452 = scmp.eq.s32.totalorder %s40, 0
      %p453 = por %p451, %p452
      %p454 = scmp.ne.s32.totalorder %s440, %s441
      %p455 = scmp.eq.s32.totalorder %s41, 3
      %p456 = por %p454, %p455
      %p458 = scmp.ne.s32.totalorder %s441, %s457
      %p459 = scmp.eq.s32.totalorder %s41, 0
      %p460 = por %p458, %p459
      %s461 = ssub.s32 %s42, %s54
      %p462 = scmp.eq.s32.totalorder %s461, 0
      %s464 = sadd.s32 %s463, 1
      %s465 = scalar_select %p462, %s463, %s464
      %p468 = pneg %p462
      %p469 = scmp.eq.s32.totalorder %s35, 3
      %p470 = por %p468, %p469
      %p471 = scmp.ne.s32.totalorder %s463, %s466
      %p472 = scmp.eq.s32.totalorder %s35, 0
      %p473 = por %p471, %p472
      %p474 = scmp.ne.s32.totalorder %s463, %s466
      %p475 = scmp.eq.s32.totalorder %s40, 3
      %p476 = por %p474, %p475
      %p477 = scmp.ne.s32.totalorder %s466, %s467
      %p478 = scmp.eq.s32.totalorder %s40, 0
      %p479 = por %p477, %p478
      %p480 = scmp.ne.s32.totalorder %s466, %s467
      %p481 = scmp.eq.s32.totalorder %s41, 3
      %p482 = por %p480, %p481
      %p484 = scmp.ne.s32.totalorder %s467, %s483
      %p485 = scmp.eq.s32.totalorder %s41, 0
      %p486 = por %p484, %p485
      %s487 = ssub.s32 %s43, %s50
      %s488 = ssub.s32 %s42, %s54
      %s489 = sor.u32 %s487, %s488
      %p490 = scmp.eq.s32.totalorder %s489, 0
      %s492 = sadd.s32 %s491, 1
      %s493 = scalar_select %p490, %s491, %s492
      %p496 = pneg %p490
      %p497 = scmp.eq.s32.totalorder %s35, 3
      %p498 = por %p496, %p497
      %p499 = scmp.ne.s32.totalorder %s491, %s494
      %p500 = scmp.eq.s32.totalorder %s35, 0
      %p501 = por %p499, %p500
      %p502 = scmp.ne.s32.totalorder %s491, %s494
      %p503 = scmp.eq.s32.totalorder %s40, 3
      %p504 = por %p502, %p503
      %p505 = scmp.ne.s32.totalorder %s494, %s495
      %p506 = scmp.eq.s32.totalorder %s40, 0
      %p507 = por %p505, %p506
      %p508 = scmp.ne.s32.totalorder %s494, %s495
      %p509 = scmp.eq.s32.totalorder %s41, 3
      %p510 = por %p508, %p509
      %p512 = scmp.ne.s32.totalorder %s495, %s511
      %p513 = scmp.eq.s32.totalorder %s41, 0
      %p514 = por %p512, %p513
      %s515 = ssub.s32 %s43, %s50
      %s516 = ssub.s32 %s42, %s54
      %s517 = sor.u32 %s515, %s516
      %p518 = scmp.eq.s32.totalorder %s517, 0
      %s520 = sadd.s32 %s519, 1
      %s521 = scalar_select %p518, %s519, %s520
      %p524 = pneg %p518
      %p525 = scmp.eq.s32.totalorder %s35, 3
      %p526 = por %p524, %p525
      %p527 = scmp.ne.s32.totalorder %s519, %s522
      %p528 = scmp.eq.s32.totalorder %s35, 0
      %p529 = por %p527, %p528
      %p530 = scmp.ne.s32.totalorder %s519, %s522
      %p531 = scmp.eq.s32.totalorder %s40, 3
      %p532 = por %p530, %p531
      %p533 = scmp.ne.s32.totalorder %s522, %s523
      %p534 = scmp.eq.s32.totalorder %s40, 0
      %p535 = por %p533, %p534
      %p536 = scmp.ne.s32.totalorder %s522, %s523
      %p537 = scmp.eq.s32.totalorder %s41, 3
      %p538 = por %p536, %p537
      %p540 = scmp.ne.s32.totalorder %s523, %s539
      %p541 = scmp.eq.s32.totalorder %s41, 0
      %p542 = por %p540, %p541
      %p543 = scmp.le.s32.totalorder 1, %s35
      %p544 = scmp.lt.s32.totalorder %s35, 5
      %p545 = pnand %p543, %p544
      %p546 = pneg %p545
      // Predicated region
      $region9: #{tpu_custom_call.1} parent=5 // pred_check
        _
      $region10: #{tpu_custom_call.1} parent=5 // pred_check_branch
        %548 = sbr.rel (%p545) target = $region12
      $region11: #{tpu_custom_call.1} parent=5 // pred_region
        %s549 = ssub.s32 %s35, 1
        // Predicated region
        $region13: #{tpu_custom_call.1} parent=11 // pred_check
          %p550 = pneg %p120
        $region14: #{tpu_custom_call.1} parent=11 // pred_check_branch
          %552 = sbr.rel (%p550) target = $region16
        $region15: #{tpu_custom_call.1} parent=11 // pred_region
          _
        $region16: #{tpu_custom_call.1} parent=11 // pred_fallthru
          _
        // Predicated region
        $region17: #{tpu_custom_call.1} parent=11 // pred_check
          %p553 = pneg %p141
        $region18: #{tpu_custom_call.1} parent=11 // pred_check_branch
          %555 = sbr.rel (%p553) target = $region20
        $region19: #{tpu_custom_call.1} parent=11 // pred_region
          %s557 = ssub.s32 16, 16
          %558 = vsyncadd [#allocation8], %s557
          %s560 = sshll.u32 [#allocation7], 4
          %s561 = int_to_ptr.vmem [resolvable:$true] %s560
          %563 = dma.hbm_to_vmem [thread:$0]  %s3, 16, %s561, [#allocation8]
        $region20: #{tpu_custom_call.1} parent=11 // pred_fallthru
          _
      $region12: #{tpu_custom_call.1} parent=5 // pred_fallthru
        _
      %p564 = scmp.lt.s32.totalorder %s35, 4
      // Predicated region
      $region21: #{tpu_custom_call.1} parent=5 // pred_check
        %p565 = pneg %p564
      $region22: #{tpu_custom_call.1} parent=5 // pred_check_branch
        %567 = sbr.rel (%p565) target = $region24
      $region23: #{tpu_custom_call.1} parent=5 // pred_region
        // Predicated region
        $region25: #{tpu_custom_call.1} parent=23 // pred_check
          %p568 = pneg %p67
        $region26: #{tpu_custom_call.1} parent=23 // pred_check_branch
          %570 = sbr.rel (%p568) target = $region28
        $region27: #{tpu_custom_call.1} parent=23 // pred_region
          %s571 = sand.u32 %s35, 1
          %s572 = scalar_lea.sflag [#allocation5], %s571
          %s573 = sand.u32 %s57, 1
          %s574 = smul.addr %s573, 8
          %s575 = scalar_lea.vmem [#allocation4], %s574
          %s577 = ssub.s32 128, 128
          %578 = vsyncadd %s572, %s577
          %s579 = smul.addr %s42, 128
          %s580 = scalar_lea.hbm %s0, %s579
          %s582 = sshll.u32 %s575, 4
          %s583 = int_to_ptr.vmem [resolvable:$true] %s582
          %585 = dma.hbm_to_vmem [thread:$0]  %s580, 128, %s583, %s572
        $region28: #{tpu_custom_call.1} parent=23 // pred_fallthru
          _
        // Predicated region
        $region29: #{tpu_custom_call.1} parent=23 // pred_check
          %p586 = pneg %p93
        $region30: #{tpu_custom_call.1} parent=23 // pred_check_branch
          %588 = sbr.rel (%p586) target = $region32
        $region31: #{tpu_custom_call.1} parent=23 // pred_region
          %p589 = scmp.lt.s32.totalorder %s42, 1
          %s590 = scalar_select %p589, %s42, 1
          %s591 = smul.addr %s590, 2
          %s592 = smul.addr %s591, 8
          %s593 = scalar_lea.vmem %s1, %s592
        $region32: #{tpu_custom_call.1} parent=23 // pred_fallthru
          _
        // Predicated region
        $region33: #{tpu_custom_call.1} parent=23 // pred_check
          %p594 = pneg %p161
        $region34: #{tpu_custom_call.1} parent=23 // pred_check_branch
          %596 = sbr.rel (%p594) target = $region36
        $region35: #{tpu_custom_call.1} parent=23 // pred_region
          %p597 = scmp.lt.s32.totalorder %s43, 1
          %s598 = scalar_select %p597, %s43, 1
          %s599 = smul.addr %s598, 4
          %s600 = scalar_lea.vmem %s4, %s599
        $region36: #{tpu_custom_call.1} parent=23 // pred_fallthru
          _
        // Predicated region
        $region37: #{tpu_custom_call.1} parent=23 // pred_check
          %p601 = pneg %p187
        $region38: #{tpu_custom_call.1} parent=23 // pred_check_branch
          %603 = sbr.rel (%p601) target = $region40
        $region39: #{tpu_custom_call.1} parent=23 // pred_region
          %p604 = scmp.lt.s32.totalorder %s43, 1
          %s605 = scalar_select %p604, %s43, 1
          %s606 = smul.addr %s605, 4
          %s607 = scalar_lea.vmem %s5, %s606
        $region40: #{tpu_custom_call.1} parent=23 // pred_fallthru
          _
        // Predicated region
        $region41: #{tpu_custom_call.1} parent=23 // pred_check
          %p608 = pneg %p213
        $region42: #{tpu_custom_call.1} parent=23 // pred_check_branch
          %610 = sbr.rel (%p608) target = $region44
        $region43: #{tpu_custom_call.1} parent=23 // pred_region
          %p611 = scmp.lt.s32.totalorder %s43, 1
          %s612 = scalar_select %p611, %s43, 1
          %s613 = smul.addr %s612, 4
          %s614 = smul.addr %s613, 4
          %s615 = scalar_lea.vmem %s6, %s614
        $region44: #{tpu_custom_call.1} parent=23 // pred_fallthru
          _
        // Predicated region
        $region45: #{tpu_custom_call.1} parent=23 // pred_check
          %p616 = pneg %p239
        $region46: #{tpu_custom_call.1} parent=23 // pred_check_branch
          %618 = sbr.rel (%p616) target = $region48
        $region47: #{tpu_custom_call.1} parent=23 // pred_region
          %p619 = scmp.lt.s32.totalorder %s43, 1
          %s620 = scalar_select %p619, %s43, 1
          %s621 = smul.addr %s620, 4
          %s622 = smul.addr %s621, 4
          %s623 = scalar_lea.vmem %s7, %s622
        $region48: #{tpu_custom_call.1} parent=23 // pred_fallthru
          _
        // Predicated region
        $region49: #{tpu_custom_call.1} parent=23 // pred_check
          %p624 = pneg %p265
        $region50: #{tpu_custom_call.1} parent=23 // pred_check_branch
          %626 = sbr.rel (%p624) target = $region52
        $region51: #{tpu_custom_call.1} parent=23 // pred_region
          %s627 = sand.u32 %s35, 1
          %s628 = scalar_lea.sflag [#allocation5], %s627
          %s629 = sand.u32 %s255, 1
          %s630 = scalar_lea.vmem [#allocation9], %s629
          %s632 = ssub.s32 16, 16
          %633 = vsyncadd %s628, %s632
          %s634 = smul.addr %s43, 16
          %s635 = scalar_lea.hbm %s8, %s634
          %s637 = sshll.u32 %s630, 4
          %s638 = int_to_ptr.vmem [resolvable:$true] %s637
          %640 = dma.hbm_to_vmem [thread:$0]  %s635, 16, %s638, %s628
        $region52: #{tpu_custom_call.1} parent=23 // pred_fallthru
          _
        // Predicated region
        $region53: #{tpu_custom_call.1} parent=23 // pred_check
          %p641 = pneg %p291
        $region54: #{tpu_custom_call.1} parent=23 // pred_check_branch
          %643 = sbr.rel (%p641) target = $region56
        $region55: #{tpu_custom_call.1} parent=23 // pred_region
          %p644 = scmp.lt.s32.totalorder %s43, 1
          %s645 = scalar_select %p644, %s43, 1
          %s646 = smul.addr %s645, 4
          %s647 = smul.addr %s646, 4
          %s648 = scalar_lea.vmem %s9, %s647
        $region56: #{tpu_custom_call.1} parent=23 // pred_fallthru
          _
        // Predicated region
        $region57: #{tpu_custom_call.1} parent=23 // pred_check
          %p649 = pneg %p317
        $region58: #{tpu_custom_call.1} parent=23 // pred_check_branch
          %651 = sbr.rel (%p649) target = $region60
        $region59: #{tpu_custom_call.1} parent=23 // pred_region
          %s652 = sand.u32 %s35, 1
          %s653 = scalar_lea.sflag [#allocation5], %s652
          %s654 = sand.u32 %s307, 1
          %s655 = smul.addr %s654, 16
          %s656 = scalar_lea.vmem [#allocation10], %s655
          %s658 = ssub.s32 256, 256
          %659 = vsyncadd %s653, %s658
          %s660 = smul.addr %s43, 4
          %s661 = smul.addr %s660, 64
          %s662 = scalar_lea.hbm %s10, %s661
          %s663 = sshll.u32 %s656, 4
          %s664 = int_to_ptr.vmem [resolvable:$true] %s663
          %669 = dma.hbm_to_vmem [thread:$0]  %s662, 256, %s664, %s653, 64, 64, 4
        $region60: #{tpu_custom_call.1} parent=23 // pred_fallthru
          _
        // Predicated region
        $region61: #{tpu_custom_call.1} parent=23 // pred_check
          %p670 = pneg %p343
        $region62: #{tpu_custom_call.1} parent=23 // pred_check_branch
          %672 = sbr.rel (%p670) target = $region64
        $region63: #{tpu_custom_call.1} parent=23 // pred_region
          %p673 = scmp.lt.s32.totalorder %s43, 1
          %s674 = scalar_select %p673, %s43, 1
          %s675 = scalar_lea.vmem %s11, %s674
        $region64: #{tpu_custom_call.1} parent=23 // pred_fallthru
          _
        // Predicated region
        $region65: #{tpu_custom_call.1} parent=23 // pred_check
          %p676 = pneg %p369
        $region66: #{tpu_custom_call.1} parent=23 // pred_check_branch
          %678 = sbr.rel (%p676) target = $region68
        $region67: #{tpu_custom_call.1} parent=23 // pred_region
          %s679 = sand.u32 %s35, 1
          %s680 = scalar_lea.sflag [#allocation5], %s679
          %s681 = sand.u32 %s359, 1
          %s682 = smul.addr %s681, 16
          %s683 = scalar_lea.vmem [#allocation11], %s682
          %s685 = ssub.s32 256, 256
          %686 = vsyncadd %s680, %s685
          %s687 = smul.addr %s43, 4
          %s688 = smul.addr %s687, 64
          %s689 = scalar_lea.hbm %s12, %s688
          %s690 = sshll.u32 %s683, 4
          %s691 = int_to_ptr.vmem [resolvable:$true] %s690
          %696 = dma.hbm_to_vmem [thread:$0]  %s689, 256, %s691, %s680, 64, 64, 4
        $region68: #{tpu_custom_call.1} parent=23 // pred_fallthru
          _
        // Predicated region
        $region69: #{tpu_custom_call.1} parent=23 // pred_check
          %p697 = pneg %p395
        $region70: #{tpu_custom_call.1} parent=23 // pred_check_branch
          %699 = sbr.rel (%p697) target = $region72
        $region71: #{tpu_custom_call.1} parent=23 // pred_region
          %p700 = scmp.lt.s32.totalorder %s43, 1
          %s701 = scalar_select %p700, %s43, 1
          %s702 = scalar_lea.vmem %s13, %s701
        $region72: #{tpu_custom_call.1} parent=23 // pred_fallthru
          _
        // Predicated region
        $region73: #{tpu_custom_call.1} parent=23 // pred_check
          %p703 = pneg %p421
        $region74: #{tpu_custom_call.1} parent=23 // pred_check_branch
          %705 = sbr.rel (%p703) target = $region76
        $region75: #{tpu_custom_call.1} parent=23 // pred_region
          %p706 = scmp.lt.s32.totalorder %s43, 1
          %s707 = scalar_select %p706, %s43, 1
          %s708 = smul.addr %s707, 8
          %s709 = smul.addr %s708, 4
          %s710 = scalar_lea.vmem %s14, %s709
        $region76: #{tpu_custom_call.1} parent=23 // pred_fallthru
          _
        // Predicated region
        $region77: #{tpu_custom_call.1} parent=23 // pred_check
          %p711 = pneg %p447
        $region78: #{tpu_custom_call.1} parent=23 // pred_check_branch
          %713 = sbr.rel (%p711) target = $region80
        $region79: #{tpu_custom_call.1} parent=23 // pred_region
          %p714 = scmp.lt.s32.totalorder %s43, 1
          %s715 = scalar_select %p714, %s43, 1
          %s716 = scalar_lea.vmem %s15, %s715
        $region80: #{tpu_custom_call.1} parent=23 // pred_fallthru
          _
      $region24: #{tpu_custom_call.1} parent=5 // pred_fallthru
        _
      %p717 = scmp.le.s32.totalorder 1, %s35
      %p718 = scmp.lt.s32.totalorder %s35, 5
      %p719 = pnand %p717, %p718
      %p720 = pneg %p719
      // Predicated region
      $region81: #{tpu_custom_call.1} parent=5 // pred_check
        _
      $region82: #{tpu_custom_call.1} parent=5 // pred_check_branch
        %722 = sbr.rel (%p719) target = $region84
      $region83: #{tpu_custom_call.1} parent=5 // pred_region
        %s723 = ssub.s32 %s35, 1
        %s724 = sand.u32 %s40, 1
        %s725 = scalar_lea.sflag [#allocation5], %s724
        %s726 = sand.u32 %s60, 1
        %s727 = smul.addr %s726, 8
        %s728 = scalar_lea.vmem [#allocation4], %s727
        // Predicated region
        $region85: #{tpu_custom_call.1} parent=83 // pred_check
          %p729 = pneg %p73
        $region86: #{tpu_custom_call.1} parent=83 // pred_check_branch
          %731 = sbr.rel (%p729) target = $region88
        $region87: #{tpu_custom_call.1} parent=83 // pred_region
          %732 = dma.done %s725, 128
        $region88: #{tpu_custom_call.1} parent=83 // pred_fallthru
          _
        // Predicated region
        $region89: #{tpu_custom_call.1} parent=83 // pred_check
          %p733 = pneg %p141
        $region90: #{tpu_custom_call.1} parent=83 // pred_check_branch
          %735 = sbr.rel (%p733) target = $region92
        $region91: #{tpu_custom_call.1} parent=83 // pred_region
          %736 = dma.done [#allocation8], 16
        $region92: #{tpu_custom_call.1} parent=83 // pred_fallthru
          _
        %s737 = sand.u32 %s40, 1
        %s738 = scalar_lea.sflag [#allocation5], %s737
        %s739 = sand.u32 %s258, 1
        %s740 = scalar_lea.vmem [#allocation9], %s739
        // Predicated region
        $region93: #{tpu_custom_call.1} parent=83 // pred_check
          %p741 = pneg %p271
        $region94: #{tpu_custom_call.1} parent=83 // pred_check_branch
          %743 = sbr.rel (%p741) target = $region96
        $region95: #{tpu_custom_call.1} parent=83 // pred_region
          %744 = dma.done %s738, 16
        $region96: #{tpu_custom_call.1} parent=83 // pred_fallthru
          _
        %s745 = sand.u32 %s40, 1
        %s746 = scalar_lea.sflag [#allocation5], %s745
        %s747 = sand.u32 %s310, 1
        %s748 = smul.addr %s747, 16
        %s749 = scalar_lea.vmem [#allocation10], %s748
        // Predicated region
        $region97: #{tpu_custom_call.1} parent=83 // pred_check
          %p750 = pneg %p323
        $region98: #{tpu_custom_call.1} parent=83 // pred_check_branch
          %752 = sbr.rel (%p750) target = $region100
        $region99: #{tpu_custom_call.1} parent=83 // pred_region
          %753 = dma.done %s746, 256
        $region100: #{tpu_custom_call.1} parent=83 // pred_fallthru
          _
        %s754 = sand.u32 %s40, 1
        %s755 = scalar_lea.sflag [#allocation5], %s754
        %s756 = sand.u32 %s362, 1
        %s757 = smul.addr %s756, 16
        %s758 = scalar_lea.vmem [#allocation11], %s757
        // Predicated region
        $region101: #{tpu_custom_call.1} parent=83 // pred_check
          %p759 = pneg %p375
        $region102: #{tpu_custom_call.1} parent=83 // pred_check_branch
          %761 = sbr.rel (%p759) target = $region104
        $region103: #{tpu_custom_call.1} parent=83 // pred_region
          %762 = dma.done %s755, 256
        $region104: #{tpu_custom_call.1} parent=83 // pred_fallthru
          _
        %s763 = sand.u32 %s40, 1
        %s764 = scalar_lea.sflag [#allocation5], %s763
        %s765 = sand.u32 %s60, 1
        %s766 = smul.addr %s765, 8
        %s767 = scalar_lea.vmem [#allocation4], %s766
        %p768 = pneg %p73
        %p769 = pneg %p70
        %p770 = scmp.lt.s32.totalorder %s44, 1
        %s771 = scalar_select %p770, %s44, 1
        %s772 = smul.addr %s771, 2
        %s773 = smul.addr %s772, 8
        %s774 = scalar_lea.vmem %s1, %s773
        %p775 = pneg %p99
        %p776 = pneg %p96
        %p777 = pneg %p120
        %p778 = pneg %p117
        %p779 = pneg %p141
        %p780 = pneg %p138
        %p781 = scmp.lt.s32.totalorder %s45, 1
        %s782 = scalar_select %p781, %s45, 1
        %s783 = smul.addr %s782, 4
        %s784 = scalar_lea.vmem %s4, %s783
        %p785 = pneg %p167
        %p786 = pneg %p164
        %p787 = scmp.lt.s32.totalorder %s45, 1
        %s788 = scalar_select %p787, %s45, 1
        %s789 = smul.addr %s788, 4
        %s790 = scalar_lea.vmem %s5, %s789
        %p791 = pneg %p193
        %p792 = pneg %p190
        %p793 = scmp.lt.s32.totalorder %s45, 1
        %s794 = scalar_select %p793, %s45, 1
        %s795 = smul.addr %s794, 4
        %s796 = smul.addr %s795, 4
        %s797 = scalar_lea.vmem %s6, %s796
        %p798 = pneg %p219
        %p799 = pneg %p216
        %p800 = scmp.lt.s32.totalorder %s45, 1
        %s801 = scalar_select %p800, %s45, 1
        %s802 = smul.addr %s801, 4
        %s803 = smul.addr %s802, 4
        %s804 = scalar_lea.vmem %s7, %s803
        %p805 = pneg %p245
        %p806 = pneg %p242
        %s807 = sand.u32 %s40, 1
        %s808 = scalar_lea.sflag [#allocation5], %s807
        %s809 = sand.u32 %s258, 1
        %s810 = scalar_lea.vmem [#allocation9], %s809
        %p811 = pneg %p271
        %p812 = pneg %p268
        %p813 = scmp.lt.s32.totalorder %s45, 1
        %s814 = scalar_select %p813, %s45, 1
        %s815 = smul.addr %s814, 4
        %s816 = smul.addr %s815, 4
        %s817 = scalar_lea.vmem %s9, %s816
        %p818 = pneg %p297
        %p819 = pneg %p294
        %s820 = sand.u32 %s40, 1
        %s821 = scalar_lea.sflag [#allocation5], %s820
        %s822 = sand.u32 %s310, 1
        %s823 = smul.addr %s822, 16
        %s824 = scalar_lea.vmem [#allocation10], %s823
        %p825 = pneg %p323
        %p826 = pneg %p320
        %p827 = scmp.lt.s32.totalorder %s45, 1
        %s828 = scalar_select %p827, %s45, 1
        %s829 = scalar_lea.vmem %s11, %s828
        %p830 = pneg %p349
        %p831 = pneg %p346
        %s832 = sand.u32 %s40, 1
        %s833 = scalar_lea.sflag [#allocation5], %s832
        %s834 = sand.u32 %s362, 1
        %s835 = smul.addr %s834, 16
        %s836 = scalar_lea.vmem [#allocation11], %s835
        %p837 = pneg %p375
        %p838 = pneg %p372
        %p839 = scmp.lt.s32.totalorder %s45, 1
        %s840 = scalar_select %p839, %s45, 1
        %s841 = scalar_lea.vmem %s13, %s840
        %p842 = pneg %p401
        %p843 = pneg %p398
        %p844 = scmp.lt.s32.totalorder %s45, 1
        %s845 = scalar_select %p844, %s45, 1
        %s846 = smul.addr %s845, 8
        %s847 = smul.addr %s846, 4
        %s848 = scalar_lea.vmem %s14, %s847
        %p849 = pneg %p427
        %p850 = pneg %p424
        %p851 = scmp.lt.s32.totalorder %s45, 1
        %s852 = scalar_select %p851, %s45, 1
        %s853 = scalar_lea.vmem %s15, %s852
        %p854 = pneg %p453
        %p855 = pneg %p450
        %p856 = pneg %p479
        %p857 = pneg %p476
        %s858 = sand.u32 %s466, 1
        %s859 = scalar_lea.sflag [#allocation6], %s858
        %s860 = sand.u32 %s466, 1
        %s861 = smul.addr %s860, 8
        %s862 = scalar_lea.vmem [#allocation12], %s861
        %p863 = pneg %p507
        %p864 = pneg %p504
        %s865 = sand.u32 %s40, 1
        %s866 = scalar_lea.sflag [#allocation14], %s865
        %s867 = sand.u32 %s494, 1
        %s868 = smul.addr %s867, 8
        %s869 = scalar_lea.vmem [#allocation13], %s868
        %p870 = pneg %p535
        %p871 = pneg %p532
        %s872 = sand.u32 %s40, 1
        %s873 = scalar_lea.sflag [#allocation14], %s872
        %s874 = sand.u32 %s522, 1
        %s875 = smul.addr %s874, 16
        %s876 = scalar_lea.vmem [#allocation15], %s875
        %p877 = scmp.lt.s32.totalorder %s44, 1
        %s878 = scalar_select %p877, %s44, 1
        %s879 = smul.addr %s878, 2
        %s880 = smul.addr %s879, 8
        %s881 = scalar_lea.vmem %s1, %s880
        %p882 = scmp.lt.s32.totalorder %s45, 1
        %s883 = scalar_select %p882, %s45, 1
        %s884 = smul.addr %s883, 4
        %s885 = scalar_lea.vmem %s4, %s884
        %p886 = scmp.lt.s32.totalorder %s45, 1
        %s887 = scalar_select %p886, %s45, 1
        %s888 = smul.addr %s887, 4
        %s889 = scalar_lea.vmem %s5, %s888
        %p890 = scmp.lt.s32.totalorder %s45, 1
        %s891 = scalar_select %p890, %s45, 1
        %s892 = smul.addr %s891, 4
        %s893 = smul.addr %s892, 4
        %s894 = scalar_lea.vmem %s6, %s893
        %p895 = scmp.lt.s32.totalorder %s45, 1
        %s896 = scalar_select %p895, %s45, 1
        %s897 = smul.addr %s896, 4
        %s898 = smul.addr %s897, 4
        %s899 = scalar_lea.vmem %s7, %s898
        %p900 = scmp.lt.s32.totalorder %s45, 1
        %s901 = scalar_select %p900, %s45, 1
        %s902 = smul.addr %s901, 4
        %s903 = smul.addr %s902, 4
        %s904 = scalar_lea.vmem %s9, %s903
        %p905 = scmp.lt.s32.totalorder %s45, 1
        %s906 = scalar_select %p905, %s45, 1
        %s907 = scalar_lea.vmem %s11, %s906
        %p908 = scmp.lt.s32.totalorder %s45, 1
        %s909 = scalar_select %p908, %s45, 1
        %s910 = scalar_lea.vmem %s13, %s909
        %p911 = scmp.lt.s32.totalorder %s45, 1
        %s912 = scalar_select %p911, %s45, 1
        %s913 = smul.addr %s912, 8
        %s914 = smul.addr %s913, 4
        %s915 = scalar_lea.vmem %s14, %s914
        %p916 = scmp.lt.s32.totalorder %s45, 1
        %s917 = scalar_select %p916, %s45, 1
        %s918 = scalar_lea.vmem %s15, %s917
        %p920 = scmp.eq.s32.totalorder %s45, 0
        // Predicated region
        $region105: #{tpu_custom_call.1} parent=83 // pred_check
          %p921 = pneg %p920
        $region106: #{tpu_custom_call.1} parent=83 // pred_check_branch
          %923 = sbr.rel (%p921) target = $region108
        $region107: #{tpu_custom_call.1} parent=83 // pred_region
          %v924 = vld [vmem:[%s728] sm:$0xff]
          %vm925 = vcmask 261120
          %926 = vst.msk [vmem:[#allocation2] sm:$0xff] %vm925, %v924
          %v927 = vld [vmem:[%s881] sm:$0xff]
          %v928 = vld [vmem:[%s881 + $0x8] sm:$0xff]
          %v929 = vld [vmem:[%s2] sm:$0x1]
          %v930 = vld [vmem:[#allocation7] sm:$0x1]
          %v931 = vsel %vm925, %v927, 0.0
          %932 = vadd.xlane.f32.xlu0 %v931
          %v933 = vpop.xlane.xlu0 %932
          %v934 = vsel %vm925, %v928, 0.0
          %935 = vadd.xlane.f32.xlu0 %v934
          %v936 = vpop.xlane.xlu0 %935
          %v937 = vrcp.pop 32.0
          %v938 = vmul.f32 %v933, %v937
          %v939 = vmul.f32 %v936, %v937
          %v940 = vsub.f32 %v927, %v938
          %v941 = vsub.f32 %v928, %v939
          %v942 = vmul.f32 %v940, %v940
          %v943 = vmul.f32 %v941, %v941
          %v944 = vsel %vm925, %v942, 0.0
          %945 = vadd.xlane.f32.xlu0 %v944
          %v946 = vpop.xlane.xlu0 %945
          %v947 = vsel %vm925, %v943, 0.0
          %948 = vadd.xlane.f32.xlu0 %v947
          %v949 = vpop.xlane.xlu0 %948
          %v950 = vmul.f32 %v946, %v937
          %v951 = vmul.f32 %v949, %v937
          %v952 = vadd.f32 %v950, 1e-05
          %v953 = vadd.f32 %v951, 1e-05
          %v954 = vrsqrt.pop %v952
          %v955 = vrsqrt.pop %v953
          %v956 = vmul.f32 %v940, %v954
          %v957 = vmul.f32 %v941, %v955
          %v959 = vlaneseq
          %v960 = vshrl.u32 %v959, 7
          %v961 = vsub.s32 0, %v960
          %v962 = vrot.slane %v929, %v961
          %v964 = vmul.f32 %v956, %v962
          %v965 = vmul.f32 %v957, %v962
          %v967 = vlaneseq
          %v968 = vshrl.u32 %v967, 7
          %v969 = vsub.s32 0, %v968
          %v970 = vrot.slane %v930, %v969
          %v972 = vadd.f32 %v964, %v970
          %v973 = vadd.f32 %v965, %v970
          %974 = vst.msk [vmem:[#allocation3] sm:$0xff] %vm925, %v972
          %975 = vst.msk [vmem:[#allocation3 + $0x8] sm:$0xff] %vm925, %v973
        $region108: #{tpu_custom_call.1} parent=83 // pred_fallthru
          _
        %v976 = vld [vmem:[#allocation2] sm:$0xff]
        %v977 = vld [vmem:[#allocation3] sm:$0xff]
        %v978 = vld [vmem:[#allocation3 + $0x8] sm:$0xff]
        %v979 = vlaneseq
        %v980 = vshrl.u32 %v979, 7
        %v981 = vlaneseq
        %v982 = vand.u32 %v981, 127
        %vm983 = vcmp.le.s32.totalorder %v982, %v980
        %v984 = vld [vmem:[%s885] sm:$0x7]
        %v985 = vld [vmem:[%s889] sm:$0x7]
        %vm986 = vcmask 261120
        %v987 = vsel %vm986, %v976, 0.0
        %988 = vadd.xlane.f32.xlu0 %v987
        %v989 = vpop.xlane.xlu0 %988
        %v990 = vrcp.pop 32.0
        %v991 = vmul.f32 %v989, %v990
        %v992 = vsub.f32 %v976, %v991
        %v993 = vmul.f32 %v992, %v992
        %v994 = vsel %vm986, %v993, 0.0
        %995 = vadd.xlane.f32.xlu0 %v994
        %v996 = vpop.xlane.xlu0 %995
        %v997 = vmul.f32 %v996, %v990
        %v998 = vadd.f32 %v997, 1e-05
        %v999 = vrsqrt.pop %v998
        %v1000 = vmul.f32 %v992, %v999
        %v1001 = vlaneseq
        %v1002 = vshrl.u32 %v1001, 7
        %v1003 = vsub.s32 0, %v1002
        %v1004 = vrot.slane %v984, %v1003
        %v1005 = vmul.f32 %v1000, %v1004
        %v1006 = vlaneseq
        %v1007 = vshrl.u32 %v1006, 7
        %v1008 = vsub.s32 0, %v1007
        %v1009 = vrot.slane %v985, %v1008
        %v1010 = vadd.f32 %v1005, %v1009
        %v1011 = vld [vmem:[%s894] sm:$0xf]
        %v1012 = vld [vmem:[%s894 + $0x4] sm:$0xf]
        %v1013 = vld [vmem:[%s894 + $0x8] sm:$0xf]
        %v1014 = vld [vmem:[%s894 + $0xc] sm:$0xf]
        %v1015 = vld [vmem:[%s899] sm:$0xf]
        %v1016 = vld [vmem:[%s899 + $0x4] sm:$0xf]
        %v1017 = vld [vmem:[%s899 + $0x8] sm:$0xf]
        %v1018 = vld [vmem:[%s899 + $0xc] sm:$0xf]
        %v1019 = vld [vmem:[%s740] sm:$0x1]
        %v1020 = vpack.c.bf16 %v1010, %v1010
        %v1025 = vunpack.c.l.b16 %v1011
        %v1026 = vunpack.c.l.b16 %v1012
        %v1027 = vunpack.c.l.b16 %v1013
        %v1028 = vunpack.c.l.b16 %v1014
        %v1029 = vpack.c.b16 %v1026, %v1025
        %v1030 = vpack.c.b16 %v1028, %v1027
        %v1034 = vsel %vm986, %v1020, 0
        %1036 = vmatprep.subr.bf16.mxu0 0
        %1037 = vmatpush1.bf16.msra.mxu0 %v1029
        %1038 = vmatprep.subr.bf16.mxu0 0
        %1039 = vmatpush1.bf16.msra.mxu0 %v1030
        %1040 = vmatprep.subr.bf16.mxu0 0
        %1041 = vmatpush1.bf16.msra.mxu0 0
        %1042 = vmatprep.subr.bf16.mxu0 0
        %1043 = vmatpush1.bf16.msra.mxu0 0
        %1044 = vmatprep.subr.bf16.mxu0 0
        %1045 = vmatpush1.bf16.msra.mxu0 0
        %1046 = vmatprep.subr.bf16.mxu0 0
        %1047 = vmatpush1.bf16.msra.mxu0 0
        %1048 = vmatprep.subr.bf16.mxu0 0
        %1049 = vmatpush1.bf16.msra.mxu0 0
        %1050 = vmatprep.subr.bf16.mxu0 0
        %1051 = vmatpush1.bf16.msra.mxu0 0
        %1052 = vmatprep.subr.bf16.mxu0 0
        %1053 = vmatpush1.bf16.msra.mxu0 0
        %1054 = vmatprep.subr.bf16.mxu0 0
        %1055 = vmatpush1.bf16.msra.mxu0 0
        %1056 = vmatprep.subr.bf16.mxu0 0
        %1057 = vmatpush1.bf16.msra.mxu0 0
        %1058 = vmatprep.subr.bf16.mxu0 0
        %1059 = vmatpush1.bf16.msra.mxu0 0
        %1060 = vmatprep.subr.bf16.mxu0 0
        %1061 = vmatpush1.bf16.msra.mxu0 0
        %1062 = vmatprep.subr.bf16.mxu0 0
        %1063 = vmatpush1.bf16.msra.mxu0 0
        %1064 = vmatprep.subr.bf16.mxu0 0
        %1065 = vmatpush1.bf16.msra.mxu0 0
        %1066 = vmatprep.subr.bf16.mxu0 0
        %1067 = vmatpush1.bf16.msra.mxu0 0
        %1068 = vmatprep.mubr.bf16.mxu0 0
        %1069 = vmatmul.mubr.bf16.gmra.mrb[0].mxu0 %v1034
        %v1070 = vpop.f32.mrb[0].mxu0
        %v1071 = vadd.f32 0.0, %v1070
        %v1072 = vpop.f32.mrb[0].mxu0
        %v1073 = vpop.f32.mrb[0].mxu0
        %v1074 = vpop.f32.mrb[0].mxu0
        %1075 = vdwg.mxu0
        %v1076 = vmul.f32 %v1071, 0.17677669
        %v1077 = vpack.c.bf16 %v1076, %v1076
        %v1078 = vpack.c.bf16 %v1071, %v1071
        %1080 = vrot.lane.b32.xlu0 %v1078, 96
        %v1081 = vpop.permute.xlu0 %1080
        %vm1082 = vcmask 130048
        %v1084 = vsel %vm1082, %v1077, 0
        %v1087 = vsel %vm1082, %v1081, 0
        %1089 = vmatprep.subr.bf16.mxu0 0
        %1090 = vmatpush1.bf16.xpose.msra.mxu0 %v1087
        %1091 = vmatprep.subr.bf16.mxu0 0
        %1092 = vmatpush1.bf16.xpose.msra.mxu0 0
        %1093 = vmatprep.subr.bf16.mxu0 0
        %1094 = vmatpush1.bf16.xpose.msra.mxu0 0
        %1095 = vmatprep.subr.bf16.mxu0 0
        %1096 = vmatpush1.bf16.xpose.msra.mxu0 0
        %1097 = vmatprep.subr.bf16.mxu0 0
        %1098 = vmatpush1.bf16.xpose.msra.mxu0 0
        %1099 = vmatprep.subr.bf16.mxu0 0
        %1100 = vmatpush1.bf16.xpose.msra.mxu0 0
        %1101 = vmatprep.subr.bf16.mxu0 0
        %1102 = vmatpush1.bf16.xpose.msra.mxu0 0
        %1103 = vmatprep.subr.bf16.mxu0 0
        %1104 = vmatpush1.bf16.xpose.msra.mxu0 0
        %1105 = vmatprep.subr.bf16.mxu0 0
        %1106 = vmatpush1.bf16.xpose.msra.mxu0 0
        %1107 = vmatprep.subr.bf16.mxu0 0
        %1108 = vmatpush1.bf16.xpose.msra.mxu0 0
        %1109 = vmatprep.subr.bf16.mxu0 0
        %1110 = vmatpush1.bf16.xpose.msra.mxu0 0
        %1111 = vmatprep.subr.bf16.mxu0 0
        %1112 = vmatpush1.bf16.xpose.msra.mxu0 0
        %1113 = vmatprep.subr.bf16.mxu0 0
        %1114 = vmatpush1.bf16.xpose.msra.mxu0 0
        %1115 = vmatprep.subr.bf16.mxu0 0
        %1116 = vmatpush1.bf16.xpose.msra.mxu0 0
        %1117 = vmatprep.subr.bf16.mxu0 0
        %1118 = vmatpush1.bf16.xpose.msra.mxu0 0
        %1119 = vmatprep.subr.bf16.mxu0 0
        %1120 = vmatpush1.bf16.xpose.msra.mxu0 0
        %1121 = vmatprep.mubr.bf16.mxu0 0
        %1122 = vmatmul.mubr.bf16.gmra.mrb[0].mxu0 %v1084
        %v1123 = vpop.f32.mrb[0].mxu0
        %v1124 = vadd.f32 0.0, %v1123
        %v1125 = vpop.f32.mrb[0].mxu0
        %v1126 = vpop.f32.mrb[0].mxu0
        %v1127 = vpop.f32.mrb[0].mxu0
        %1128 = vdwg.mxu0
        %v1129 = vsel %vm983, %v1124, -1e+30
        %vm1130 = vcmask 64512
        %v1131 = vsel %vm1130, %v1129, -inf
        %1132 = vmax.xlane.f32.xlu0 %v1131
        %v1133 = vpop.xlane.xlu0 %1132
        %v1134 = vsub.f32 %v1129, %v1133
        %v1135 = vmul.f32 %v1134, 1.442695
        %v1136 = vpow.pop %v1135
        %v1137 = vsel %vm1130, %v1136, 0.0
        %1138 = vadd.xlane.f32.xlu0 %v1137
        %v1139 = vpop.xlane.xlu0 %1138
        %v1140 = vrcp.pop %v1139
        %v1141 = vmul.f32 %v1136, %v1140
        %v1142 = vpack.c.bf16 %v1141, %v1141
        %1143 = vrot.lane.b32.xlu0 %v1078, 64
        %v1144 = vpop.permute.xlu0 %1143
        %v1146 = vsel %vm1130, %v1142, 0
        %vm1148 = vcmask 1043456
        %v1150 = vsel %vm1148, %v1144, 0
        %1152 = vmatprep.subr.bf16.mxu0 0
        %1153 = vmatpush1.bf16.msra.mxu0 %v1150
        %1154 = vmatprep.subr.bf16.mxu0 0
        %1155 = vmatpush1.bf16.msra.mxu0 0
        %1156 = vmatprep.subr.bf16.mxu0 0
        %1157 = vmatpush1.bf16.msra.mxu0 0
        %1158 = vmatprep.subr.bf16.mxu0 0
        %1159 = vmatpush1.bf16.msra.mxu0 0
        %1160 = vmatprep.subr.bf16.mxu0 0
        %1161 = vmatpush1.bf16.msra.mxu0 0
        %1162 = vmatprep.subr.bf16.mxu0 0
        %1163 = vmatpush1.bf16.msra.mxu0 0
        %1164 = vmatprep.subr.bf16.mxu0 0
        %1165 = vmatpush1.bf16.msra.mxu0 0
        %1166 = vmatprep.subr.bf16.mxu0 0
        %1167 = vmatpush1.bf16.msra.mxu0 0
        %1168 = vmatprep.subr.bf16.mxu0 0
        %1169 = vmatpush1.bf16.msra.mxu0 0
        %1170 = vmatprep.subr.bf16.mxu0 0
        %1171 = vmatpush1.bf16.msra.mxu0 0
        %1172 = vmatprep.subr.bf16.mxu0 0
        %1173 = vmatpush1.bf16.msra.mxu0 0
        %1174 = vmatprep.subr.bf16.mxu0 0
        %1175 = vmatpush1.bf16.msra.mxu0 0
        %1176 = vmatprep.subr.bf16.mxu0 0
        %1177 = vmatpush1.bf16.msra.mxu0 0
        %1178 = vmatprep.subr.bf16.mxu0 0
        %1179 = vmatpush1.bf16.msra.mxu0 0
        %1180 = vmatprep.subr.bf16.mxu0 0
        %1181 = vmatpush1.bf16.msra.mxu0 0
        %1182 = vmatprep.subr.bf16.mxu0 0
        %1183 = vmatpush1.bf16.msra.mxu0 0
        %1184 = vmatprep.mubr.bf16.mxu0 0
        %1185 = vmatmul.mubr.bf16.gmra.mrb[0].mxu0 %v1146
        %v1186 = vpop.f32.mrb[0].mxu0
        %v1187 = vadd.f32 0.0, %v1186
        %v1188 = vpop.f32.mrb[0].mxu0
        %v1189 = vpop.f32.mrb[0].mxu0
        %v1190 = vpop.f32.mrb[0].mxu0
        %1191 = vdwg.mxu0
        %v1192 = vpack.c.bf16 %v1187, %v1187
        %1194 = vrot.lane.b32.xlu0 %v1077, 112
        %v1195 = vpop.permute.xlu0 %1194
        %1196 = vrot.lane.b32.xlu0 %v1078, 80
        %v1197 = vpop.permute.xlu0 %1196
        %v1199 = vsel %vm1082, %v1195, 0
        %v1202 = vsel %vm1082, %v1197, 0
        %1204 = vmatprep.subr.bf16.mxu0 0
        %1205 = vmatpush1.bf16.xpose.msra.mxu0 %v1202
        %1206 = vmatprep.subr.bf16.mxu0 0
        %1207 = vmatpush1.bf16.xpose.msra.mxu0 0
        %1208 = vmatprep.subr.bf16.mxu0 0
        %1209 = vmatpush1.bf16.xpose.msra.mxu0 0
        %1210 = vmatprep.subr.bf16.mxu0 0
        %1211 = vmatpush1.bf16.xpose.msra.mxu0 0
        %1212 = vmatprep.subr.bf16.mxu0 0
        %1213 = vmatpush1.bf16.xpose.msra.mxu0 0
        %1214 = vmatprep.subr.bf16.mxu0 0
        %1215 = vmatpush1.bf16.xpose.msra.mxu0 0
        %1216 = vmatprep.subr.bf16.mxu0 0
        %1217 = vmatpush1.bf16.xpose.msra.mxu0 0
        %1218 = vmatprep.subr.bf16.mxu0 0
        %1219 = vmatpush1.bf16.xpose.msra.mxu0 0
        %1220 = vmatprep.subr.bf16.mxu0 0
        %1221 = vmatpush1.bf16.xpose.msra.mxu0 0
        %1222 = vmatprep.subr.bf16.mxu0 0
        %1223 = vmatpush1.bf16.xpose.msra.mxu0 0
        %1224 = vmatprep.subr.bf16.mxu0 0
        %1225 = vmatpush1.bf16.xpose.msra.mxu0 0
        %1226 = vmatprep.subr.bf16.mxu0 0
        %1227 = vmatpush1.bf16.xpose.msra.mxu0 0
        %1228 = vmatprep.subr.bf16.mxu0 0
        %1229 = vmatpush1.bf16.xpose.msra.mxu0 0
        %1230 = vmatprep.subr.bf16.mxu0 0
        %1231 = vmatpush1.bf16.xpose.msra.mxu0 0
        %1232 = vmatprep.subr.bf16.mxu0 0
        %1233 = vmatpush1.bf16.xpose.msra.mxu0 0
        %1234 = vmatprep.subr.bf16.mxu0 0
        %1235 = vmatpush1.bf16.xpose.msra.mxu0 0
        %1236 = vmatprep.mubr.bf16.mxu0 0
        %1237 = vmatmul.mubr.bf16.gmra.mrb[0].mxu0 %v1199
        %v1238 = vpop.f32.mrb[0].mxu0
        %v1239 = vadd.f32 0.0, %v1238
        %v1240 = vpop.f32.mrb[0].mxu0
        %v1241 = vpop.f32.mrb[0].mxu0
        %v1242 = vpop.f32.mrb[0].mxu0
        %1243 = vdwg.mxu0
        %v1244 = vsel %vm983, %v1239, -1e+30
        %v1245 = vsel %vm1130, %v1244, -inf
        %1246 = vmax.xlane.f32.xlu0 %v1245
        %v1247 = vpop.xlane.xlu0 %1246
        %v1248 = vsub.f32 %v1244, %v1247
        %v1249 = vmul.f32 %v1248, 1.442695
        %v1250 = vpow.pop %v1249
        %v1251 = vsel %vm1130, %v1250, 0.0
        %1252 = vadd.xlane.f32.xlu0 %v1251
        %v1253 = vpop.xlane.xlu0 %1252
        %v1254 = vrcp.pop %v1253
        %v1255 = vmul.f32 %v1250, %v1254
        %v1256 = vpack.c.bf16 %v1255, %v1255
        %1257 = vrot.lane.b32.xlu0 %v1078, 48
        %v1258 = vpop.permute.xlu0 %1257
        %v1260 = vsel %vm1130, %v1256, 0
        %v1263 = vsel %vm1148, %v1258, 0
        %1265 = vmatprep.subr.bf16.mxu0 0
        %1266 = vmatpush1.bf16.msra.mxu0 %v1263
        %1267 = vmatprep.subr.bf16.mxu0 0
        %1268 = vmatpush1.bf16.msra.mxu0 0
        %1269 = vmatprep.subr.bf16.mxu0 0
        %1270 = vmatpush1.bf16.msra.mxu0 0
        %1271 = vmatprep.subr.bf16.mxu0 0
        %1272 = vmatpush1.bf16.msra.mxu0 0
        %1273 = vmatprep.subr.bf16.mxu0 0
        %1274 = vmatpush1.bf16.msra.mxu0 0
        %1275 = vmatprep.subr.bf16.mxu0 0
        %1276 = vmatpush1.bf16.msra.mxu0 0
        %1277 = vmatprep.subr.bf16.mxu0 0
        %1278 = vmatpush1.bf16.msra.mxu0 0
        %1279 = vmatprep.subr.bf16.mxu0 0
        %1280 = vmatpush1.bf16.msra.mxu0 0
        %1281 = vmatprep.subr.bf16.mxu0 0
        %1282 = vmatpush1.bf16.msra.mxu0 0
        %1283 = vmatprep.subr.bf16.mxu0 0
        %1284 = vmatpush1.bf16.msra.mxu0 0
        %1285 = vmatprep.subr.bf16.mxu0 0
        %1286 = vmatpush1.bf16.msra.mxu0 0
        %1287 = vmatprep.subr.bf16.mxu0 0
        %1288 = vmatpush1.bf16.msra.mxu0 0
        %1289 = vmatprep.subr.bf16.mxu0 0
        %1290 = vmatpush1.bf16.msra.mxu0 0
        %1291 = vmatprep.subr.bf16.mxu0 0
        %1292 = vmatpush1.bf16.msra.mxu0 0
        %1293 = vmatprep.subr.bf16.mxu0 0
        %1294 = vmatpush1.bf16.msra.mxu0 0
        %1295 = vmatprep.subr.bf16.mxu0 0
        %1296 = vmatpush1.bf16.msra.mxu0 0
        %1297 = vmatprep.mubr.bf16.mxu0 0
        %1298 = vmatmul.mubr.bf16.gmra.mrb[0].mxu0 %v1260
        %v1299 = vpop.f32.mrb[0].mxu0
        %v1300 = vadd.f32 0.0, %v1299
        %v1301 = vpop.f32.mrb[0].mxu0
        %v1302 = vpop.f32.mrb[0].mxu0
        %v1303 = vpop.f32.mrb[0].mxu0
        %1304 = vdwg.mxu0
        %v1305 = vpack.c.bf16 %v1300, %v1300
        %v1308 = vunpack.c.l.b16 %v1017
        %v1309 = vunpack.c.l.b16 %v1018
        %v1310 = vpack.c.b16 %v1309, %v1308
        %v1313 = vsel %vm1082, %v1305, 0
        %1315 = vmatprep.subr.bf16.mxu0 0
        %1316 = vmatpush1.bf16.msra.mxu0 %v1310
        %1317 = vmatprep.subr.bf16.mxu0 0
        %1318 = vmatpush1.bf16.msra.mxu0 0
        %1319 = vmatprep.subr.bf16.mxu0 0
        %1320 = vmatpush1.bf16.msra.mxu0 0
        %1321 = vmatprep.subr.bf16.mxu0 0
        %1322 = vmatpush1.bf16.msra.mxu0 0
        %1323 = vmatprep.subr.bf16.mxu0 0
        %1324 = vmatpush1.bf16.msra.mxu0 0
        %1325 = vmatprep.subr.bf16.mxu0 0
        %1326 = vmatpush1.bf16.msra.mxu0 0
        %1327 = vmatprep.subr.bf16.mxu0 0
        %1328 = vmatpush1.bf16.msra.mxu0 0
        %1329 = vmatprep.subr.bf16.mxu0 0
        %1330 = vmatpush1.bf16.msra.mxu0 0
        %1331 = vmatprep.subr.bf16.mxu0 0
        %1332 = vmatpush1.bf16.msra.mxu0 0
        %1333 = vmatprep.subr.bf16.mxu0 0
        %1334 = vmatpush1.bf16.msra.mxu0 0
        %1335 = vmatprep.subr.bf16.mxu0 0
        %1336 = vmatpush1.bf16.msra.mxu0 0
        %1337 = vmatprep.subr.bf16.mxu0 0
        %1338 = vmatpush1.bf16.msra.mxu0 0
        %1339 = vmatprep.subr.bf16.mxu0 0
        %1340 = vmatpush1.bf16.msra.mxu0 0
        %1341 = vmatprep.subr.bf16.mxu0 0
        %1342 = vmatpush1.bf16.msra.mxu0 0
        %1343 = vmatprep.subr.bf16.mxu0 0
        %1344 = vmatpush1.bf16.msra.mxu0 0
        %1345 = vmatprep.subr.bf16.mxu0 0
        %1346 = vmatpush1.bf16.msra.mxu0 0
        %1347 = vmatprep.mubr.bf16.mxu0 0
        %1348 = vmatmul.mubr.bf16.gmra.mrb[0].mxu0 %v1313
        %v1349 = vpop.f32.mrb[0].mxu0
        %v1350 = vadd.f32 0.0, %v1349
        %v1351 = vpop.f32.mrb[0].mxu0
        %v1352 = vpop.f32.mrb[0].mxu0
        %v1353 = vpop.f32.mrb[0].mxu0
        %1354 = vdwg.mxu0
        %v1357 = vunpack.c.l.b16 %v1015
        %v1358 = vunpack.c.l.b16 %v1016
        %v1359 = vpack.c.b16 %v1358, %v1357
        %v1362 = vsel %vm1082, %v1192, 0
        %1364 = vmatprep.subr.bf16.mxu0 0
        %1365 = vmatpush1.bf16.msra.mxu0 %v1359
        %1366 = vmatprep.subr.bf16.mxu0 0
        %1367 = vmatpush1.bf16.msra.mxu0 0
        %1368 = vmatprep.subr.bf16.mxu0 0
        %1369 = vmatpush1.bf16.msra.mxu0 0
        %1370 = vmatprep.subr.bf16.mxu0 0
        %1371 = vmatpush1.bf16.msra.mxu0 0
        %1372 = vmatprep.subr.bf16.mxu0 0
        %1373 = vmatpush1.bf16.msra.mxu0 0
        %1374 = vmatprep.subr.bf16.mxu0 0
        %1375 = vmatpush1.bf16.msra.mxu0 0
        %1376 = vmatprep.subr.bf16.mxu0 0
        %1377 = vmatpush1.bf16.msra.mxu0 0
        %1378 = vmatprep.subr.bf16.mxu0 0
        %1379 = vmatpush1.bf16.msra.mxu0 0
        %1380 = vmatprep.subr.bf16.mxu0 0
        %1381 = vmatpush1.bf16.msra.mxu0 0
        %1382 = vmatprep.subr.bf16.mxu0 0
        %1383 = vmatpush1.bf16.msra.mxu0 0
        %1384 = vmatprep.subr.bf16.mxu0 0
        %1385 = vmatpush1.bf16.msra.mxu0 0
        %1386 = vmatprep.subr.bf16.mxu0 0
        %1387 = vmatpush1.bf16.msra.mxu0 0
        %1388 = vmatprep.subr.bf16.mxu0 0
        %1389 = vmatpush1.bf16.msra.mxu0 0
        %1390 = vmatprep.subr.bf16.mxu0 0
        %1391 = vmatpush1.bf16.msra.mxu0 0
        %1392 = vmatprep.subr.bf16.mxu0 0
        %1393 = vmatpush1.bf16.msra.mxu0 0
        %1394 = vmatprep.subr.bf16.mxu0 0
        %1395 = vmatpush1.bf16.msra.mxu0 0
        %1396 = vmatprep.mubr.bf16.mxu0 0
        %1397 = vmatmul.mubr.bf16.gmra.mrb[0].mxu0 %v1362
        %v1398 = vpop.f32.mrb[0].mxu0
        %v1399 = vadd.f32 %v1350, %v1398
        %v1400 = vpop.f32.mrb[0].mxu0
        %v1401 = vpop.f32.mrb[0].mxu0
        %v1402 = vpop.f32.mrb[0].mxu0
        %1403 = vdwg.mxu0
        %v1405 = vlaneseq
        %v1406 = vshrl.u32 %v1405, 7
        %v1407 = vsub.s32 0, %v1406
        %v1408 = vrot.slane %v1019, %v1407
        %v1410 = vadd.f32 %v1399, %v1408
        %v1411 = vadd.f32 %v976, %v1410
        %v1412 = vsel %vm986, %v1411, 0.0
        %1413 = vadd.xlane.f32.xlu0 %v1412
        %v1414 = vpop.xlane.xlu0 %1413
        %v1415 = vmul.f32 %v1414, %v990
        %v1416 = vsub.f32 %v1411, %v1415
        %v1417 = vmul.f32 %v1416, %v1416
        %v1418 = vsel %vm986, %v1417, 0.0
        %1419 = vadd.xlane.f32.xlu0 %v1418
        %v1420 = vpop.xlane.xlu0 %1419
        %v1421 = vmul.f32 %v1420, %v990
        %v1422 = vadd.f32 %v1421, 1e-05
        %v1423 = vrsqrt.pop %v1422
        %v1424 = vmul.f32 %v1416, %v1423
        %v1425 = vlaneseq
        %v1426 = vshrl.u32 %v1425, 7
        %v1427 = vsub.s32 1, %v1426
        %v1428 = vrot.slane %v984, %v1427
        %v1429 = vmul.f32 %v1424, %v1428
        %v1430 = vlaneseq
        %v1431 = vshrl.u32 %v1430, 7
        %v1432 = vsub.s32 1, %v1431
        %v1433 = vrot.slane %v985, %v1432
        %v1434 = vadd.f32 %v1429, %v1433
        %v1435 = vld [vmem:[%s904] sm:$0xf]
        %v1436 = vld [vmem:[%s904 + $0x4] sm:$0xf]
        %v1437 = vld [vmem:[%s904 + $0x8] sm:$0xf]
        %v1438 = vld [vmem:[%s904 + $0xc] sm:$0xf]
        %v1439 = vld [vmem:[%s749] sm:$0xf]
        %v1440 = vld [vmem:[%s749 + $0x4] sm:$0xf]
        %v1441 = vld [vmem:[%s749 + $0x8] sm:$0xf]
        %v1442 = vld [vmem:[%s749 + $0xc] sm:$0xf]
        %v1443 = vld [vmem:[%s907] sm:$0x1]
        %v1444 = vpack.c.bf16 %v1434, %v1434
        %v1449 = vunpack.c.l.b16 %v1435
        %v1450 = vunpack.c.l.b16 %v1436
        %v1451 = vunpack.c.l.b16 %v1437
        %v1452 = vunpack.c.l.b16 %v1438
        %v1453 = vpack.c.b16 %v1450, %v1449
        %v1454 = vpack.c.b16 %v1452, %v1451
        %v1458 = vsel %vm986, %v1444, 0
        %1460 = vmatprep.subr.bf16.mxu0 0
        %1461 = vmatpush1.bf16.msra.mxu0 %v1453
        %1462 = vmatprep.subr.bf16.mxu0 0
        %1463 = vmatpush1.bf16.msra.mxu0 %v1454
        %1464 = vmatprep.subr.bf16.mxu0 0
        %1465 = vmatpush1.bf16.msra.mxu0 0
        %1466 = vmatprep.subr.bf16.mxu0 0
        %1467 = vmatpush1.bf16.msra.mxu0 0
        %1468 = vmatprep.subr.bf16.mxu0 0
        %1469 = vmatpush1.bf16.msra.mxu0 0
        %1470 = vmatprep.subr.bf16.mxu0 0
        %1471 = vmatpush1.bf16.msra.mxu0 0
        %1472 = vmatprep.subr.bf16.mxu0 0
        %1473 = vmatpush1.bf16.msra.mxu0 0
        %1474 = vmatprep.subr.bf16.mxu0 0
        %1475 = vmatpush1.bf16.msra.mxu0 0
        %1476 = vmatprep.subr.bf16.mxu0 0
        %1477 = vmatpush1.bf16.msra.mxu0 0
        %1478 = vmatprep.subr.bf16.mxu0 0
        %1479 = vmatpush1.bf16.msra.mxu0 0
        %1480 = vmatprep.subr.bf16.mxu0 0
        %1481 = vmatpush1.bf16.msra.mxu0 0
        %1482 = vmatprep.subr.bf16.mxu0 0
        %1483 = vmatpush1.bf16.msra.mxu0 0
        %1484 = vmatprep.subr.bf16.mxu0 0
        %1485 = vmatpush1.bf16.msra.mxu0 0
        %1486 = vmatprep.subr.bf16.mxu0 0
        %1487 = vmatpush1.bf16.msra.mxu0 0
        %1488 = vmatprep.subr.bf16.mxu0 0
        %1489 = vmatpush1.bf16.msra.mxu0 0
        %1490 = vmatprep.subr.bf16.mxu0 0
        %1491 = vmatpush1.bf16.msra.mxu0 0
        %1492 = vmatprep.mubr.bf16.mxu0 0
        %1493 = vmatmul.mubr.bf16.gmra.mrb[0].mxu0 %v1458
        %v1494 = vpop.f32.mrb[0].mxu0
        %v1495 = vadd.f32 0.0, %v1494
        %v1496 = vpop.f32.mrb[0].mxu0
        %v1497 = vpop.f32.mrb[0].mxu0
        %v1498 = vpop.f32.mrb[0].mxu0
        %1499 = vdwg.mxu0
        %v1500 = vmul.f32 %v1495, 0.17677669
        %v1501 = vpack.c.bf16 %v978, %v977
        %1502 = vrot.lane.b32.xlu0 %v1453, 96
        %v1503 = vpop.permute.xlu0 %1502
        %1504 = vrot.lane.b32.xlu0 %v1454, 96
        %v1505 = vpop.permute.xlu0 %1504
        %v1509 = vsel %vm986, %v1501, 0
        %1511 = vmatprep.subr.bf16.mxu0 0
        %1512 = vmatpush1.bf16.msra.mxu0 %v1503
        %1513 = vmatprep.subr.bf16.mxu0 0
        %1514 = vmatpush1.bf16.msra.mxu0 %v1505
        %1515 = vmatprep.subr.bf16.mxu0 0
        %1516 = vmatpush1.bf16.msra.mxu0 0
        %1517 = vmatprep.subr.bf16.mxu0 0
        %1518 = vmatpush1.bf16.msra.mxu0 0
        %1519 = vmatprep.subr.bf16.mxu0 0
        %1520 = vmatpush1.bf16.msra.mxu0 0
        %1521 = vmatprep.subr.bf16.mxu0 0
        %1522 = vmatpush1.bf16.msra.mxu0 0
        %1523 = vmatprep.subr.bf16.mxu0 0
        %1524 = vmatpush1.bf16.msra.mxu0 0
        %1525 = vmatprep.subr.bf16.mxu0 0
        %1526 = vmatpush1.bf16.msra.mxu0 0
        %1527 = vmatprep.subr.bf16.mxu0 0
        %1528 = vmatpush1.bf16.msra.mxu0 0
        %1529 = vmatprep.subr.bf16.mxu0 0
        %1530 = vmatpush1.bf16.msra.mxu0 0
        %1531 = vmatprep.subr.bf16.mxu0 0
        %1532 = vmatpush1.bf16.msra.mxu0 0
        %1533 = vmatprep.subr.bf16.mxu0 0
        %1534 = vmatpush1.bf16.msra.mxu0 0
        %1535 = vmatprep.subr.bf16.mxu0 0
        %1536 = vmatpush1.bf16.msra.mxu0 0
        %1537 = vmatprep.subr.bf16.mxu0 0
        %1538 = vmatpush1.bf16.msra.mxu0 0
        %1539 = vmatprep.subr.bf16.mxu0 0
        %1540 = vmatpush1.bf16.msra.mxu0 0
        %1541 = vmatprep.subr.bf16.mxu0 0
        %1542 = vmatpush1.bf16.msra.mxu0 0
        %1543 = vmatprep.mubr.bf16.mxu0 0
        %1544 = vmatmul.mubr.bf16.gmra.mrb[0].mxu0 %v1509
        %v1545 = vpop.f32.mrb[0].mxu0
        %v1546 = vadd.f32 0.0, %v1545
        %v1547 = vpop.f32.mrb[0].mxu0
        %v1548 = vpop.f32.mrb[0].mxu0
        %v1549 = vadd.f32 0.0, %v1548
        %v1550 = vpop.f32.mrb[0].mxu0
        %1551 = vdwg.mxu0
        %v1552 = vpack.c.bf16 %v1500, %v1500
        %v1553 = vpack.c.bf16 %v1549, %v1546
        %v1555 = vsel %vm1082, %v1552, 0
        %v1558 = vsel %vm1082, %v1553, 0
        %1560 = vmatprep.subr.bf16.mxu0 0
        %1561 = vmatpush1.bf16.xpose.msra.mxu0 %v1558
        %1562 = vmatprep.subr.bf16.mxu0 0
        %1563 = vmatpush1.bf16.xpose.msra.mxu0 0
        %1564 = vmatprep.subr.bf16.mxu0 0
        %1565 = vmatpush1.bf16.xpose.msra.mxu0 0
        %1566 = vmatprep.subr.bf16.mxu0 0
        %1567 = vmatpush1.bf16.xpose.msra.mxu0 0
        %1568 = vmatprep.subr.bf16.mxu0 0
        %1569 = vmatpush1.bf16.xpose.msra.mxu0 0
        %1570 = vmatprep.subr.bf16.mxu0 0
        %1571 = vmatpush1.bf16.xpose.msra.mxu0 0
        %1572 = vmatprep.subr.bf16.mxu0 0
        %1573 = vmatpush1.bf16.xpose.msra.mxu0 0
        %1574 = vmatprep.subr.bf16.mxu0 0
        %1575 = vmatpush1.bf16.xpose.msra.mxu0 0
        %1576 = vmatprep.subr.bf16.mxu0 0
        %1577 = vmatpush1.bf16.xpose.msra.mxu0 0
        %1578 = vmatprep.subr.bf16.mxu0 0
        %1579 = vmatpush1.bf16.xpose.msra.mxu0 0
        %1580 = vmatprep.subr.bf16.mxu0 0
        %1581 = vmatpush1.bf16.xpose.msra.mxu0 0
        %1582 = vmatprep.subr.bf16.mxu0 0
        %1583 = vmatpush1.bf16.xpose.msra.mxu0 0
        %1584 = vmatprep.subr.bf16.mxu0 0
        %1585 = vmatpush1.bf16.xpose.msra.mxu0 0
        %1586 = vmatprep.subr.bf16.mxu0 0
        %1587 = vmatpush1.bf16.xpose.msra.mxu0 0
        %1588 = vmatprep.subr.bf16.mxu0 0
        %1589 = vmatpush1.bf16.xpose.msra.mxu0 0
        %1590 = vmatprep.subr.bf16.mxu0 0
        %1591 = vmatpush1.bf16.xpose.msra.mxu0 0
        %1592 = vmatprep.mubr.bf16.mxu0 0
        %1593 = vmatmul.mubr.bf16.gmra.mrb[0].mxu0 %v1555
        %v1594 = vpop.f32.mrb[0].mxu0
        %v1595 = vadd.f32 0.0, %v1594
        %v1596 = vpop.f32.mrb[0].mxu0
        %v1597 = vpop.f32.mrb[0].mxu0
        %v1598 = vpop.f32.mrb[0].mxu0
        %1599 = vdwg.mxu0
        %v1600 = vsel %vm1082, %v1595, -inf
        %1601 = vmax.xlane.f32.xlu0 %v1600
        %v1602 = vpop.xlane.xlu0 %1601
        %v1603 = vsub.f32 %v1595, %v1602
        %v1604 = vmul.f32 %v1603, 1.442695
        %v1605 = vpow.pop %v1604
        %v1606 = vsel %vm1082, %v1605, 0.0
        %1607 = vadd.xlane.f32.xlu0 %v1606
        %v1608 = vpop.xlane.xlu0 %1607
        %v1609 = vrcp.pop %v1608
        %v1610 = vmul.f32 %v1605, %v1609
        %v1611 = vpack.c.bf16 %v1610, %v1610
        %1613 = vrot.lane.b32.xlu0 %v1553, 96
        %v1614 = vpop.permute.xlu0 %1613
        %v1617 = vsel %vm1082, %v1611, 0
        %1619 = vmatprep.subr.bf16.mxu0 0
        %1620 = vmatpush1.bf16.msra.mxu0 %v1614
        %1621 = vmatprep.subr.bf16.mxu0 0
        %1622 = vmatpush1.bf16.msra.mxu0 0
        %1623 = vmatprep.subr.bf16.mxu0 0
        %1624 = vmatpush1.bf16.msra.mxu0 0
        %1625 = vmatprep.subr.bf16.mxu0 0
        %1626 = vmatpush1.bf16.msra.mxu0 0
        %1627 = vmatprep.subr.bf16.mxu0 0
        %1628 = vmatpush1.bf16.msra.mxu0 0
        %1629 = vmatprep.subr.bf16.mxu0 0
        %1630 = vmatpush1.bf16.msra.mxu0 0
        %1631 = vmatprep.subr.bf16.mxu0 0
        %1632 = vmatpush1.bf16.msra.mxu0 0
        %1633 = vmatprep.subr.bf16.mxu0 0
        %1634 = vmatpush1.bf16.msra.mxu0 0
        %1635 = vmatprep.subr.bf16.mxu0 0
        %1636 = vmatpush1.bf16.msra.mxu0 0
        %1637 = vmatprep.subr.bf16.mxu0 0
        %1638 = vmatpush1.bf16.msra.mxu0 0
        %1639 = vmatprep.subr.bf16.mxu0 0
        %1640 = vmatpush1.bf16.msra.mxu0 0
        %1641 = vmatprep.subr.bf16.mxu0 0
        %1642 = vmatpush1.bf16.msra.mxu0 0
        %1643 = vmatprep.subr.bf16.mxu0 0
        %1644 = vmatpush1.bf16.msra.mxu0 0
        %1645 = vmatprep.subr.bf16.mxu0 0
        %1646 = vmatpush1.bf16.msra.mxu0 0
        %1647 = vmatprep.subr.bf16.mxu0 0
        %1648 = vmatpush1.bf16.msra.mxu0 0
        %1649 = vmatprep.subr.bf16.mxu0 0
        %1650 = vmatpush1.bf16.msra.mxu0 0
        %1651 = vmatprep.mubr.bf16.mxu0 0
        %1652 = vmatmul.mubr.bf16.gmra.mrb[0].mxu0 %v1617
        %v1653 = vpop.f32.mrb[0].mxu0
        %v1654 = vadd.f32 0.0, %v1653
        %v1655 = vpop.f32.mrb[0].mxu0
        %v1656 = vpop.f32.mrb[0].mxu0
        %v1657 = vpop.f32.mrb[0].mxu0
        %1658 = vdwg.mxu0
        %v1659 = vpack.c.bf16 %v1654, %v1654
        %1661 = vrot.lane.b32.xlu0 %v1552, 112
        %v1662 = vpop.permute.xlu0 %1661
        %1663 = vrot.lane.b32.xlu0 %v1553, 112
        %v1664 = vpop.permute.xlu0 %1663
        %v1666 = vsel %vm1082, %v1662, 0
        %v1669 = vsel %vm1082, %v1664, 0
        %1671 = vmatprep.subr.bf16.mxu0 0
        %1672 = vmatpush1.bf16.xpose.msra.mxu0 %v1669
        %1673 = vmatprep.subr.bf16.mxu0 0
        %1674 = vmatpush1.bf16.xpose.msra.mxu0 0
        %1675 = vmatprep.subr.bf16.mxu0 0
        %1676 = vmatpush1.bf16.xpose.msra.mxu0 0
        %1677 = vmatprep.subr.bf16.mxu0 0
        %1678 = vmatpush1.bf16.xpose.msra.mxu0 0
        %1679 = vmatprep.subr.bf16.mxu0 0
        %1680 = vmatpush1.bf16.xpose.msra.mxu0 0
        %1681 = vmatprep.subr.bf16.mxu0 0
        %1682 = vmatpush1.bf16.xpose.msra.mxu0 0
        %1683 = vmatprep.subr.bf16.mxu0 0
        %1684 = vmatpush1.bf16.xpose.msra.mxu0 0
        %1685 = vmatprep.subr.bf16.mxu0 0
        %1686 = vmatpush1.bf16.xpose.msra.mxu0 0
        %1687 = vmatprep.subr.bf16.mxu0 0
        %1688 = vmatpush1.bf16.xpose.msra.mxu0 0
        %1689 = vmatprep.subr.bf16.mxu0 0
        %1690 = vmatpush1.bf16.xpose.msra.mxu0 0
        %1691 = vmatprep.subr.bf16.mxu0 0
        %1692 = vmatpush1.bf16.xpose.msra.mxu0 0
        %1693 = vmatprep.subr.bf16.mxu0 0
        %1694 = vmatpush1.bf16.xpose.msra.mxu0 0
        %1695 = vmatprep.subr.bf16.mxu0 0
        %1696 = vmatpush1.bf16.xpose.msra.mxu0 0
        %1697 = vmatprep.subr.bf16.mxu0 0
        %1698 = vmatpush1.bf16.xpose.msra.mxu0 0
        %1699 = vmatprep.subr.bf16.mxu0 0
        %1700 = vmatpush1.bf16.xpose.msra.mxu0 0
        %1701 = vmatprep.subr.bf16.mxu0 0
        %1702 = vmatpush1.bf16.xpose.msra.mxu0 0
        %1703 = vmatprep.mubr.bf16.mxu0 0
        %1704 = vmatmul.mubr.bf16.gmra.mrb[0].mxu0 %v1666
        %v1705 = vpop.f32.mrb[0].mxu0
        %v1706 = vadd.f32 0.0, %v1705
        %v1707 = vpop.f32.mrb[0].mxu0
        %v1708 = vpop.f32.mrb[0].mxu0
        %v1709 = vpop.f32.mrb[0].mxu0
        %1710 = vdwg.mxu0
        %v1711 = vsel %vm1082, %v1706, -inf
        %1712 = vmax.xlane.f32.xlu0 %v1711
        %v1713 = vpop.xlane.xlu0 %1712
        %v1714 = vsub.f32 %v1706, %v1713
        %v1715 = vmul.f32 %v1714, 1.442695
        %v1716 = vpow.pop %v1715
        %v1717 = vsel %vm1082, %v1716, 0.0
        %1718 = vadd.xlane.f32.xlu0 %v1717
        %v1719 = vpop.xlane.xlu0 %1718
        %v1720 = vrcp.pop %v1719
        %v1721 = vmul.f32 %v1716, %v1720
        %v1722 = vpack.c.bf16 %v1721, %v1721
        %1723 = vrot.lane.b32.xlu0 %v1553, 80
        %v1724 = vpop.permute.xlu0 %1723
        %v1727 = vsel %vm1082, %v1722, 0
        %1729 = vmatprep.subr.bf16.mxu0 0
        %1730 = vmatpush1.bf16.msra.mxu0 %v1724
        %1731 = vmatprep.subr.bf16.mxu0 0
        %1732 = vmatpush1.bf16.msra.mxu0 0
        %1733 = vmatprep.subr.bf16.mxu0 0
        %1734 = vmatpush1.bf16.msra.mxu0 0
        %1735 = vmatprep.subr.bf16.mxu0 0
        %1736 = vmatpush1.bf16.msra.mxu0 0
        %1737 = vmatprep.subr.bf16.mxu0 0
        %1738 = vmatpush1.bf16.msra.mxu0 0
        %1739 = vmatprep.subr.bf16.mxu0 0
        %1740 = vmatpush1.bf16.msra.mxu0 0
        %1741 = vmatprep.subr.bf16.mxu0 0
        %1742 = vmatpush1.bf16.msra.mxu0 0
        %1743 = vmatprep.subr.bf16.mxu0 0
        %1744 = vmatpush1.bf16.msra.mxu0 0
        %1745 = vmatprep.subr.bf16.mxu0 0
        %1746 = vmatpush1.bf16.msra.mxu0 0
        %1747 = vmatprep.subr.bf16.mxu0 0
        %1748 = vmatpush1.bf16.msra.mxu0 0
        %1749 = vmatprep.subr.bf16.mxu0 0
        %1750 = vmatpush1.bf16.msra.mxu0 0
        %1751 = vmatprep.subr.bf16.mxu0 0
        %1752 = vmatpush1.bf16.msra.mxu0 0
        %1753 = vmatprep.subr.bf16.mxu0 0
        %1754 = vmatpush1.bf16.msra.mxu0 0
        %1755 = vmatprep.subr.bf16.mxu0 0
        %1756 = vmatpush1.bf16.msra.mxu0 0
        %1757 = vmatprep.subr.bf16.mxu0 0
        %1758 = vmatpush1.bf16.msra.mxu0 0
        %1759 = vmatprep.subr.bf16.mxu0 0
        %1760 = vmatpush1.bf16.msra.mxu0 0
        %1761 = vmatprep.mubr.bf16.mxu0 0
        %1762 = vmatmul.mubr.bf16.gmra.mrb[0].mxu0 %v1727
        %v1763 = vpop.f32.mrb[0].mxu0
        %v1764 = vadd.f32 0.0, %v1763
        %v1765 = vpop.f32.mrb[0].mxu0
        %v1766 = vpop.f32.mrb[0].mxu0
        %v1767 = vpop.f32.mrb[0].mxu0
        %1768 = vdwg.mxu0
        %v1769 = vpack.c.bf16 %v1764, %v1764
        %v1772 = vunpack.c.l.b16 %v1441
        %v1773 = vunpack.c.l.b16 %v1442
        %v1774 = vpack.c.b16 %v1773, %v1772
        %v1777 = vsel %vm1082, %v1769, 0
        %1779 = vmatprep.subr.bf16.mxu0 0
        %1780 = vmatpush1.bf16.msra.mxu0 %v1774
        %1781 = vmatprep.subr.bf16.mxu0 0
        %1782 = vmatpush1.bf16.msra.mxu0 0
        %1783 = vmatprep.subr.bf16.mxu0 0
        %1784 = vmatpush1.bf16.msra.mxu0 0
        %1785 = vmatprep.subr.bf16.mxu0 0
        %1786 = vmatpush1.bf16.msra.mxu0 0
        %1787 = vmatprep.subr.bf16.mxu0 0
        %1788 = vmatpush1.bf16.msra.mxu0 0
        %1789 = vmatprep.subr.bf16.mxu0 0
        %1790 = vmatpush1.bf16.msra.mxu0 0
        %1791 = vmatprep.subr.bf16.mxu0 0
        %1792 = vmatpush1.bf16.msra.mxu0 0
        %1793 = vmatprep.subr.bf16.mxu0 0
        %1794 = vmatpush1.bf16.msra.mxu0 0
        %1795 = vmatprep.subr.bf16.mxu0 0
        %1796 = vmatpush1.bf16.msra.mxu0 0
        %1797 = vmatprep.subr.bf16.mxu0 0
        %1798 = vmatpush1.bf16.msra.mxu0 0
        %1799 = vmatprep.subr.bf16.mxu0 0
        %1800 = vmatpush1.bf16.msra.mxu0 0
        %1801 = vmatprep.subr.bf16.mxu0 0
        %1802 = vmatpush1.bf16.msra.mxu0 0
        %1803 = vmatprep.subr.bf16.mxu0 0
        %1804 = vmatpush1.bf16.msra.mxu0 0
        %1805 = vmatprep.subr.bf16.mxu0 0
        %1806 = vmatpush1.bf16.msra.mxu0 0
        %1807 = vmatprep.subr.bf16.mxu0 0
        %1808 = vmatpush1.bf16.msra.mxu0 0
        %1809 = vmatprep.subr.bf16.mxu0 0
        %1810 = vmatpush1.bf16.msra.mxu0 0
        %1811 = vmatprep.mubr.bf16.mxu0 0
        %1812 = vmatmul.mubr.bf16.gmra.mrb[0].mxu0 %v1777
        %v1813 = vpop.f32.mrb[0].mxu0
        %v1814 = vadd.f32 0.0, %v1813
        %v1815 = vpop.f32.mrb[0].mxu0
        %v1816 = vpop.f32.mrb[0].mxu0
        %v1817 = vpop.f32.mrb[0].mxu0
        %1818 = vdwg.mxu0
        %v1821 = vunpack.c.l.b16 %v1439
        %v1822 = vunpack.c.l.b16 %v1440
        %v1823 = vpack.c.b16 %v1822, %v1821
        %v1826 = vsel %vm1082, %v1659, 0
        %1828 = vmatprep.subr.bf16.mxu0 0
        %1829 = vmatpush1.bf16.msra.mxu0 %v1823
        %1830 = vmatprep.subr.bf16.mxu0 0
        %1831 = vmatpush1.bf16.msra.mxu0 0
        %1832 = vmatprep.subr.bf16.mxu0 0
        %1833 = vmatpush1.bf16.msra.mxu0 0
        %1834 = vmatprep.subr.bf16.mxu0 0
        %1835 = vmatpush1.bf16.msra.mxu0 0
        %1836 = vmatprep.subr.bf16.mxu0 0
        %1837 = vmatpush1.bf16.msra.mxu0 0
        %1838 = vmatprep.subr.bf16.mxu0 0
        %1839 = vmatpush1.bf16.msra.mxu0 0
        %1840 = vmatprep.subr.bf16.mxu0 0
        %1841 = vmatpush1.bf16.msra.mxu0 0
        %1842 = vmatprep.subr.bf16.mxu0 0
        %1843 = vmatpush1.bf16.msra.mxu0 0
        %1844 = vmatprep.subr.bf16.mxu0 0
        %1845 = vmatpush1.bf16.msra.mxu0 0
        %1846 = vmatprep.subr.bf16.mxu0 0
        %1847 = vmatpush1.bf16.msra.mxu0 0
        %1848 = vmatprep.subr.bf16.mxu0 0
        %1849 = vmatpush1.bf16.msra.mxu0 0
        %1850 = vmatprep.subr.bf16.mxu0 0
        %1851 = vmatpush1.bf16.msra.mxu0 0
        %1852 = vmatprep.subr.bf16.mxu0 0
        %1853 = vmatpush1.bf16.msra.mxu0 0
        %1854 = vmatprep.subr.bf16.mxu0 0
        %1855 = vmatpush1.bf16.msra.mxu0 0
        %1856 = vmatprep.subr.bf16.mxu0 0
        %1857 = vmatpush1.bf16.msra.mxu0 0
        %1858 = vmatprep.subr.bf16.mxu0 0
        %1859 = vmatpush1.bf16.msra.mxu0 0
        %1860 = vmatprep.mubr.bf16.mxu0 0
        %1861 = vmatmul.mubr.bf16.gmra.mrb[0].mxu0 %v1826
        %v1862 = vpop.f32.mrb[0].mxu0
        %v1863 = vadd.f32 %v1814, %v1862
        %v1864 = vpop.f32.mrb[0].mxu0
        %v1865 = vpop.f32.mrb[0].mxu0
        %v1866 = vpop.f32.mrb[0].mxu0
        %1867 = vdwg.mxu0
        %v1869 = vlaneseq
        %v1870 = vshrl.u32 %v1869, 7
        %v1871 = vsub.s32 0, %v1870
        %v1872 = vrot.slane %v1443, %v1871
        %v1874 = vadd.f32 %v1863, %v1872
        %v1875 = vadd.f32 %v1411, %v1874
        %v1876 = vsel %vm986, %v1875, 0.0
        %1877 = vadd.xlane.f32.xlu0 %v1876
        %v1878 = vpop.xlane.xlu0 %1877
        %v1879 = vmul.f32 %v1878, %v990
        %v1880 = vsub.f32 %v1875, %v1879
        %v1881 = vmul.f32 %v1880, %v1880
        %v1882 = vsel %vm986, %v1881, 0.0
        %1883 = vadd.xlane.f32.xlu0 %v1882
        %v1884 = vpop.xlane.xlu0 %1883
        %v1885 = vmul.f32 %v1884, %v990
        %v1886 = vadd.f32 %v1885, 1e-05
        %v1887 = vrsqrt.pop %v1886
        %v1888 = vmul.f32 %v1880, %v1887
        %v1889 = vlaneseq
        %v1890 = vshrl.u32 %v1889, 7
        %v1891 = vsub.s32 2, %v1890
        %v1892 = vrot.slane %v984, %v1891
        %v1893 = vmul.f32 %v1888, %v1892
        %v1894 = vlaneseq
        %v1895 = vshrl.u32 %v1894, 7
        %v1896 = vsub.s32 2, %v1895
        %v1897 = vrot.slane %v985, %v1896
        %v1898 = vadd.f32 %v1893, %v1897
        %v1899 = vpack.c.bf16 %v1898, %v1898
        %v1900 = vld [vmem:[%s758] sm:$0xf]
        %v1901 = vld [vmem:[%s758 + $0x4] sm:$0xf]
        %v1902 = vld [vmem:[%s758 + $0x8] sm:$0xf]
        %v1903 = vld [vmem:[%s758 + $0xc] sm:$0xf]
        %v1904 = vld [vmem:[%s910] sm:$0x1]
        %v1906 = vlaneseq
        %v1907 = vshrl.u32 %v1906, 7
        %v1908 = vsub.s32 0, %v1907
        %v1909 = vrot.slane %v1904, %v1908
        %v1915 = vunpack.c.l.b16 %v1900
        %v1916 = vunpack.c.l.b16 %v1901
        %v1917 = vunpack.c.l.b16 %v1902
        %v1918 = vunpack.c.l.b16 %v1903
        %v1919 = vpack.c.b16 %v1916, %v1915
        %v1920 = vpack.c.b16 %v1918, %v1917
        %v1924 = vsel %vm986, %v1899, 0
        %1926 = vmatprep.subr.bf16.mxu0 0
        %1927 = vmatpush1.bf16.msra.mxu0 %v1919
        %1928 = vmatprep.subr.bf16.mxu0 0
        %1929 = vmatpush1.bf16.msra.mxu0 %v1920
        %1930 = vmatprep.subr.bf16.mxu0 0
        %1931 = vmatpush1.bf16.msra.mxu0 0
        %1932 = vmatprep.subr.bf16.mxu0 0
        %1933 = vmatpush1.bf16.msra.mxu0 0
        %1934 = vmatprep.subr.bf16.mxu0 0
        %1935 = vmatpush1.bf16.msra.mxu0 0
        %1936 = vmatprep.subr.bf16.mxu0 0
        %1937 = vmatpush1.bf16.msra.mxu0 0
        %1938 = vmatprep.subr.bf16.mxu0 0
        %1939 = vmatpush1.bf16.msra.mxu0 0
        %1940 = vmatprep.subr.bf16.mxu0 0
        %1941 = vmatpush1.bf16.msra.mxu0 0
        %1942 = vmatprep.subr.bf16.mxu0 0
        %1943 = vmatpush1.bf16.msra.mxu0 0
        %1944 = vmatprep.subr.bf16.mxu0 0
        %1945 = vmatpush1.bf16.msra.mxu0 0
        %1946 = vmatprep.subr.bf16.mxu0 0
        %1947 = vmatpush1.bf16.msra.mxu0 0
        %1948 = vmatprep.subr.bf16.mxu0 0
        %1949 = vmatpush1.bf16.msra.mxu0 0
        %1950 = vmatprep.subr.bf16.mxu0 0
        %1951 = vmatpush1.bf16.msra.mxu0 0
        %1952 = vmatprep.subr.bf16.mxu0 0
        %1953 = vmatpush1.bf16.msra.mxu0 0
        %1954 = vmatprep.subr.bf16.mxu0 0
        %1955 = vmatpush1.bf16.msra.mxu0 0
        %1956 = vmatprep.subr.bf16.mxu0 0
        %1957 = vmatpush1.bf16.msra.mxu0 0
        %1958 = vmatprep.mubr.bf16.mxu0 0
        %1959 = vmatmul.mubr.bf16.gmra.mrb[0].mxu0 %v1924
        %v1960 = vpop.f32.mrb[0].mxu0
        %v1961 = vadd.f32 %v1909, %v1960
        %v1962 = vpop.f32.mrb[0].mxu0
        %v1963 = vpop.f32.mrb[0].mxu0
        %v1964 = vpop.f32.mrb[0].mxu0
        %1965 = vdwg.mxu0
        %vm1966 = vcmp.gt.f32.partialorder %v1961, 0.0
        %v1967 = vmul.f32 %v1961, 0.01
        %v1968 = vsel %vm1966, %v1961, %v1967
        %v1969 = vpack.c.bf16 %v1968, %v1968
        %v1970 = vld [vmem:[%s915] sm:$0xf]
        %v1971 = vld [vmem:[%s915 + $0x4] sm:$0xf]
        %v1972 = vld [vmem:[%s915 + $0x8] sm:$0xf]
        %v1973 = vld [vmem:[%s915 + $0xc] sm:$0xf]
        %v1974 = vld [vmem:[%s915 + $0x10] sm:$0xf]
        %v1975 = vld [vmem:[%s915 + $0x14] sm:$0xf]
        %v1976 = vld [vmem:[%s915 + $0x18] sm:$0xf]
        %v1977 = vld [vmem:[%s915 + $0x1c] sm:$0xf]
        %v1978 = vld [vmem:[%s918] sm:$0x1]
        %v1980 = vlaneseq
        %v1981 = vshrl.u32 %v1980, 7
        %v1982 = vsub.s32 0, %v1981
        %v1983 = vrot.slane %v1978, %v1982
        %v1993 = vunpack.c.l.b16 %v1970
        %v1994 = vunpack.c.l.b16 %v1971
        %v1995 = vunpack.c.l.b16 %v1972
        %v1996 = vunpack.c.l.b16 %v1973
        %v1997 = vunpack.c.l.b16 %v1974
        %v1998 = vunpack.c.l.b16 %v1975
        %v1999 = vunpack.c.l.b16 %v1976
        %v2000 = vunpack.c.l.b16 %v1977
        %v2001 = vpack.c.b16 %v1994, %v1993
        %v2002 = vpack.c.b16 %v1996, %v1995
        %v2003 = vpack.c.b16 %v1998, %v1997
        %v2004 = vpack.c.b16 %v2000, %v1999
        %vm2009 = vcmask 523264
        %v2011 = vsel %vm2009, %v1969, 0
        %2013 = vmatprep.subr.bf16.mxu0 0
        %2014 = vmatpush1.bf16.msra.mxu0 %v2001
        %2015 = vmatprep.subr.bf16.mxu0 0
        %2016 = vmatpush1.bf16.msra.mxu0 %v2002
        %2017 = vmatprep.subr.bf16.mxu0 0
        %2018 = vmatpush1.bf16.msra.mxu0 %v2003
        %2019 = vmatprep.subr.bf16.mxu0 0
        %2020 = vmatpush1.bf16.msra.mxu0 %v2004
        %2021 = vmatprep.subr.bf16.mxu0 0
        %2022 = vmatpush1.bf16.msra.mxu0 0
        %2023 = vmatprep.subr.bf16.mxu0 0
        %2024 = vmatpush1.bf16.msra.mxu0 0
        %2025 = vmatprep.subr.bf16.mxu0 0
        %2026 = vmatpush1.bf16.msra.mxu0 0
        %2027 = vmatprep.subr.bf16.mxu0 0
        %2028 = vmatpush1.bf16.msra.mxu0 0
        %2029 = vmatprep.subr.bf16.mxu0 0
        %2030 = vmatpush1.bf16.msra.mxu0 0
        %2031 = vmatprep.subr.bf16.mxu0 0
        %2032 = vmatpush1.bf16.msra.mxu0 0
        %2033 = vmatprep.subr.bf16.mxu0 0
        %2034 = vmatpush1.bf16.msra.mxu0 0
        %2035 = vmatprep.subr.bf16.mxu0 0
        %2036 = vmatpush1.bf16.msra.mxu0 0
        %2037 = vmatprep.subr.bf16.mxu0 0
        %2038 = vmatpush1.bf16.msra.mxu0 0
        %2039 = vmatprep.subr.bf16.mxu0 0
        %2040 = vmatpush1.bf16.msra.mxu0 0
        %2041 = vmatprep.subr.bf16.mxu0 0
        %2042 = vmatpush1.bf16.msra.mxu0 0
        %2043 = vmatprep.subr.bf16.mxu0 0
        %2044 = vmatpush1.bf16.msra.mxu0 0
        %2045 = vmatprep.mubr.bf16.mxu0 0
        %2046 = vmatmul.mubr.bf16.gmra.mrb[0].mxu0 %v2011
        %v2047 = vpop.f32.mrb[0].mxu0
        %v2048 = vadd.f32 %v1983, %v2047
        %v2049 = vpop.f32.mrb[0].mxu0
        %v2050 = vpop.f32.mrb[0].mxu0
        %v2051 = vpop.f32.mrb[0].mxu0
        %2052 = vdwg.mxu0
        %v2053 = vadd.f32 %v1875, %v2048
        %2054 = vst.msk [vmem:[#allocation2] sm:$0xff] %vm986, %v2053
        %2056 = vrot.lane.b32.xlu0 %v1071, 96
        %v2057 = vpop.permute.xlu0 %2056
        %2059 = vst.msk [vmem:[%s869] sm:$0xff] %vm2009, %v2057
        %2060 = vst.msk [vmem:[%s876] sm:$0xff] %vm2009, %v1546
        %2061 = vst.msk [vmem:[%s876 + $0x8] sm:$0xff] %vm2009, %v1549
        %p2062 = scmp.eq.s32.totalorder %s45, 1
        // Predicated region
        $region109: #{tpu_custom_call.1} parent=83 // pred_check
          %p2063 = pneg %p2062
        $region110: #{tpu_custom_call.1} parent=83 // pred_check_branch
          %2065 = sbr.rel (%p2063) target = $region112
        $region111: #{tpu_custom_call.1} parent=83 // pred_region
          %2066 = vst.msk [vmem:[%s862] sm:$0xff] %vm986, %v2053
        $region112: #{tpu_custom_call.1} parent=83 // pred_fallthru
          _
        %s2067 = sand.u32 %s466, 1
        %s2068 = scalar_lea.sflag [#allocation6], %s2067
        %s2069 = sand.u32 %s466, 1
        %s2070 = smul.addr %s2069, 8
        %s2071 = scalar_lea.vmem [#allocation12], %s2070
        %s2072 = sand.u32 %s40, 1
        %s2073 = scalar_lea.sflag [#allocation14], %s2072
        %s2074 = sand.u32 %s494, 1
        %s2075 = smul.addr %s2074, 8
        %s2076 = scalar_lea.vmem [#allocation13], %s2075
        %s2077 = sand.u32 %s40, 1
        %s2078 = scalar_lea.sflag [#allocation14], %s2077
        %s2079 = sand.u32 %s522, 1
        %s2080 = smul.addr %s2079, 16
        %s2081 = scalar_lea.vmem [#allocation15], %s2080
        // Predicated region
        $region113: #{tpu_custom_call.1} parent=83 // pred_check
          %p2082 = pneg %p476
        $region114: #{tpu_custom_call.1} parent=83 // pred_check_branch
          %2084 = sbr.rel (%p2082) target = $region116
        $region115: #{tpu_custom_call.1} parent=83 // pred_region
          %s2086 = ssub.s32 128, 128
          %2087 = vsyncadd %s2068, %s2086
          %s2088 = smul.addr %s44, 128
          %s2089 = scalar_lea.hbm %s16, %s2088
          %s2091 = sshll.u32 %s2071, 4
          %s2092 = int_to_ptr.vmem [resolvable:$true] %s2091
          %2094 = dma.vmem_to_hbm [thread:$0]  %s2092, 128, %s2089, %s2068
        $region116: #{tpu_custom_call.1} parent=83 // pred_fallthru
          _
        // Predicated region
        $region117: #{tpu_custom_call.1} parent=83 // pred_check
          %p2095 = pneg %p504
        $region118: #{tpu_custom_call.1} parent=83 // pred_check_branch
          %2097 = sbr.rel (%p2095) target = $region120
        $region119: #{tpu_custom_call.1} parent=83 // pred_region
          %s2099 = ssub.s32 128, 128
          %2100 = vsyncadd %s2073, %s2099
          %s2101 = smul.addr %s45, 2
          %s2102 = sadd.s32 %s44, %s2101
          %s2103 = smul.addr %s2102, 128
          %s2104 = scalar_lea.hbm %s17, %s2103
          %s2106 = sshll.u32 %s2076, 4
          %s2107 = int_to_ptr.vmem [resolvable:$true] %s2106
          %2109 = dma.vmem_to_hbm [thread:$0]  %s2107, 128, %s2104, %s2073
        $region120: #{tpu_custom_call.1} parent=83 // pred_fallthru
          _
        // Predicated region
        $region121: #{tpu_custom_call.1} parent=83 // pred_check
          %p2110 = pneg %p532
        $region122: #{tpu_custom_call.1} parent=83 // pred_check_branch
          %2112 = sbr.rel (%p2110) target = $region124
        $region123: #{tpu_custom_call.1} parent=83 // pred_region
          %s2114 = ssub.s32 256, 256
          %2115 = vsyncadd %s2078, %s2114
          %s2116 = smul.addr %s44, 2
          %s2117 = smul.addr %s45, 4
          %s2118 = sadd.s32 %s2116, %s2117
          %s2119 = smul.addr %s2118, 128
          %s2120 = scalar_lea.hbm %s18, %s2119
          %s2121 = sshll.u32 %s2081, 4
          %s2122 = int_to_ptr.vmem [resolvable:$true] %s2121
          %2127 = dma.vmem_to_hbm [thread:$0]  %s2122, 256, %s2120, %s2078, 128, 128, 8
        $region124: #{tpu_custom_call.1} parent=83 // pred_fallthru
          _
      $region84: #{tpu_custom_call.1} parent=5 // pred_fallthru
        _
      %p2128 = scmp.le.s32.totalorder 2, %s35
      // Predicated region
      $region125: #{tpu_custom_call.1} parent=5 // pred_check
        %p2129 = pneg %p2128
      $region126: #{tpu_custom_call.1} parent=5 // pred_check_branch
        %2131 = sbr.rel (%p2129) target = $region128
      $region127: #{tpu_custom_call.1} parent=5 // pred_region
        %s2132 = ssub.s32 %s35, 2
        // Predicated region
        $region129: #{tpu_custom_call.1} parent=127 // pred_check
          %p2133 = pneg %p482
        $region130: #{tpu_custom_call.1} parent=127 // pred_check_branch
          %2135 = sbr.rel (%p2133) target = $region132
        $region131: #{tpu_custom_call.1} parent=127 // pred_region
          %s2136 = sand.u32 %s467, 1
          %s2137 = scalar_lea.sflag [#allocation6], %s2136
          %s2138 = sand.u32 %s467, 1
          %s2139 = smul.addr %s2138, 8
          %s2140 = scalar_lea.vmem [#allocation12], %s2139
          %2141 = dma.done %s2137, 128
        $region132: #{tpu_custom_call.1} parent=127 // pred_fallthru
          _
        // Predicated region
        $region133: #{tpu_custom_call.1} parent=127 // pred_check
          %p2142 = pneg %p510
        $region134: #{tpu_custom_call.1} parent=127 // pred_check_branch
          %2144 = sbr.rel (%p2142) target = $region136
        $region135: #{tpu_custom_call.1} parent=127 // pred_region
          %s2145 = sand.u32 %s41, 1
          %s2146 = scalar_lea.sflag [#allocation14], %s2145
          %s2147 = sand.u32 %s495, 1
          %s2148 = smul.addr %s2147, 8
          %s2149 = scalar_lea.vmem [#allocation13], %s2148
          %2150 = dma.done %s2146, 128
        $region136: #{tpu_custom_call.1} parent=127 // pred_fallthru
          _
        // Predicated region
        $region137: #{tpu_custom_call.1} parent=127 // pred_check
          %p2151 = pneg %p538
        $region138: #{tpu_custom_call.1} parent=127 // pred_check_branch
          %2153 = sbr.rel (%p2151) target = $region140
        $region139: #{tpu_custom_call.1} parent=127 // pred_region
          %s2154 = sand.u32 %s41, 1
          %s2155 = scalar_lea.sflag [#allocation14], %s2154
          %s2156 = sand.u32 %s523, 1
          %s2157 = smul.addr %s2156, 16
          %s2158 = scalar_lea.vmem [#allocation15], %s2157
          %2159 = dma.done %s2155, 256
        $region140: #{tpu_custom_call.1} parent=127 // pred_fallthru
          _
      $region128: #{tpu_custom_call.1} parent=5 // pred_fallthru
        _
    $region6: #{tpu_custom_call.1} parent=1 // loop_footer
      %s39 = sadd.s32 1, %s35
    $region7: #{tpu_custom_call.1} parent=1 // loop_footer_branch
      %34 = sbr.rel target = $region3
    $region8: #{tpu_custom_call.1} parent=1 // loop_exit
      _
    %2160 = vsyncpa [#allocation5], 1
    %s2161 = scalar_lea.sflag [#allocation5], 1
    %2162 = vsyncpa %s2161, 1
    %2163 = vsyncpa [#allocation8], 1
    %2164 = vsyncpa [#allocation6], 1
    %s2165 = scalar_lea.sflag [#allocation6], 1
    %2166 = vsyncpa %s2165, 1
    %2167 = vsyncpa [#allocation14], 1
    %s2168 = scalar_lea.sflag [#allocation14], 1
    %2169 = vsyncpa %s2168, 1

</llo_original>
